<compile_context>
chip_gen: v7x
topology: tpu7x:2x2x1
jax: 0.10.0
libtpu: 0.0.40
codegen_flags: <defaults>
</compile_context>

<pallas_src>
import jax
import jax.numpy as jnp
from jax.experimental import pallas as pl
from jax.experimental.pallas import tpu as pltpu


def _lau_kernel(q_ref, ub_ref, wq_ref, wub_ref, wprod_ref, b1_ref,
                w23_ref, b23_ref, out_ref):
    # One grid step == Bblk batch rows.
    Bblk, T, E = ub_ref.shape
    H1 = b1_ref.shape[-1]

    q = q_ref[...]                                    # (Bblk, E)
    ub = ub_ref[...]                                  # (Bblk, T, E)

    ub_flat = ub.reshape(Bblk * T, E)                 # (Bblk*T, E)
    prod_flat = (ub * q[:, None, :]).reshape(Bblk * T, E)

    # Query contribution + fc1 bias, hoisted out of the T dimension: (Bblk, H1).
    row_bias = jnp.dot(q, wq_ref[...], preferred_element_type=jnp.float32) + b1_ref[...]

    # fc1 first Linear as two MXU matmuls over all Bblk*T rows.
    h = jnp.dot(ub_flat, wub_ref[...], preferred_element_type=jnp.float32)
    h = h + jnp.dot(prod_flat, wprod_ref[...], preferred_element_type=jnp.float32)
    h = h.reshape(Bblk, T, H1) + row_bias[:, None, :]
    h = jnp.maximum(h, 0.0)                           # ReLU

    # Folded Linear(H1,H2) @ Linear(H2,1): score = h @ w23 + b23, done as a lane reduce
    # so the result is directly the lane-dense (Bblk, T) tile we store.
    score = jnp.sum(h * w23_ref[...], axis=-1) + b23_ref[0, 0]   # (Bblk, T)
    out_ref[...] = score.astype(out_ref.dtype)


def local_activation_unit(query, user_behavior, params, block_b=128):
    """query: (B, 1, E); user_behavior: (B, T, E); returns attention_score (B, T, 1)."""
    w1, b1, w2, b2, w3, b3 = params
    B, T, E = user_behavior.shape
    H1 = w1.shape[1]

    q2 = query.reshape(B, E)

    # ---- offline (wrapper-side) weight folding; exact algebra -------------------
    w1q, w1ub, w1diff, w1prod = jnp.split(w1, 4, axis=0)   # each (E, H1)
    wq = w1q + w1diff               # multiplies the broadcast query rows
    wub = w1ub - w1diff             # multiplies user_behavior rows
    wprod = w1prod                  # multiplies (query * user_behavior) rows
    w23 = (w2 @ w3).reshape(1, H1)  # fused fc1[-1] @ fc2 weight, as a row vector
    b23 = b2 @ w3 + b3              # (1, 1) fused scalar bias
    b1r = b1.reshape(1, H1)

    # ---- batch tiling ------------------------------------------------------------
    if B <= 8:
        bblk = B                                    # single block == full (tiny) batch
    else:
        bblk = max(8, (min(block_b, B) // 8) * 8)   # sublane-aligned batch tile
    nblk = pl.cdiv(B, bblk)
    b_pad = nblk * bblk
    if b_pad != B:
        pad = b_pad - B
        q2 = jnp.pad(q2, ((0, pad), (0, 0)))
        ub = jnp.pad(user_behavior, ((0, pad), (0, 0), (0, 0)))
    else:
        ub = user_behavior

    out2 = pl.pallas_call(
        _lau_kernel,
        out_shape=jax.ShapeDtypeStruct((b_pad, T), query.dtype),
        grid=(nblk,),
        in_specs=[
            pl.BlockSpec((bblk, E), lambda i: (i, 0)),          # query  (batch tile)
            pl.BlockSpec((bblk, T, E), lambda i: (i, 0, 0)),    # user_behavior tile
            pl.BlockSpec((E, H1), lambda i: (0, 0)),            # wq   (resident)
            pl.BlockSpec((E, H1), lambda i: (0, 0)),            # wub  (resident)
            pl.BlockSpec((E, H1), lambda i: (0, 0)),            # wprod(resident)
            pl.BlockSpec((1, H1), lambda i: (0, 0)),            # b1
            pl.BlockSpec((1, H1), lambda i: (0, 0)),            # fused w23 row
            pl.BlockSpec(memory_space=pltpu.MemorySpace.SMEM),  # fused scalar bias b23
        ],
        out_specs=pl.BlockSpec((bblk, T), lambda i: (i, 0)),
        compiler_params=pltpu.CompilerParams(
            dimension_semantics=("parallel",)),                 # batch tiles shard across TCs
    )(q2, ub, wq, wub, wprod, b1r, w23, b23)

    return out2[:B, :, None]                                    # (B, T, 1)


def init_params(key, embedding_dim=4, hidden=(80, 40)):
    # Shapes match LocalActivationUnit.__init__ defaults (weights stored (in, out)).
    ks = jax.random.split(key, 6)
    in1 = 4 * embedding_dim
    w1 = jax.random.normal(ks[0], (in1, hidden[0]), jnp.float32) * 0.1
    b1 = jax.random.normal(ks[1], (1, hidden[0]), jnp.float32) * 0.1
    w2 = jax.random.normal(ks[2], (hidden[0], hidden[1]), jnp.float32) * 0.1
    b2 = jax.random.normal(ks[3], (1, hidden[1]), jnp.float32) * 0.1
    w3 = jax.random.normal(ks[4], (hidden[1], 1), jnp.float32) * 0.1
    b3 = jax.random.normal(ks[5], (1, 1), jnp.float32) * 0.1
    return (w1, b1, w2, b2, w3, b3)


def reference(query, user_behavior, params):
    # Pure-JAX mirror of the PyTorch LocalActivationUnit.forward.
    w1, b1, w2, b2, w3, b3 = params
    B, T, E = user_behavior.shape
    queries = jnp.broadcast_to(query, (B, T, E))
    att_in = jnp.concatenate(
        [queries, user_behavior, queries - user_behavior, queries * user_behavior],
        axis=-1)
    h = jnp.maximum(att_in @ w1 + b1, 0.0)
    h = h @ w2 + b2
    return h @ w3 + b3                               # (B, T, 1)


if __name__ == "__main__":
    key = jax.random.PRNGKey(0)
    kq, kub, kp = jax.random.split(key, 3)

    # embedding_dim=4, hidden_unit=[80, 40] (module defaults); T=8 behaviors.
    B, T, E = 256, 8, 4
    params = init_params(kp, embedding_dim=E, hidden=(80, 40))

    query = jax.random.normal(kq, (B, 1, E), jnp.float32)
    user_behavior = jax.random.normal(kub, (B, T, E), jnp.float32)

    out = jax.block_until_ready(local_activation_unit(query, user_behavior, params))
    ref = reference(query, user_behavior, params)
    assert out.shape == (B, T, 1)
    assert jnp.allclose(out, ref, atol=1e-4, rtol=1e-4), (out, ref)

    # Also exercise the tiny-batch path (B < 8, single grid step).
    q_s = jax.random.normal(kq, (2, 1, E), jnp.float32)
    ub_s = jax.random.normal(kub, (2, T, E), jnp.float32)
    out_s = jax.block_until_ready(local_activation_unit(q_s, ub_s, params))
    ref_s = reference(q_s, ub_s, params)
    assert out_s.shape == (2, T, 1)
    assert jnp.allclose(out_s, ref_s, atol=1e-4, rtol=1e-4), (out_s, ref_s)

    print("KERNEL_OK")
</pallas_src>

<mosaic_0001>
module attributes {stable_mosaic.version = 11 : i64} {
  func.func @_lau_kernel(%arg0: i32, %arg1: memref<128x4xf32, #tpu.memory_space<vmem>>, %arg2: memref<128x8x4xf32, #tpu.memory_space<vmem>>, %arg3: memref<4x80xf32, #tpu.memory_space<vmem>>, %arg4: memref<4x80xf32, #tpu.memory_space<vmem>>, %arg5: memref<4x80xf32, #tpu.memory_space<vmem>>, %arg6: memref<1x80xf32, #tpu.memory_space<vmem>>, %arg7: memref<1x80xf32, #tpu.memory_space<vmem>>, %arg8: memref<1x1xf32, #tpu.memory_space<smem>>, %arg9: memref<128x8xf32, #tpu.memory_space<vmem>>) attributes {dimension_semantics = [#tpu.dimension_semantics<parallel>], iteration_bounds = array<i64: 2>, scalar_prefetch = 0 : i64, scratch_operands = 0 : i64, tpu.core_type = #tpu.core_type<tc>, window_params = [{transform_indices = @transform_0, window_bounds = array<i64: 128, 4>}, {transform_indices = @transform_1, window_bounds = array<i64: 128, 8, 4>}, {pipeline_mode = #tpu.pipeline_mode<synchronous>, transform_indices = @transform_2, window_bounds = array<i64: 4, 80>}, {pipeline_mode = #tpu.pipeline_mode<synchronous>, transform_indices = @transform_3, window_bounds = array<i64: 4, 80>}, {pipeline_mode = #tpu.pipeline_mode<synchronous>, transform_indices = @transform_4, window_bounds = array<i64: 4, 80>}, {pipeline_mode = #tpu.pipeline_mode<synchronous>, transform_indices = @transform_5, window_bounds = array<i64: 1, 80>}, {pipeline_mode = #tpu.pipeline_mode<synchronous>, transform_indices = @transform_6, window_bounds = array<i64: 1, 80>}, {transform_indices = @transform_7, window_bounds = array<i64: 1, 1>}, {transform_indices = @transform_8, window_bounds = array<i64: 128, 8>}]} {
    %c0 = arith.constant 0 : index
    %c0_0 = arith.constant 0 : index
    %0 = vector.load %arg1[%c0, %c0_0] : memref<128x4xf32, #tpu.memory_space<vmem>>, vector<128x4xf32>
    %c0_1 = arith.constant 0 : index
    %c0_2 = arith.constant 0 : index
    %c0_3 = arith.constant 0 : index
    %1 = vector.load %arg2[%c0_1, %c0_2, %c0_3] : memref<128x8x4xf32, #tpu.memory_space<vmem>>, vector<128x8x4xf32>
    %2 = vector.shape_cast %1 : vector<128x8x4xf32> to vector<1024x4xf32>
    %3 = vector.shape_cast %0 : vector<128x4xf32> to vector<128x1x4xf32>
    %4 = vector.broadcast %3 : vector<128x1x4xf32> to vector<128x8x4xf32>
    %5 = arith.mulf %1, %4 : vector<128x8x4xf32>
    %6 = vector.shape_cast %5 : vector<128x8x4xf32> to vector<1024x4xf32>
    %c0_4 = arith.constant 0 : index
    %c0_5 = arith.constant 0 : index
    %7 = vector.load %arg3[%c0_4, %c0_5] : memref<4x80xf32, #tpu.memory_space<vmem>>, vector<4x80xf32>
    %cst = arith.constant dense<0.000000e+00> : vector<128x80xf32>
    %8 = tpu.matmul %0, %7, %cst {dimension_numbers = #tpu.dot_dimension_numbers<[1], [0], [0], [1], [0, 0, 1, 1], [], []>} : vector<128x4xf32>, vector<4x80xf32>, vector<128x80xf32> -> vector<128x80xf32>
    %c0_6 = arith.constant 0 : index
    %c0_7 = arith.constant 0 : index
    %9 = vector.load %arg6[%c0_6, %c0_7] : memref<1x80xf32, #tpu.memory_space<vmem>>, vector<1x80xf32>
    %10 = vector.broadcast %9 : vector<1x80xf32> to vector<128x80xf32>
    %11 = arith.addf %8, %10 : vector<128x80xf32>
    %c0_8 = arith.constant 0 : index
    %c0_9 = arith.constant 0 : index
    %12 = vector.load %arg4[%c0_8, %c0_9] : memref<4x80xf32, #tpu.memory_space<vmem>>, vector<4x80xf32>
    %cst_10 = arith.constant dense<0.000000e+00> : vector<1024x80xf32>
    %13 = tpu.matmul %2, %12, %cst_10 {dimension_numbers = #tpu.dot_dimension_numbers<[1], [0], [0], [1], [0, 0, 1, 1], [], []>} : vector<1024x4xf32>, vector<4x80xf32>, vector<1024x80xf32> -> vector<1024x80xf32>
    %c0_11 = arith.constant 0 : index
    %c0_12 = arith.constant 0 : index
    %14 = vector.load %arg5[%c0_11, %c0_12] : memref<4x80xf32, #tpu.memory_space<vmem>>, vector<4x80xf32>
    %cst_13 = arith.constant dense<0.000000e+00> : vector<1024x80xf32>
    %15 = tpu.matmul %6, %14, %cst_13 {dimension_numbers = #tpu.dot_dimension_numbers<[1], [0], [0], [1], [0, 0, 1, 1], [], []>} : vector<1024x4xf32>, vector<4x80xf32>, vector<1024x80xf32> -> vector<1024x80xf32>
    %16 = arith.addf %13, %15 : vector<1024x80xf32>
    %17 = vector.shape_cast %16 : vector<1024x80xf32> to vector<128x8x80xf32>
    %18 = vector.shape_cast %11 : vector<128x80xf32> to vector<128x1x80xf32>
    %19 = vector.broadcast %18 : vector<128x1x80xf32> to vector<128x8x80xf32>
    %20 = arith.addf %17, %19 : vector<128x8x80xf32>
    %cst_14 = arith.constant 0.000000e+00 : f32
    %21 = vector.broadcast %cst_14 : f32 to vector<128x8x80xf32>
    %22 = arith.maximumf %20, %21 : vector<128x8x80xf32>
    %c0_15 = arith.constant 0 : index
    %c0_16 = arith.constant 0 : index
    %23 = vector.load %arg7[%c0_15, %c0_16] : memref<1x80xf32, #tpu.memory_space<vmem>>, vector<1x80xf32>
    %24 = vector.shape_cast %23 : vector<1x80xf32> to vector<1x1x80xf32>
    %25 = vector.broadcast %24 : vector<1x1x80xf32> to vector<128x8x80xf32>
    %26 = arith.mulf %22, %25 : vector<128x8x80xf32>
    %cst_17 = arith.constant dense<0.000000e+00> : vector<128x8xf32>
    %27 = vector.multi_reduction <add>, %26, %cst_17 [2] : vector<128x8x80xf32> to vector<128x8xf32>
    %c0_18 = arith.constant 0 : index
    %c0_19 = arith.constant 0 : index
    %28 = memref.load %arg8[%c0_18, %c0_19] : memref<1x1xf32, #tpu.memory_space<smem>>
    %29 = vector.broadcast %28 : f32 to vector<128x8xf32>
    %30 = arith.addf %27, %29 : vector<128x8xf32>
    %c0_20 = arith.constant 0 : index
    %c0_21 = arith.constant 0 : index
    %31 = vector.load %arg9[%c0_20, %c0_21] : memref<128x8xf32, #tpu.memory_space<vmem>>, vector<128x8xf32>
    tpu.vector_store %arg9[%c0_20, %c0_21], %30 {strides = array<i32>} : memref<128x8xf32, #tpu.memory_space<vmem>>, vector<128x8xf32>,
    return
  }
  func.func @transform_0(%arg0: i32) -> (i32, i32) {
    %c0_i32 = arith.constant 0 : i32
    %c0_i32_0 = arith.constant 0 : i32
    return %arg0, %c0_i32 : i32, i32
  }
  func.func @transform_1(%arg0: i32) -> (i32, i32, i32) {
    %c0_i32 = arith.constant 0 : i32
    %c0_i32_0 = arith.constant 0 : i32
    %c0_i32_1 = arith.constant 0 : i32
    return %arg0, %c0_i32, %c0_i32_0 : i32, i32, i32
  }
  func.func @transform_2(%arg0: i32) -> (i32, i32) {
    %c0_i32 = arith.constant 0 : i32
    %c0_i32_0 = arith.constant 0 : i32
    %c0_i32_1 = arith.constant 0 : i32
    return %c0_i32, %c0_i32_0 : i32, i32
  }
  func.func @transform_3(%arg0: i32) -> (i32, i32) {
    %c0_i32 = arith.constant 0 : i32
    %c0_i32_0 = arith.constant 0 : i32
    %c0_i32_1 = arith.constant 0 : i32
    return %c0_i32, %c0_i32_0 : i32, i32
  }
  func.func @transform_4(%arg0: i32) -> (i32, i32) {
    %c0_i32 = arith.constant 0 : i32
    %c0_i32_0 = arith.constant 0 : i32
    %c0_i32_1 = arith.constant 0 : i32
    return %c0_i32, %c0_i32_0 : i32, i32
  }
  func.func @transform_5(%arg0: i32) -> (i32, i32) {
    %c0_i32 = arith.constant 0 : i32
    %c0_i32_0 = arith.constant 0 : i32
    %c0_i32_1 = arith.constant 0 : i32
    return %c0_i32, %c0_i32_0 : i32, i32
  }
  func.func @transform_6(%arg0: i32) -> (i32, i32) {
    %c0_i32 = arith.constant 0 : i32
    %c0_i32_0 = arith.constant 0 : i32
    %c0_i32_1 = arith.constant 0 : i32
    return %c0_i32, %c0_i32_0 : i32, i32
  }
  func.func @transform_7(%arg0: i32) -> (i32, i32) {
    %c0_i32 = arith.constant 0 : i32
    %c0_i32_0 = arith.constant 0 : i32
    %c0_i32_1 = arith.constant 0 : i32
    return %c0_i32, %c0_i32_0 : i32, i32
  }
  func.func @transform_8(%arg0: i32) -> (i32, i32) {
    %c0_i32 = arith.constant 0 : i32
    %c0_i32_0 = arith.constant 0 : i32
    return %arg0, %c0_i32 : i32, i32
  }
}

</mosaic_0001>

<llo_original>
// kernel: tpu_custom_call.1
$region0: #{tpu_custom_call.1}
  #allocation0 [shape = 'u32[]', space=smem, size = 0x4, offset = 0x4, fixed_abs, tag = 'smem constant byte address 0x4 - core index']
  #allocation1 [shape = 'u32[144,128]{1,0:T(1,128)}', space=vmem, size = 0x12000, scoped, tag = 'internal scratch']
  #allocation2 [shape = 'f32[1,1]{1,0:T(1,128)S(6)}', space=smem, size = 0x200, scoped, tag = 'scoped memory for tpu_custom_call.1']
  %s0 = inlined_call_operand.vmem [shape: f32[256,4], index: 0, kind: input, shape index: {}]
  %s1 = inlined_call_operand.vmem [shape: f32[256,8,4], index: 1, kind: input, shape index: {}]
  %s2 = inlined_call_operand.vmem [shape: f32[4,80], index: 2, kind: input, shape index: {}]
  %s3 = inlined_call_operand.vmem [shape: f32[4,80], index: 3, kind: input, shape index: {}]
  %s4 = inlined_call_operand.vmem [shape: f32[4,80], index: 4, kind: input, shape index: {}]
  %s5 = inlined_call_operand.vmem [shape: f32[1,80], index: 5, kind: input, shape index: {}]
  %s6 = inlined_call_operand.vmem [shape: f32[1,80], index: 6, kind: input, shape index: {}]
  %s7 = inlined_call_operand.<no memory space> [shape: f32[1,1], index: 7, kind: input, shape index: {}]
  %s8 = inlined_call_operand.vmem [shape: f32[256,8], index: 8, kind: output, shape index: {}]
  %s9 = sld [smem:[#allocation0]]
  $region65: #{tpu_custom_call.1} parent=0
    _
  %s11 = ssub.s32 1, %s9
  %s12 = scalar_select 0, %s11, %s9
  %13 = sst [smem:[#allocation2]] %s7
  loop: start=0, step=1, limit=4
  $region2: #{tpu_custom_call.1} parent=0 // loop_pre_header
    _
  $region3: #{tpu_custom_call.1} parent=0 // loop_header
    %s15 = sphi 0, %s19
    %p16 = scmp.ge.s32.totalorder %s15, 4
    %s25 = sphi 0, %s27
    %s28 = sphi 0, %s25
    %s29 = sphi 0, %s28
    %s45 = sphi 0, %s29
    %s51 = sphi 0, %s53
    %s54 = sphi 0, %s51
    %s55 = sphi 0, %s54
    %s71 = sphi 0, %s55
    %s75 = sphi 0, %s75
    %s77 = sphi 0, %s75
    %s78 = sphi 0, %s77
    %s92 = sphi 0, %s78
    %s96 = sphi 0, %s96
    %s98 = sphi 0, %s96
    %s99 = sphi 0, %s98
    %s113 = sphi 0, %s99
    %s117 = sphi 0, %s117
    %s119 = sphi 0, %s117
    %s120 = sphi 0, %s119
    %s134 = sphi 0, %s120
    %s138 = sphi 0, %s138
    %s140 = sphi 0, %s138
    %s141 = sphi 0, %s140
    %s155 = sphi 0, %s141
    %s159 = sphi 0, %s159
    %s161 = sphi 0, %s159
    %s162 = sphi 0, %s161
    %s176 = sphi 0, %s162
    %s180 = sphi 0, %s180
    %s182 = sphi 0, %s180
    %s183 = sphi 0, %s182
    %s197 = sphi 0, %s183
    %s203 = sphi 0, %s205
    %s206 = sphi 0, %s203
    %s207 = sphi 0, %s206
    %s223 = sphi 0, %s207
  $region4: #{tpu_custom_call.1} parent=0 // loop_header_branch
    %18 = sbr.rel (%p16) target = $region8
  $region5: #{tpu_custom_call.1} parent=0 // loop_body
    %s20 = ssub.s32 %s15, 1
    %s21 = ssub.s32 %s15, 2
    %s22 = sadd.s32 %s15, 1
    %s23 = ssub.s32 %s15, %s22
    %p24 = scmp.eq.s32.totalorder %s23, 0
    %s26 = sadd.s32 %s25, 1
    %s27 = scalar_select %p24, %s25, %s26
    %p30 = pneg %p24
    %p31 = scmp.eq.s32.totalorder %s15, 1
    %p32 = por %p30, %p31
    %p33 = scmp.ne.s32.totalorder %s25, %s28
    %p34 = scmp.eq.s32.totalorder %s15, 0
    %p35 = por %p33, %p34
    %p36 = scmp.ne.s32.totalorder %s25, %s28
    %p37 = scmp.eq.s32.totalorder %s20, 1
    %p38 = por %p36, %p37
    %p39 = scmp.ne.s32.totalorder %s28, %s29
    %p40 = scmp.eq.s32.totalorder %s20, 0
    %p41 = por %p39, %p40
    %p42 = scmp.ne.s32.totalorder %s28, %s29
    %p43 = scmp.eq.s32.totalorder %s21, 1
    %p44 = por %p42, %p43
    %p46 = scmp.ne.s32.totalorder %s29, %s45
    %p47 = scmp.eq.s32.totalorder %s21, 0
    %p48 = por %p46, %p47
    %s49 = ssub.s32 %s15, %s22
    %p50 = scmp.eq.s32.totalorder %s49, 0
    %s52 = sadd.s32 %s51, 1
    %s53 = scalar_select %p50, %s51, %s52
    %p56 = pneg %p50
    %p57 = scmp.eq.s32.totalorder %s15, 1
    %p58 = por %p56, %p57
    %p59 = scmp.ne.s32.totalorder %s51, %s54
    %p60 = scmp.eq.s32.totalorder %s15, 0
    %p61 = por %p59, %p60
    %p62 = scmp.ne.s32.totalorder %s51, %s54
    %p63 = scmp.eq.s32.totalorder %s20, 1
    %p64 = por %p62, %p63
    %p65 = scmp.ne.s32.totalorder %s54, %s55
    %p66 = scmp.eq.s32.totalorder %s20, 0
    %p67 = por %p65, %p66
    %p68 = scmp.ne.s32.totalorder %s54, %s55
    %p69 = scmp.eq.s32.totalorder %s21, 1
    %p70 = por %p68, %p69
    %p72 = scmp.ne.s32.totalorder %s55, %s71
    %p73 = scmp.eq.s32.totalorder %s21, 0
    %p74 = por %p72, %p73
    %s76 = sadd.s32 %s75, 1
    %p79 = scmp.eq.s32.totalorder %s15, 1
    %p80 = scmp.ne.s32.totalorder %s75, %s77
    %p81 = scmp.eq.s32.totalorder %s15, 0
    %p82 = por %p80, %p81
    %p83 = scmp.ne.s32.totalorder %s75, %s77
    %p84 = scmp.eq.s32.totalorder %s20, 1
    %p85 = por %p83, %p84
    %p86 = scmp.ne.s32.totalorder %s77, %s78
    %p87 = scmp.eq.s32.totalorder %s20, 0
    %p88 = por %p86, %p87
    %p89 = scmp.ne.s32.totalorder %s77, %s78
    %p90 = scmp.eq.s32.totalorder %s21, 1
    %p91 = por %p89, %p90
    %p93 = scmp.ne.s32.totalorder %s78, %s92
    %p94 = scmp.eq.s32.totalorder %s21, 0
    %p95 = por %p93, %p94
    %s97 = sadd.s32 %s96, 1
    %p100 = scmp.eq.s32.totalorder %s15, 1
    %p101 = scmp.ne.s32.totalorder %s96, %s98
    %p102 = scmp.eq.s32.totalorder %s15, 0
    %p103 = por %p101, %p102
    %p104 = scmp.ne.s32.totalorder %s96, %s98
    %p105 = scmp.eq.s32.totalorder %s20, 1
    %p106 = por %p104, %p105
    %p107 = scmp.ne.s32.totalorder %s98, %s99
    %p108 = scmp.eq.s32.totalorder %s20, 0
    %p109 = por %p107, %p108
    %p110 = scmp.ne.s32.totalorder %s98, %s99
    %p111 = scmp.eq.s32.totalorder %s21, 1
    %p112 = por %p110, %p111
    %p114 = scmp.ne.s32.totalorder %s99, %s113
    %p115 = scmp.eq.s32.totalorder %s21, 0
    %p116 = por %p114, %p115
    %s118 = sadd.s32 %s117, 1
    %p121 = scmp.eq.s32.totalorder %s15, 1
    %p122 = scmp.ne.s32.totalorder %s117, %s119
    %p123 = scmp.eq.s32.totalorder %s15, 0
    %p124 = por %p122, %p123
    %p125 = scmp.ne.s32.totalorder %s117, %s119
    %p126 = scmp.eq.s32.totalorder %s20, 1
    %p127 = por %p125, %p126
    %p128 = scmp.ne.s32.totalorder %s119, %s120
    %p129 = scmp.eq.s32.totalorder %s20, 0
    %p130 = por %p128, %p129
    %p131 = scmp.ne.s32.totalorder %s119, %s120
    %p132 = scmp.eq.s32.totalorder %s21, 1
    %p133 = por %p131, %p132
    %p135 = scmp.ne.s32.totalorder %s120, %s134
    %p136 = scmp.eq.s32.totalorder %s21, 0
    %p137 = por %p135, %p136
    %s139 = sadd.s32 %s138, 1
    %p142 = scmp.eq.s32.totalorder %s15, 1
    %p143 = scmp.ne.s32.totalorder %s138, %s140
    %p144 = scmp.eq.s32.totalorder %s15, 0
    %p145 = por %p143, %p144
    %p146 = scmp.ne.s32.totalorder %s138, %s140
    %p147 = scmp.eq.s32.totalorder %s20, 1
    %p148 = por %p146, %p147
    %p149 = scmp.ne.s32.totalorder %s140, %s141
    %p150 = scmp.eq.s32.totalorder %s20, 0
    %p151 = por %p149, %p150
    %p152 = scmp.ne.s32.totalorder %s140, %s141
    %p153 = scmp.eq.s32.totalorder %s21, 1
    %p154 = por %p152, %p153
    %p156 = scmp.ne.s32.totalorder %s141, %s155
    %p157 = scmp.eq.s32.totalorder %s21, 0
    %p158 = por %p156, %p157
    %s160 = sadd.s32 %s159, 1
    %p163 = scmp.eq.s32.totalorder %s15, 1
    %p164 = scmp.ne.s32.totalorder %s159, %s161
    %p165 = scmp.eq.s32.totalorder %s15, 0
    %p166 = por %p164, %p165
    %p167 = scmp.ne.s32.totalorder %s159, %s161
    %p168 = scmp.eq.s32.totalorder %s20, 1
    %p169 = por %p167, %p168
    %p170 = scmp.ne.s32.totalorder %s161, %s162
    %p171 = scmp.eq.s32.totalorder %s20, 0
    %p172 = por %p170, %p171
    %p173 = scmp.ne.s32.totalorder %s161, %s162
    %p174 = scmp.eq.s32.totalorder %s21, 1
    %p175 = por %p173, %p174
    %p177 = scmp.ne.s32.totalorder %s162, %s176
    %p178 = scmp.eq.s32.totalorder %s21, 0
    %p179 = por %p177, %p178
    %s181 = sadd.s32 %s180, 1
    %p184 = scmp.eq.s32.totalorder %s15, 1
    %p185 = scmp.ne.s32.totalorder %s180, %s182
    %p186 = scmp.eq.s32.totalorder %s15, 0
    %p187 = por %p185, %p186
    %p188 = scmp.ne.s32.totalorder %s180, %s182
    %p189 = scmp.eq.s32.totalorder %s20, 1
    %p190 = por %p188, %p189
    %p191 = scmp.ne.s32.totalorder %s182, %s183
    %p192 = scmp.eq.s32.totalorder %s20, 0
    %p193 = por %p191, %p192
    %p194 = scmp.ne.s32.totalorder %s182, %s183
    %p195 = scmp.eq.s32.totalorder %s21, 1
    %p196 = por %p194, %p195
    %p198 = scmp.ne.s32.totalorder %s183, %s197
    %p199 = scmp.eq.s32.totalorder %s21, 0
    %p200 = por %p198, %p199
    %s201 = ssub.s32 %s15, %s22
    %p202 = scmp.eq.s32.totalorder %s201, 0
    %s204 = sadd.s32 %s203, 1
    %s205 = scalar_select %p202, %s203, %s204
    %p208 = pneg %p202
    %p209 = scmp.eq.s32.totalorder %s15, 1
    %p210 = por %p208, %p209
    %p211 = scmp.ne.s32.totalorder %s203, %s206
    %p212 = scmp.eq.s32.totalorder %s15, 0
    %p213 = por %p211, %p212
    %p214 = scmp.ne.s32.totalorder %s203, %s206
    %p215 = scmp.eq.s32.totalorder %s20, 1
    %p216 = por %p214, %p215
    %p217 = scmp.ne.s32.totalorder %s206, %s207
    %p218 = scmp.eq.s32.totalorder %s20, 0
    %p219 = por %p217, %p218
    %p220 = scmp.ne.s32.totalorder %s206, %s207
    %p221 = scmp.eq.s32.totalorder %s21, 1
    %p222 = por %p220, %p221
    %p224 = scmp.ne.s32.totalorder %s207, %s223
    %p225 = scmp.eq.s32.totalorder %s21, 0
    %p226 = por %p224, %p225
    %p227 = scmp.le.s32.totalorder 1, %s15
    %p228 = scmp.lt.s32.totalorder %s15, 3
    %p229 = pnand %p227, %p228
    %p230 = pneg %p229
    // Predicated region
    $region9: #{tpu_custom_call.1} parent=5 // pred_check
      _
    $region10: #{tpu_custom_call.1} parent=5 // pred_check_branch
      %232 = sbr.rel (%p229) target = $region12
    $region11: #{tpu_custom_call.1} parent=5 // pred_region
      %s233 = ssub.s32 %s15, 1
      // Predicated region
      $region13: #{tpu_custom_call.1} parent=11 // pred_check
        %p234 = pneg %p88
      $region14: #{tpu_custom_call.1} parent=11 // pred_check_branch
        %236 = sbr.rel (%p234) target = $region16
      $region15: #{tpu_custom_call.1} parent=11 // pred_region
        _
      $region16: #{tpu_custom_call.1} parent=11 // pred_fallthru
        _
      // Predicated region
      $region17: #{tpu_custom_call.1} parent=11 // pred_check
        %p237 = pneg %p109
      $region18: #{tpu_custom_call.1} parent=11 // pred_check_branch
        %239 = sbr.rel (%p237) target = $region20
      $region19: #{tpu_custom_call.1} parent=11 // pred_region
        _
      $region20: #{tpu_custom_call.1} parent=11 // pred_fallthru
        _
      // Predicated region
      $region21: #{tpu_custom_call.1} parent=11 // pred_check
        %p240 = pneg %p130
      $region22: #{tpu_custom_call.1} parent=11 // pred_check_branch
        %242 = sbr.rel (%p240) target = $region24
      $region23: #{tpu_custom_call.1} parent=11 // pred_region
        _
      $region24: #{tpu_custom_call.1} parent=11 // pred_fallthru
        _
      // Predicated region
      $region25: #{tpu_custom_call.1} parent=11 // pred_check
        %p243 = pneg %p151
      $region26: #{tpu_custom_call.1} parent=11 // pred_check_branch
        %245 = sbr.rel (%p243) target = $region28
      $region27: #{tpu_custom_call.1} parent=11 // pred_region
        _
      $region28: #{tpu_custom_call.1} parent=11 // pred_fallthru
        _
      // Predicated region
      $region29: #{tpu_custom_call.1} parent=11 // pred_check
        %p246 = pneg %p172
      $region30: #{tpu_custom_call.1} parent=11 // pred_check_branch
        %248 = sbr.rel (%p246) target = $region32
      $region31: #{tpu_custom_call.1} parent=11 // pred_region
        _
      $region32: #{tpu_custom_call.1} parent=11 // pred_fallthru
        _
      // Predicated region
      $region33: #{tpu_custom_call.1} parent=11 // pred_check
        %p249 = pneg %p193
      $region34: #{tpu_custom_call.1} parent=11 // pred_check_branch
        %251 = sbr.rel (%p249) target = $region36
      $region35: #{tpu_custom_call.1} parent=11 // pred_region
        _
      $region36: #{tpu_custom_call.1} parent=11 // pred_fallthru
        _
    $region12: #{tpu_custom_call.1} parent=5 // pred_fallthru
      _
    %p252 = scmp.lt.s32.totalorder %s15, 2
    // Predicated region
    $region37: #{tpu_custom_call.1} parent=5 // pred_check
      %p253 = pneg %p252
    $region38: #{tpu_custom_call.1} parent=5 // pred_check_branch
      %255 = sbr.rel (%p253) target = $region40
    $region39: #{tpu_custom_call.1} parent=5 // pred_region
      // Predicated region
      $region41: #{tpu_custom_call.1} parent=39 // pred_check
        %p256 = pneg %p35
      $region42: #{tpu_custom_call.1} parent=39 // pred_check_branch
        %258 = sbr.rel (%p256) target = $region44
      $region43: #{tpu_custom_call.1} parent=39 // pred_region
        %s259 = smul.u32 16, %s15
        %p260 = scmp.lt.s32.totalorder %s259, 31
        %s261 = scalar_select %p260, %s259, 31
        %s262 = smul.addr %s261, 8
        %s263 = scalar_lea.vmem %s0, %s262
        %s264 = smul.u32 16, %s15
      $region44: #{tpu_custom_call.1} parent=39 // pred_fallthru
        _
      // Predicated region
      $region45: #{tpu_custom_call.1} parent=39 // pred_check
        %p265 = pneg %p61
      $region46: #{tpu_custom_call.1} parent=39 // pred_check_branch
        %267 = sbr.rel (%p265) target = $region48
      $region47: #{tpu_custom_call.1} parent=39 // pred_region
        %s268 = smul.u32 128, %s15
        %p269 = scmp.lt.s32.totalorder %s268, 255
        %s270 = scalar_select %p269, %s268, 255
        %s271 = smul.addr %s270, 8
        %s272 = scalar_lea.vmem %s1, %s271
        %s273 = smul.u32 128, %s15
      $region48: #{tpu_custom_call.1} parent=39 // pred_fallthru
        _
    $region40: #{tpu_custom_call.1} parent=5 // pred_fallthru
      _
    %p274 = scmp.le.s32.totalorder 1, %s15
    %p275 = scmp.lt.s32.totalorder %s15, 3
    %p276 = pnand %p274, %p275
    %p277 = pneg %p276
    // Predicated region
    $region49: #{tpu_custom_call.1} parent=5 // pred_check
      _
    $region50: #{tpu_custom_call.1} parent=5 // pred_check_branch
      %279 = sbr.rel (%p276) target = $region52
    $region51: #{tpu_custom_call.1} parent=5 // pred_region
      %s280 = ssub.s32 %s15, 1
      %s281 = smul.u32 16, %s20
      %p282 = scmp.lt.s32.totalorder %s281, 31
      %s283 = scalar_select %p282, %s281, 31
      %s284 = smul.addr %s283, 8
      %s285 = scalar_lea.vmem %s0, %s284
      %p286 = pneg %p41
      %p287 = pneg %p38
      %s288 = smul.u32 128, %s20
      %p289 = scmp.lt.s32.totalorder %s288, 255
      %s290 = scalar_select %p289, %s288, 255
      %s291 = smul.addr %s290, 8
      %s292 = scalar_lea.vmem %s1, %s291
      %p293 = pneg %p67
      %p294 = pneg %p64
      %p295 = pneg %p88
      %p296 = pneg %p85
      %p297 = pneg %p109
      %p298 = pneg %p106
      %p299 = pneg %p130
      %p300 = pneg %p127
      %p301 = pneg %p151
      %p302 = pneg %p148
      %p303 = pneg %p172
      %p304 = pneg %p169
      %p305 = pneg %p193
      %p306 = pneg %p190
      %p307 = pneg %p219
      %p308 = pneg %p216
      %s309 = smul.u32 16, %s20
      %p310 = scmp.lt.s32.totalorder %s309, 31
      %s311 = scalar_select %p310, %s309, 31
      %s312 = smul.addr %s311, 8
      %s313 = scalar_lea.vmem %s8, %s312
      %s314 = smul.u32 16, %s20
      %p315 = scmp.lt.s32.totalorder %s314, 31
      %s316 = scalar_select %p315, %s314, 31
      %s317 = smul.addr %s316, 8
      %s318 = scalar_lea.vmem %s0, %s317
      %s319 = smul.u32 16, %s20
      %s320 = smul.u32 128, %s20
      %p321 = scmp.lt.s32.totalorder %s320, 255
      %s322 = scalar_select %p321, %s320, 255
      %s323 = smul.addr %s322, 8
      %s324 = scalar_lea.vmem %s1, %s323
      %s325 = smul.u32 128, %s20
      %s326 = smul.u32 16, %s20
      %p327 = scmp.lt.s32.totalorder %s326, 31
      %s328 = scalar_select %p327, %s326, 31
      %s329 = smul.addr %s328, 8
      %s330 = scalar_lea.vmem %s8, %s329
      %s331 = smul.u32 16, %s20
      %v332 = vld [vmem:[%s318] sm:$0xff]
      %v333 = vld [vmem:[%s318 + $0x8] sm:$0xff]
      %v334 = vld [vmem:[%s318 + $0x10] sm:$0xff]
      %v335 = vld [vmem:[%s318 + $0x18] sm:$0xff]
      %v336 = vld [vmem:[%s318 + $0x20] sm:$0xff]
      %v337 = vld [vmem:[%s318 + $0x28] sm:$0xff]
      %v338 = vld [vmem:[%s318 + $0x30] sm:$0xff]
      %v339 = vld [vmem:[%s318 + $0x38] sm:$0xff]
      %v340 = vld [vmem:[%s318 + $0x40] sm:$0xff]
      %v341 = vld [vmem:[%s318 + $0x48] sm:$0xff]
      %v342 = vld [vmem:[%s318 + $0x50] sm:$0xff]
      %v343 = vld [vmem:[%s318 + $0x58] sm:$0xff]
      %v344 = vld [vmem:[%s318 + $0x60] sm:$0xff]
      %v345 = vld [vmem:[%s318 + $0x68] sm:$0xff]
      %v346 = vld [vmem:[%s318 + $0x70] sm:$0xff]
      %v347 = vld [vmem:[%s318 + $0x78] sm:$0xff]
      %v348 = vld [vmem:[%s324] sm:$0xff]
      %v349 = vld [vmem:[%s324 + $0x8] sm:$0xff]
      %v350 = vld [vmem:[%s324 + $0x10] sm:$0xff]
      %v351 = vld [vmem:[%s324 + $0x18] sm:$0xff]
      %v352 = vld [vmem:[%s324 + $0x20] sm:$0xff]
      %v353 = vld [vmem:[%s324 + $0x28] sm:$0xff]
      %v354 = vld [vmem:[%s324 + $0x30] sm:$0xff]
      %v355 = vld [vmem:[%s324 + $0x38] sm:$0xff]
      %v356 = vld [vmem:[%s324 + $0x40] sm:$0xff]
      %v357 = vld [vmem:[%s324 + $0x48] sm:$0xff]
      %v358 = vld [vmem:[%s324 + $0x50] sm:$0xff]
      %v359 = vld [vmem:[%s324 + $0x58] sm:$0xff]
      %v360 = vld [vmem:[%s324 + $0x60] sm:$0xff]
      %v361 = vld [vmem:[%s324 + $0x68] sm:$0xff]
      %v362 = vld [vmem:[%s324 + $0x70] sm:$0xff]
      %v363 = vld [vmem:[%s324 + $0x78] sm:$0xff]
      %v364 = vld [vmem:[%s324 + $0x80] sm:$0xff]
      %v365 = vld [vmem:[%s324 + $0x88] sm:$0xff]
      %v366 = vld [vmem:[%s324 + $0x90] sm:$0xff]
      %v367 = vld [vmem:[%s324 + $0x98] sm:$0xff]
      %v368 = vld [vmem:[%s324 + $0xa0] sm:$0xff]
      %v369 = vld [vmem:[%s324 + $0xa8] sm:$0xff]
      %v370 = vld [vmem:[%s324 + $0xb0] sm:$0xff]
      %v371 = vld [vmem:[%s324 + $0xb8] sm:$0xff]
      %v372 = vld [vmem:[%s324 + $0xc0] sm:$0xff]
      %v373 = vld [vmem:[%s324 + $0xc8] sm:$0xff]
      %v374 = vld [vmem:[%s324 + $0xd0] sm:$0xff]
      %v375 = vld [vmem:[%s324 + $0xd8] sm:$0xff]
      %v376 = vld [vmem:[%s324 + $0xe0] sm:$0xff]
      %v377 = vld [vmem:[%s324 + $0xe8] sm:$0xff]
      %v378 = vld [vmem:[%s324 + $0xf0] sm:$0xff]
      %v379 = vld [vmem:[%s324 + $0xf8] sm:$0xff]
      %v380 = vld [vmem:[%s324 + $0x100] sm:$0xff]
      %v381 = vld [vmem:[%s324 + $0x108] sm:$0xff]
      %v382 = vld [vmem:[%s324 + $0x110] sm:$0xff]
      %v383 = vld [vmem:[%s324 + $0x118] sm:$0xff]
      %v384 = vld [vmem:[%s324 + $0x120] sm:$0xff]
      %v385 = vld [vmem:[%s324 + $0x128] sm:$0xff]
      %v386 = vld [vmem:[%s324 + $0x130] sm:$0xff]
      %v387 = vld [vmem:[%s324 + $0x138] sm:$0xff]
      %v388 = vld [vmem:[%s324 + $0x140] sm:$0xff]
      %v389 = vld [vmem:[%s324 + $0x148] sm:$0xff]
      %v390 = vld [vmem:[%s324 + $0x150] sm:$0xff]
      %v391 = vld [vmem:[%s324 + $0x158] sm:$0xff]
      %v392 = vld [vmem:[%s324 + $0x160] sm:$0xff]
      %v393 = vld [vmem:[%s324 + $0x168] sm:$0xff]
      %v394 = vld [vmem:[%s324 + $0x170] sm:$0xff]
      %v395 = vld [vmem:[%s324 + $0x178] sm:$0xff]
      %v396 = vld [vmem:[%s324 + $0x180] sm:$0xff]
      %v397 = vld [vmem:[%s324 + $0x188] sm:$0xff]
      %v398 = vld [vmem:[%s324 + $0x190] sm:$0xff]
      %v399 = vld [vmem:[%s324 + $0x198] sm:$0xff]
      %v400 = vld [vmem:[%s324 + $0x1a0] sm:$0xff]
      %v401 = vld [vmem:[%s324 + $0x1a8] sm:$0xff]
      %v402 = vld [vmem:[%s324 + $0x1b0] sm:$0xff]
      %v403 = vld [vmem:[%s324 + $0x1b8] sm:$0xff]
      %v404 = vld [vmem:[%s324 + $0x1c0] sm:$0xff]
      %v405 = vld [vmem:[%s324 + $0x1c8] sm:$0xff]
      %v406 = vld [vmem:[%s324 + $0x1d0] sm:$0xff]
      %v407 = vld [vmem:[%s324 + $0x1d8] sm:$0xff]
      %v408 = vld [vmem:[%s324 + $0x1e0] sm:$0xff]
      %v409 = vld [vmem:[%s324 + $0x1e8] sm:$0xff]
      %v410 = vld [vmem:[%s324 + $0x1f0] sm:$0xff]
      %v411 = vld [vmem:[%s324 + $0x1f8] sm:$0xff]
      %v412 = vld [vmem:[%s324 + $0x200] sm:$0xff]
      %v413 = vld [vmem:[%s324 + $0x208] sm:$0xff]
      %v414 = vld [vmem:[%s324 + $0x210] sm:$0xff]
      %v415 = vld [vmem:[%s324 + $0x218] sm:$0xff]
      %v416 = vld [vmem:[%s324 + $0x220] sm:$0xff]
      %v417 = vld [vmem:[%s324 + $0x228] sm:$0xff]
      %v418 = vld [vmem:[%s324 + $0x230] sm:$0xff]
      %v419 = vld [vmem:[%s324 + $0x238] sm:$0xff]
      %v420 = vld [vmem:[%s324 + $0x240] sm:$0xff]
      %v421 = vld [vmem:[%s324 + $0x248] sm:$0xff]
      %v422 = vld [vmem:[%s324 + $0x250] sm:$0xff]
      %v423 = vld [vmem:[%s324 + $0x258] sm:$0xff]
      %v424 = vld [vmem:[%s324 + $0x260] sm:$0xff]
      %v425 = vld [vmem:[%s324 + $0x268] sm:$0xff]
      %v426 = vld [vmem:[%s324 + $0x270] sm:$0xff]
      %v427 = vld [vmem:[%s324 + $0x278] sm:$0xff]
      %v428 = vld [vmem:[%s324 + $0x280] sm:$0xff]
      %v429 = vld [vmem:[%s324 + $0x288] sm:$0xff]
      %v430 = vld [vmem:[%s324 + $0x290] sm:$0xff]
      %v431 = vld [vmem:[%s324 + $0x298] sm:$0xff]
      %v432 = vld [vmem:[%s324 + $0x2a0] sm:$0xff]
      %v433 = vld [vmem:[%s324 + $0x2a8] sm:$0xff]
      %v434 = vld [vmem:[%s324 + $0x2b0] sm:$0xff]
      %v435 = vld [vmem:[%s324 + $0x2b8] sm:$0xff]
      %v436 = vld [vmem:[%s324 + $0x2c0] sm:$0xff]
      %v437 = vld [vmem:[%s324 + $0x2c8] sm:$0xff]
      %v438 = vld [vmem:[%s324 + $0x2d0] sm:$0xff]
      %v439 = vld [vmem:[%s324 + $0x2d8] sm:$0xff]
      %v440 = vld [vmem:[%s324 + $0x2e0] sm:$0xff]
      %v441 = vld [vmem:[%s324 + $0x2e8] sm:$0xff]
      %v442 = vld [vmem:[%s324 + $0x2f0] sm:$0xff]
      %v443 = vld [vmem:[%s324 + $0x2f8] sm:$0xff]
      %v444 = vld [vmem:[%s324 + $0x300] sm:$0xff]
      %v445 = vld [vmem:[%s324 + $0x308] sm:$0xff]
      %v446 = vld [vmem:[%s324 + $0x310] sm:$0xff]
      %v447 = vld [vmem:[%s324 + $0x318] sm:$0xff]
      %v448 = vld [vmem:[%s324 + $0x320] sm:$0xff]
      %v449 = vld [vmem:[%s324 + $0x328] sm:$0xff]
      %v450 = vld [vmem:[%s324 + $0x330] sm:$0xff]
      %v451 = vld [vmem:[%s324 + $0x338] sm:$0xff]
      %v452 = vld [vmem:[%s324 + $0x340] sm:$0xff]
      %v453 = vld [vmem:[%s324 + $0x348] sm:$0xff]
      %v454 = vld [vmem:[%s324 + $0x350] sm:$0xff]
      %v455 = vld [vmem:[%s324 + $0x358] sm:$0xff]
      %v456 = vld [vmem:[%s324 + $0x360] sm:$0xff]
      %v457 = vld [vmem:[%s324 + $0x368] sm:$0xff]
      %v458 = vld [vmem:[%s324 + $0x370] sm:$0xff]
      %v459 = vld [vmem:[%s324 + $0x378] sm:$0xff]
      %v460 = vld [vmem:[%s324 + $0x380] sm:$0xff]
      %v461 = vld [vmem:[%s324 + $0x388] sm:$0xff]
      %v462 = vld [vmem:[%s324 + $0x390] sm:$0xff]
      %v463 = vld [vmem:[%s324 + $0x398] sm:$0xff]
      %v464 = vld [vmem:[%s324 + $0x3a0] sm:$0xff]
      %v465 = vld [vmem:[%s324 + $0x3a8] sm:$0xff]
      %v466 = vld [vmem:[%s324 + $0x3b0] sm:$0xff]
      %v467 = vld [vmem:[%s324 + $0x3b8] sm:$0xff]
      %v468 = vld [vmem:[%s324 + $0x3c0] sm:$0xff]
      %v469 = vld [vmem:[%s324 + $0x3c8] sm:$0xff]
      %v470 = vld [vmem:[%s324 + $0x3d0] sm:$0xff]
      %v471 = vld [vmem:[%s324 + $0x3d8] sm:$0xff]
      %v472 = vld [vmem:[%s324 + $0x3e0] sm:$0xff]
      %v473 = vld [vmem:[%s324 + $0x3e8] sm:$0xff]
      %v474 = vld [vmem:[%s324 + $0x3f0] sm:$0xff]
      %v475 = vld [vmem:[%s324 + $0x3f8] sm:$0xff]
      %v492 = vcombine.high %v332, %v332
      %v494 = vunpack.c.l.s4 1966171168
      %v495 = vunpack.c.0.s8 %v494
      %v496 = vlaneseq
      %v497 = vshrl.u32 %v496, 7
      %v498 = vsub.s32 %v495, %v497
      %v499 = vrot.slane %v332, %v498
      %v501 = vunpack.c.l.s4 1966171168
      %v502 = vunpack.c.0.s8 %v501
      %v503 = vlaneseq
      %v504 = vshrl.u32 %v503, 7
      %v505 = vsub.s32 %v502, %v504
      %v506 = vrot.slane %v492, %v505
      %v507 = vcombine.high %v499, %v499
      %v508 = vcombine.high %v506, %v506
      %v510 = vunpack.c.l.s4 1966171168
      %v511 = vunpack.c.0.s8 %v510
      %v512 = vlaneseq
      %v513 = vshrl.u32 %v512, 7
      %v514 = vsub.s32 %v511, %v513
      %v515 = vrot.slane %v499, %v514
      %v517 = vunpack.c.l.s4 1966171168
      %v518 = vunpack.c.0.s8 %v517
      %v519 = vlaneseq
      %v520 = vshrl.u32 %v519, 7
      %v521 = vsub.s32 %v518, %v520
      %v522 = vrot.slane %v506, %v521
      %v524 = vunpack.c.l.s4 1966171168
      %v525 = vunpack.c.0.s8 %v524
      %v526 = vlaneseq
      %v527 = vshrl.u32 %v526, 7
      %v528 = vsub.s32 %v525, %v527
      %v529 = vrot.slane %v507, %v528
      %v531 = vunpack.c.l.s4 1966171168
      %v532 = vunpack.c.0.s8 %v531
      %v533 = vlaneseq
      %v534 = vshrl.u32 %v533, 7
      %v535 = vsub.s32 %v532, %v534
      %v536 = vrot.slane %v508, %v535
      %v537 = vcombine.high %v515, %v515
      %v538 = vcombine.high %v522, %v522
      %v539 = vcombine.high %v529, %v529
      %v540 = vcombine.high %v536, %v536
      %v541 = vcombine.high %v333, %v333
      %v543 = vunpack.c.l.s4 1966171168
      %v544 = vunpack.c.0.s8 %v543
      %v545 = vlaneseq
      %v546 = vshrl.u32 %v545, 7
      %v547 = vsub.s32 %v544, %v546
      %v548 = vrot.slane %v333, %v547
      %v550 = vunpack.c.l.s4 1966171168
      %v551 = vunpack.c.0.s8 %v550
      %v552 = vlaneseq
      %v553 = vshrl.u32 %v552, 7
      %v554 = vsub.s32 %v551, %v553
      %v555 = vrot.slane %v541, %v554
      %v556 = vcombine.high %v548, %v548
      %v557 = vcombine.high %v555, %v555
      %v559 = vunpack.c.l.s4 1966171168
      %v560 = vunpack.c.0.s8 %v559
      %v561 = vlaneseq
      %v562 = vshrl.u32 %v561, 7
      %v563 = vsub.s32 %v560, %v562
      %v564 = vrot.slane %v548, %v563
      %v566 = vunpack.c.l.s4 1966171168
      %v567 = vunpack.c.0.s8 %v566
      %v568 = vlaneseq
      %v569 = vshrl.u32 %v568, 7
      %v570 = vsub.s32 %v567, %v569
      %v571 = vrot.slane %v555, %v570
      %v573 = vunpack.c.l.s4 1966171168
      %v574 = vunpack.c.0.s8 %v573
      %v575 = vlaneseq
      %v576 = vshrl.u32 %v575, 7
      %v577 = vsub.s32 %v574, %v576
      %v578 = vrot.slane %v556, %v577
      %v580 = vunpack.c.l.s4 1966171168
      %v581 = vunpack.c.0.s8 %v580
      %v582 = vlaneseq
      %v583 = vshrl.u32 %v582, 7
      %v584 = vsub.s32 %v581, %v583
      %v585 = vrot.slane %v557, %v584
      %v586 = vcombine.high %v564, %v564
      %v587 = vcombine.high %v571, %v571
      %v588 = vcombine.high %v578, %v578
      %v589 = vcombine.high %v585, %v585
      %v590 = vcombine.high %v334, %v334
      %v592 = vunpack.c.l.s4 1966171168
      %v593 = vunpack.c.0.s8 %v592
      %v594 = vlaneseq
      %v595 = vshrl.u32 %v594, 7
      %v596 = vsub.s32 %v593, %v595
      %v597 = vrot.slane %v334, %v596
      %v599 = vunpack.c.l.s4 1966171168
      %v600 = vunpack.c.0.s8 %v599
      %v601 = vlaneseq
      %v602 = vshrl.u32 %v601, 7
      %v603 = vsub.s32 %v600, %v602
      %v604 = vrot.slane %v590, %v603
      %v605 = vcombine.high %v597, %v597
      %v606 = vcombine.high %v604, %v604
      %v608 = vunpack.c.l.s4 1966171168
      %v609 = vunpack.c.0.s8 %v608
      %v610 = vlaneseq
      %v611 = vshrl.u32 %v610, 7
      %v612 = vsub.s32 %v609, %v611
      %v613 = vrot.slane %v597, %v612
      %v615 = vunpack.c.l.s4 1966171168
      %v616 = vunpack.c.0.s8 %v615
      %v617 = vlaneseq
      %v618 = vshrl.u32 %v617, 7
      %v619 = vsub.s32 %v616, %v618
      %v620 = vrot.slane %v604, %v619
      %v622 = vunpack.c.l.s4 1966171168
      %v623 = vunpack.c.0.s8 %v622
      %v624 = vlaneseq
      %v625 = vshrl.u32 %v624, 7
      %v626 = vsub.s32 %v623, %v625
      %v627 = vrot.slane %v605, %v626
      %v629 = vunpack.c.l.s4 1966171168
      %v630 = vunpack.c.0.s8 %v629
      %v631 = vlaneseq
      %v632 = vshrl.u32 %v631, 7
      %v633 = vsub.s32 %v630, %v632
      %v634 = vrot.slane %v606, %v633
      %v635 = vcombine.high %v613, %v613
      %v636 = vcombine.high %v620, %v620
      %v637 = vcombine.high %v627, %v627
      %v638 = vcombine.high %v634, %v634
      %v639 = vcombine.high %v335, %v335
      %v641 = vunpack.c.l.s4 1966171168
      %v642 = vunpack.c.0.s8 %v641
      %v643 = vlaneseq
      %v644 = vshrl.u32 %v643, 7
      %v645 = vsub.s32 %v642, %v644
      %v646 = vrot.slane %v335, %v645
      %v648 = vunpack.c.l.s4 1966171168
      %v649 = vunpack.c.0.s8 %v648
      %v650 = vlaneseq
      %v651 = vshrl.u32 %v650, 7
      %v652 = vsub.s32 %v649, %v651
      %v653 = vrot.slane %v639, %v652
      %v654 = vcombine.high %v646, %v646
      %v655 = vcombine.high %v653, %v653
      %v657 = vunpack.c.l.s4 1966171168
      %v658 = vunpack.c.0.s8 %v657
      %v659 = vlaneseq
      %v660 = vshrl.u32 %v659, 7
      %v661 = vsub.s32 %v658, %v660
      %v662 = vrot.slane %v646, %v661
      %v664 = vunpack.c.l.s4 1966171168
      %v665 = vunpack.c.0.s8 %v664
      %v666 = vlaneseq
      %v667 = vshrl.u32 %v666, 7
      %v668 = vsub.s32 %v665, %v667
      %v669 = vrot.slane %v653, %v668
      %v671 = vunpack.c.l.s4 1966171168
      %v672 = vunpack.c.0.s8 %v671
      %v673 = vlaneseq
      %v674 = vshrl.u32 %v673, 7
      %v675 = vsub.s32 %v672, %v674
      %v676 = vrot.slane %v654, %v675
      %v678 = vunpack.c.l.s4 1966171168
      %v679 = vunpack.c.0.s8 %v678
      %v680 = vlaneseq
      %v681 = vshrl.u32 %v680, 7
      %v682 = vsub.s32 %v679, %v681
      %v683 = vrot.slane %v655, %v682
      %v684 = vcombine.high %v662, %v662
      %v685 = vcombine.high %v669, %v669
      %v686 = vcombine.high %v676, %v676
      %v687 = vcombine.high %v683, %v683
      %v688 = vcombine.high %v336, %v336
      %v690 = vunpack.c.l.s4 1966171168
      %v691 = vunpack.c.0.s8 %v690
      %v692 = vlaneseq
      %v693 = vshrl.u32 %v692, 7
      %v694 = vsub.s32 %v691, %v693
      %v695 = vrot.slane %v336, %v694
      %v697 = vunpack.c.l.s4 1966171168
      %v698 = vunpack.c.0.s8 %v697
      %v699 = vlaneseq
      %v700 = vshrl.u32 %v699, 7
      %v701 = vsub.s32 %v698, %v700
      %v702 = vrot.slane %v688, %v701
      %v703 = vcombine.high %v695, %v695
      %v704 = vcombine.high %v702, %v702
      %v706 = vunpack.c.l.s4 1966171168
      %v707 = vunpack.c.0.s8 %v706
      %v708 = vlaneseq
      %v709 = vshrl.u32 %v708, 7
      %v710 = vsub.s32 %v707, %v709
      %v711 = vrot.slane %v695, %v710
      %v713 = vunpack.c.l.s4 1966171168
      %v714 = vunpack.c.0.s8 %v713
      %v715 = vlaneseq
      %v716 = vshrl.u32 %v715, 7
      %v717 = vsub.s32 %v714, %v716
      %v718 = vrot.slane %v702, %v717
      %v720 = vunpack.c.l.s4 1966171168
      %v721 = vunpack.c.0.s8 %v720
      %v722 = vlaneseq
      %v723 = vshrl.u32 %v722, 7
      %v724 = vsub.s32 %v721, %v723
      %v725 = vrot.slane %v703, %v724
      %v727 = vunpack.c.l.s4 1966171168
      %v728 = vunpack.c.0.s8 %v727
      %v729 = vlaneseq
      %v730 = vshrl.u32 %v729, 7
      %v731 = vsub.s32 %v728, %v730
      %v732 = vrot.slane %v704, %v731
      %v733 = vcombine.high %v711, %v711
      %v734 = vcombine.high %v718, %v718
      %v735 = vcombine.high %v725, %v725
      %v736 = vcombine.high %v732, %v732
      %v737 = vcombine.high %v337, %v337
      %v739 = vunpack.c.l.s4 1966171168
      %v740 = vunpack.c.0.s8 %v739
      %v741 = vlaneseq
      %v742 = vshrl.u32 %v741, 7
      %v743 = vsub.s32 %v740, %v742
      %v744 = vrot.slane %v337, %v743
      %v746 = vunpack.c.l.s4 1966171168
      %v747 = vunpack.c.0.s8 %v746
      %v748 = vlaneseq
      %v749 = vshrl.u32 %v748, 7
      %v750 = vsub.s32 %v747, %v749
      %v751 = vrot.slane %v737, %v750
      %v752 = vcombine.high %v744, %v744
      %v753 = vcombine.high %v751, %v751
      %v755 = vunpack.c.l.s4 1966171168
      %v756 = vunpack.c.0.s8 %v755
      %v757 = vlaneseq
      %v758 = vshrl.u32 %v757, 7
      %v759 = vsub.s32 %v756, %v758
      %v760 = vrot.slane %v744, %v759
      %v762 = vunpack.c.l.s4 1966171168
      %v763 = vunpack.c.0.s8 %v762
      %v764 = vlaneseq
      %v765 = vshrl.u32 %v764, 7
      %v766 = vsub.s32 %v763, %v765
      %v767 = vrot.slane %v751, %v766
      %v769 = vunpack.c.l.s4 1966171168
      %v770 = vunpack.c.0.s8 %v769
      %v771 = vlaneseq
      %v772 = vshrl.u32 %v771, 7
      %v773 = vsub.s32 %v770, %v772
      %v774 = vrot.slane %v752, %v773
      %v776 = vunpack.c.l.s4 1966171168
      %v777 = vunpack.c.0.s8 %v776
      %v778 = vlaneseq
      %v779 = vshrl.u32 %v778, 7
      %v780 = vsub.s32 %v777, %v779
      %v781 = vrot.slane %v753, %v780
      %v782 = vcombine.high %v760, %v760
      %v783 = vcombine.high %v767, %v767
      %v784 = vcombine.high %v774, %v774
      %v785 = vcombine.high %v781, %v781
      %v786 = vcombine.high %v338, %v338
      %v788 = vunpack.c.l.s4 1966171168
      %v789 = vunpack.c.0.s8 %v788
      %v790 = vlaneseq
      %v791 = vshrl.u32 %v790, 7
      %v792 = vsub.s32 %v789, %v791
      %v793 = vrot.slane %v338, %v792
      %v795 = vunpack.c.l.s4 1966171168
      %v796 = vunpack.c.0.s8 %v795
      %v797 = vlaneseq
      %v798 = vshrl.u32 %v797, 7
      %v799 = vsub.s32 %v796, %v798
      %v800 = vrot.slane %v786, %v799
      %v801 = vcombine.high %v793, %v793
      %v802 = vcombine.high %v800, %v800
      %v804 = vunpack.c.l.s4 1966171168
      %v805 = vunpack.c.0.s8 %v804
      %v806 = vlaneseq
      %v807 = vshrl.u32 %v806, 7
      %v808 = vsub.s32 %v805, %v807
      %v809 = vrot.slane %v793, %v808
      %v811 = vunpack.c.l.s4 1966171168
      %v812 = vunpack.c.0.s8 %v811
      %v813 = vlaneseq
      %v814 = vshrl.u32 %v813, 7
      %v815 = vsub.s32 %v812, %v814
      %v816 = vrot.slane %v800, %v815
      %v818 = vunpack.c.l.s4 1966171168
      %v819 = vunpack.c.0.s8 %v818
      %v820 = vlaneseq
      %v821 = vshrl.u32 %v820, 7
      %v822 = vsub.s32 %v819, %v821
      %v823 = vrot.slane %v801, %v822
      %v825 = vunpack.c.l.s4 1966171168
      %v826 = vunpack.c.0.s8 %v825
      %v827 = vlaneseq
      %v828 = vshrl.u32 %v827, 7
      %v829 = vsub.s32 %v826, %v828
      %v830 = vrot.slane %v802, %v829
      %v831 = vcombine.high %v809, %v809
      %v832 = vcombine.high %v816, %v816
      %v833 = vcombine.high %v823, %v823
      %v834 = vcombine.high %v830, %v830
      %v835 = vcombine.high %v339, %v339
      %v837 = vunpack.c.l.s4 1966171168
      %v838 = vunpack.c.0.s8 %v837
      %v839 = vlaneseq
      %v840 = vshrl.u32 %v839, 7
      %v841 = vsub.s32 %v838, %v840
      %v842 = vrot.slane %v339, %v841
      %v844 = vunpack.c.l.s4 1966171168
      %v845 = vunpack.c.0.s8 %v844
      %v846 = vlaneseq
      %v847 = vshrl.u32 %v846, 7
      %v848 = vsub.s32 %v845, %v847
      %v849 = vrot.slane %v835, %v848
      %v850 = vcombine.high %v842, %v842
      %v851 = vcombine.high %v849, %v849
      %v853 = vunpack.c.l.s4 1966171168
      %v854 = vunpack.c.0.s8 %v853
      %v855 = vlaneseq
      %v856 = vshrl.u32 %v855, 7
      %v857 = vsub.s32 %v854, %v856
      %v858 = vrot.slane %v842, %v857
      %v860 = vunpack.c.l.s4 1966171168
      %v861 = vunpack.c.0.s8 %v860
      %v862 = vlaneseq
      %v863 = vshrl.u32 %v862, 7
      %v864 = vsub.s32 %v861, %v863
      %v865 = vrot.slane %v849, %v864
      %v867 = vunpack.c.l.s4 1966171168
      %v868 = vunpack.c.0.s8 %v867
      %v869 = vlaneseq
      %v870 = vshrl.u32 %v869, 7
      %v871 = vsub.s32 %v868, %v870
      %v872 = vrot.slane %v850, %v871
      %v874 = vunpack.c.l.s4 1966171168
      %v875 = vunpack.c.0.s8 %v874
      %v876 = vlaneseq
      %v877 = vshrl.u32 %v876, 7
      %v878 = vsub.s32 %v875, %v877
      %v879 = vrot.slane %v851, %v878
      %v880 = vcombine.high %v858, %v858
      %v881 = vcombine.high %v865, %v865
      %v882 = vcombine.high %v872, %v872
      %v883 = vcombine.high %v879, %v879
      %v884 = vcombine.high %v340, %v340
      %v886 = vunpack.c.l.s4 1966171168
      %v887 = vunpack.c.0.s8 %v886
      %v888 = vlaneseq
      %v889 = vshrl.u32 %v888, 7
      %v890 = vsub.s32 %v887, %v889
      %v891 = vrot.slane %v340, %v890
      %v893 = vunpack.c.l.s4 1966171168
      %v894 = vunpack.c.0.s8 %v893
      %v895 = vlaneseq
      %v896 = vshrl.u32 %v895, 7
      %v897 = vsub.s32 %v894, %v896
      %v898 = vrot.slane %v884, %v897
      %v899 = vcombine.high %v891, %v891
      %v900 = vcombine.high %v898, %v898
      %v902 = vunpack.c.l.s4 1966171168
      %v903 = vunpack.c.0.s8 %v902
      %v904 = vlaneseq
      %v905 = vshrl.u32 %v904, 7
      %v906 = vsub.s32 %v903, %v905
      %v907 = vrot.slane %v891, %v906
      %v909 = vunpack.c.l.s4 1966171168
      %v910 = vunpack.c.0.s8 %v909
      %v911 = vlaneseq
      %v912 = vshrl.u32 %v911, 7
      %v913 = vsub.s32 %v910, %v912
      %v914 = vrot.slane %v898, %v913
      %v916 = vunpack.c.l.s4 1966171168
      %v917 = vunpack.c.0.s8 %v916
      %v918 = vlaneseq
      %v919 = vshrl.u32 %v918, 7
      %v920 = vsub.s32 %v917, %v919
      %v921 = vrot.slane %v899, %v920
      %v923 = vunpack.c.l.s4 1966171168
      %v924 = vunpack.c.0.s8 %v923
      %v925 = vlaneseq
      %v926 = vshrl.u32 %v925, 7
      %v927 = vsub.s32 %v924, %v926
      %v928 = vrot.slane %v900, %v927
      %v929 = vcombine.high %v907, %v907
      %v930 = vcombine.high %v914, %v914
      %v931 = vcombine.high %v921, %v921
      %v932 = vcombine.high %v928, %v928
      %v933 = vcombine.high %v341, %v341
      %v935 = vunpack.c.l.s4 1966171168
      %v936 = vunpack.c.0.s8 %v935
      %v937 = vlaneseq
      %v938 = vshrl.u32 %v937, 7
      %v939 = vsub.s32 %v936, %v938
      %v940 = vrot.slane %v341, %v939
      %v942 = vunpack.c.l.s4 1966171168
      %v943 = vunpack.c.0.s8 %v942
      %v944 = vlaneseq
      %v945 = vshrl.u32 %v944, 7
      %v946 = vsub.s32 %v943, %v945
      %v947 = vrot.slane %v933, %v946
      %v948 = vcombine.high %v940, %v940
      %v949 = vcombine.high %v947, %v947
      %v951 = vunpack.c.l.s4 1966171168
      %v952 = vunpack.c.0.s8 %v951
      %v953 = vlaneseq
      %v954 = vshrl.u32 %v953, 7
      %v955 = vsub.s32 %v952, %v954
      %v956 = vrot.slane %v940, %v955
      %v958 = vunpack.c.l.s4 1966171168
      %v959 = vunpack.c.0.s8 %v958
      %v960 = vlaneseq
      %v961 = vshrl.u32 %v960, 7
      %v962 = vsub.s32 %v959, %v961
      %v963 = vrot.slane %v947, %v962
      %v965 = vunpack.c.l.s4 1966171168
      %v966 = vunpack.c.0.s8 %v965
      %v967 = vlaneseq
      %v968 = vshrl.u32 %v967, 7
      %v969 = vsub.s32 %v966, %v968
      %v970 = vrot.slane %v948, %v969
      %v972 = vunpack.c.l.s4 1966171168
      %v973 = vunpack.c.0.s8 %v972
      %v974 = vlaneseq
      %v975 = vshrl.u32 %v974, 7
      %v976 = vsub.s32 %v973, %v975
      %v977 = vrot.slane %v949, %v976
      %v978 = vcombine.high %v956, %v956
      %v979 = vcombine.high %v963, %v963
      %v980 = vcombine.high %v970, %v970
      %v981 = vcombine.high %v977, %v977
      %v982 = vcombine.high %v342, %v342
      %v984 = vunpack.c.l.s4 1966171168
      %v985 = vunpack.c.0.s8 %v984
      %v986 = vlaneseq
      %v987 = vshrl.u32 %v986, 7
      %v988 = vsub.s32 %v985, %v987
      %v989 = vrot.slane %v342, %v988
      %v991 = vunpack.c.l.s4 1966171168
      %v992 = vunpack.c.0.s8 %v991
      %v993 = vlaneseq
      %v994 = vshrl.u32 %v993, 7
      %v995 = vsub.s32 %v992, %v994
      %v996 = vrot.slane %v982, %v995
      %v997 = vcombine.high %v989, %v989
      %v998 = vcombine.high %v996, %v996
      %v1000 = vunpack.c.l.s4 1966171168
      %v1001 = vunpack.c.0.s8 %v1000
      %v1002 = vlaneseq
      %v1003 = vshrl.u32 %v1002, 7
      %v1004 = vsub.s32 %v1001, %v1003
      %v1005 = vrot.slane %v989, %v1004
      %v1007 = vunpack.c.l.s4 1966171168
      %v1008 = vunpack.c.0.s8 %v1007
      %v1009 = vlaneseq
      %v1010 = vshrl.u32 %v1009, 7
      %v1011 = vsub.s32 %v1008, %v1010
      %v1012 = vrot.slane %v996, %v1011
      %v1014 = vunpack.c.l.s4 1966171168
      %v1015 = vunpack.c.0.s8 %v1014
      %v1016 = vlaneseq
      %v1017 = vshrl.u32 %v1016, 7
      %v1018 = vsub.s32 %v1015, %v1017
      %v1019 = vrot.slane %v997, %v1018
      %v1021 = vunpack.c.l.s4 1966171168
      %v1022 = vunpack.c.0.s8 %v1021
      %v1023 = vlaneseq
      %v1024 = vshrl.u32 %v1023, 7
      %v1025 = vsub.s32 %v1022, %v1024
      %v1026 = vrot.slane %v998, %v1025
      %v1027 = vcombine.high %v1005, %v1005
      %v1028 = vcombine.high %v1012, %v1012
      %v1029 = vcombine.high %v1019, %v1019
      %v1030 = vcombine.high %v1026, %v1026
      %v1031 = vcombine.high %v343, %v343
      %v1033 = vunpack.c.l.s4 1966171168
      %v1034 = vunpack.c.0.s8 %v1033
      %v1035 = vlaneseq
      %v1036 = vshrl.u32 %v1035, 7
      %v1037 = vsub.s32 %v1034, %v1036
      %v1038 = vrot.slane %v343, %v1037
      %v1040 = vunpack.c.l.s4 1966171168
      %v1041 = vunpack.c.0.s8 %v1040
      %v1042 = vlaneseq
      %v1043 = vshrl.u32 %v1042, 7
      %v1044 = vsub.s32 %v1041, %v1043
      %v1045 = vrot.slane %v1031, %v1044
      %v1046 = vcombine.high %v1038, %v1038
      %v1047 = vcombine.high %v1045, %v1045
      %v1049 = vunpack.c.l.s4 1966171168
      %v1050 = vunpack.c.0.s8 %v1049
      %v1051 = vlaneseq
      %v1052 = vshrl.u32 %v1051, 7
      %v1053 = vsub.s32 %v1050, %v1052
      %v1054 = vrot.slane %v1038, %v1053
      %v1056 = vunpack.c.l.s4 1966171168
      %v1057 = vunpack.c.0.s8 %v1056
      %v1058 = vlaneseq
      %v1059 = vshrl.u32 %v1058, 7
      %v1060 = vsub.s32 %v1057, %v1059
      %v1061 = vrot.slane %v1045, %v1060
      %v1063 = vunpack.c.l.s4 1966171168
      %v1064 = vunpack.c.0.s8 %v1063
      %v1065 = vlaneseq
      %v1066 = vshrl.u32 %v1065, 7
      %v1067 = vsub.s32 %v1064, %v1066
      %v1068 = vrot.slane %v1046, %v1067
      %v1070 = vunpack.c.l.s4 1966171168
      %v1071 = vunpack.c.0.s8 %v1070
      %v1072 = vlaneseq
      %v1073 = vshrl.u32 %v1072, 7
      %v1074 = vsub.s32 %v1071, %v1073
      %v1075 = vrot.slane %v1047, %v1074
      %v1076 = vcombine.high %v1054, %v1054
      %v1077 = vcombine.high %v1061, %v1061
      %v1078 = vcombine.high %v1068, %v1068
      %v1079 = vcombine.high %v1075, %v1075
      %v1080 = vcombine.high %v344, %v344
      %v1082 = vunpack.c.l.s4 1966171168
      %v1083 = vunpack.c.0.s8 %v1082
      %v1084 = vlaneseq
      %v1085 = vshrl.u32 %v1084, 7
      %v1086 = vsub.s32 %v1083, %v1085
      %v1087 = vrot.slane %v344, %v1086
      %v1089 = vunpack.c.l.s4 1966171168
      %v1090 = vunpack.c.0.s8 %v1089
      %v1091 = vlaneseq
      %v1092 = vshrl.u32 %v1091, 7
      %v1093 = vsub.s32 %v1090, %v1092
      %v1094 = vrot.slane %v1080, %v1093
      %v1095 = vcombine.high %v1087, %v1087
      %v1096 = vcombine.high %v1094, %v1094
      %v1098 = vunpack.c.l.s4 1966171168
      %v1099 = vunpack.c.0.s8 %v1098
      %v1100 = vlaneseq
      %v1101 = vshrl.u32 %v1100, 7
      %v1102 = vsub.s32 %v1099, %v1101
      %v1103 = vrot.slane %v1087, %v1102
      %v1105 = vunpack.c.l.s4 1966171168
      %v1106 = vunpack.c.0.s8 %v1105
      %v1107 = vlaneseq
      %v1108 = vshrl.u32 %v1107, 7
      %v1109 = vsub.s32 %v1106, %v1108
      %v1110 = vrot.slane %v1094, %v1109
      %v1112 = vunpack.c.l.s4 1966171168
      %v1113 = vunpack.c.0.s8 %v1112
      %v1114 = vlaneseq
      %v1115 = vshrl.u32 %v1114, 7
      %v1116 = vsub.s32 %v1113, %v1115
      %v1117 = vrot.slane %v1095, %v1116
      %v1119 = vunpack.c.l.s4 1966171168
      %v1120 = vunpack.c.0.s8 %v1119
      %v1121 = vlaneseq
      %v1122 = vshrl.u32 %v1121, 7
      %v1123 = vsub.s32 %v1120, %v1122
      %v1124 = vrot.slane %v1096, %v1123
      %v1125 = vcombine.high %v1103, %v1103
      %v1126 = vcombine.high %v1110, %v1110
      %v1127 = vcombine.high %v1117, %v1117
      %v1128 = vcombine.high %v1124, %v1124
      %v1129 = vcombine.high %v345, %v345
      %v1131 = vunpack.c.l.s4 1966171168
      %v1132 = vunpack.c.0.s8 %v1131
      %v1133 = vlaneseq
      %v1134 = vshrl.u32 %v1133, 7
      %v1135 = vsub.s32 %v1132, %v1134
      %v1136 = vrot.slane %v345, %v1135
      %v1138 = vunpack.c.l.s4 1966171168
      %v1139 = vunpack.c.0.s8 %v1138
      %v1140 = vlaneseq
      %v1141 = vshrl.u32 %v1140, 7
      %v1142 = vsub.s32 %v1139, %v1141
      %v1143 = vrot.slane %v1129, %v1142
      %v1144 = vcombine.high %v1136, %v1136
      %v1145 = vcombine.high %v1143, %v1143
      %v1147 = vunpack.c.l.s4 1966171168
      %v1148 = vunpack.c.0.s8 %v1147
      %v1149 = vlaneseq
      %v1150 = vshrl.u32 %v1149, 7
      %v1151 = vsub.s32 %v1148, %v1150
      %v1152 = vrot.slane %v1136, %v1151
      %v1154 = vunpack.c.l.s4 1966171168
      %v1155 = vunpack.c.0.s8 %v1154
      %v1156 = vlaneseq
      %v1157 = vshrl.u32 %v1156, 7
      %v1158 = vsub.s32 %v1155, %v1157
      %v1159 = vrot.slane %v1143, %v1158
      %v1161 = vunpack.c.l.s4 1966171168
      %v1162 = vunpack.c.0.s8 %v1161
      %v1163 = vlaneseq
      %v1164 = vshrl.u32 %v1163, 7
      %v1165 = vsub.s32 %v1162, %v1164
      %v1166 = vrot.slane %v1144, %v1165
      %v1168 = vunpack.c.l.s4 1966171168
      %v1169 = vunpack.c.0.s8 %v1168
      %v1170 = vlaneseq
      %v1171 = vshrl.u32 %v1170, 7
      %v1172 = vsub.s32 %v1169, %v1171
      %v1173 = vrot.slane %v1145, %v1172
      %v1174 = vcombine.high %v1152, %v1152
      %v1175 = vcombine.high %v1159, %v1159
      %v1176 = vcombine.high %v1166, %v1166
      %v1177 = vcombine.high %v1173, %v1173
      %v1178 = vcombine.high %v346, %v346
      %v1180 = vunpack.c.l.s4 1966171168
      %v1181 = vunpack.c.0.s8 %v1180
      %v1182 = vlaneseq
      %v1183 = vshrl.u32 %v1182, 7
      %v1184 = vsub.s32 %v1181, %v1183
      %v1185 = vrot.slane %v346, %v1184
      %v1187 = vunpack.c.l.s4 1966171168
      %v1188 = vunpack.c.0.s8 %v1187
      %v1189 = vlaneseq
      %v1190 = vshrl.u32 %v1189, 7
      %v1191 = vsub.s32 %v1188, %v1190
      %v1192 = vrot.slane %v1178, %v1191
      %v1193 = vcombine.high %v1185, %v1185
      %v1194 = vcombine.high %v1192, %v1192
      %v1196 = vunpack.c.l.s4 1966171168
      %v1197 = vunpack.c.0.s8 %v1196
      %v1198 = vlaneseq
      %v1199 = vshrl.u32 %v1198, 7
      %v1200 = vsub.s32 %v1197, %v1199
      %v1201 = vrot.slane %v1185, %v1200
      %v1203 = vunpack.c.l.s4 1966171168
      %v1204 = vunpack.c.0.s8 %v1203
      %v1205 = vlaneseq
      %v1206 = vshrl.u32 %v1205, 7
      %v1207 = vsub.s32 %v1204, %v1206
      %v1208 = vrot.slane %v1192, %v1207
      %v1210 = vunpack.c.l.s4 1966171168
      %v1211 = vunpack.c.0.s8 %v1210
      %v1212 = vlaneseq
      %v1213 = vshrl.u32 %v1212, 7
      %v1214 = vsub.s32 %v1211, %v1213
      %v1215 = vrot.slane %v1193, %v1214
      %v1217 = vunpack.c.l.s4 1966171168
      %v1218 = vunpack.c.0.s8 %v1217
      %v1219 = vlaneseq
      %v1220 = vshrl.u32 %v1219, 7
      %v1221 = vsub.s32 %v1218, %v1220
      %v1222 = vrot.slane %v1194, %v1221
      %v1223 = vcombine.high %v1201, %v1201
      %v1224 = vcombine.high %v1208, %v1208
      %v1225 = vcombine.high %v1215, %v1215
      %v1226 = vcombine.high %v1222, %v1222
      %v1227 = vcombine.high %v347, %v347
      %v1229 = vunpack.c.l.s4 1966171168
      %v1230 = vunpack.c.0.s8 %v1229
      %v1231 = vlaneseq
      %v1232 = vshrl.u32 %v1231, 7
      %v1233 = vsub.s32 %v1230, %v1232
      %v1234 = vrot.slane %v347, %v1233
      %v1236 = vunpack.c.l.s4 1966171168
      %v1237 = vunpack.c.0.s8 %v1236
      %v1238 = vlaneseq
      %v1239 = vshrl.u32 %v1238, 7
      %v1240 = vsub.s32 %v1237, %v1239
      %v1241 = vrot.slane %v1227, %v1240
      %v1242 = vcombine.high %v1234, %v1234
      %v1243 = vcombine.high %v1241, %v1241
      %v1245 = vunpack.c.l.s4 1966171168
      %v1246 = vunpack.c.0.s8 %v1245
      %v1247 = vlaneseq
      %v1248 = vshrl.u32 %v1247, 7
      %v1249 = vsub.s32 %v1246, %v1248
      %v1250 = vrot.slane %v1234, %v1249
      %v1252 = vunpack.c.l.s4 1966171168
      %v1253 = vunpack.c.0.s8 %v1252
      %v1254 = vlaneseq
      %v1255 = vshrl.u32 %v1254, 7
      %v1256 = vsub.s32 %v1253, %v1255
      %v1257 = vrot.slane %v1241, %v1256
      %v1259 = vunpack.c.l.s4 1966171168
      %v1260 = vunpack.c.0.s8 %v1259
      %v1261 = vlaneseq
      %v1262 = vshrl.u32 %v1261, 7
      %v1263 = vsub.s32 %v1260, %v1262
      %v1264 = vrot.slane %v1242, %v1263
      %v1266 = vunpack.c.l.s4 1966171168
      %v1267 = vunpack.c.0.s8 %v1266
      %v1268 = vlaneseq
      %v1269 = vshrl.u32 %v1268, 7
      %v1270 = vsub.s32 %v1267, %v1269
      %v1271 = vrot.slane %v1243, %v1270
      %v1272 = vcombine.high %v1250, %v1250
      %v1273 = vcombine.high %v1257, %v1257
      %v1274 = vcombine.high %v1264, %v1264
      %v1275 = vcombine.high %v1271, %v1271
      %v1276 = vlaneseq
      %v1277 = vshrl.u32 %v1276, 7
      %v1278 = vsub.s32 0, %v1277
      %v1279 = vrot.slane %v515, %v1278
      %v1280 = vlaneseq
      %v1281 = vshrl.u32 %v1280, 7
      %v1282 = vsub.s32 0, %v1281
      %v1283 = vrot.slane %v529, %v1282
      %v1284 = vlaneseq
      %v1285 = vshrl.u32 %v1284, 7
      %v1286 = vsub.s32 0, %v1285
      %v1287 = vrot.slane %v537, %v1286
      %v1288 = vlaneseq
      %v1289 = vshrl.u32 %v1288, 7
      %v1290 = vsub.s32 0, %v1289
      %v1291 = vrot.slane %v539, %v1290
      %v1292 = vlaneseq
      %v1293 = vshrl.u32 %v1292, 7
      %v1294 = vsub.s32 0, %v1293
      %v1295 = vrot.slane %v522, %v1294
      %v1296 = vlaneseq
      %v1297 = vshrl.u32 %v1296, 7
      %v1298 = vsub.s32 0, %v1297
      %v1299 = vrot.slane %v536, %v1298
      %v1300 = vlaneseq
      %v1301 = vshrl.u32 %v1300, 7
      %v1302 = vsub.s32 0, %v1301
      %v1303 = vrot.slane %v538, %v1302
      %v1304 = vlaneseq
      %v1305 = vshrl.u32 %v1304, 7
      %v1306 = vsub.s32 0, %v1305
      %v1307 = vrot.slane %v540, %v1306
      %v1308 = vlaneseq
      %v1309 = vshrl.u32 %v1308, 7
      %v1310 = vsub.s32 0, %v1309
      %v1311 = vrot.slane %v564, %v1310
      %v1312 = vlaneseq
      %v1313 = vshrl.u32 %v1312, 7
      %v1314 = vsub.s32 0, %v1313
      %v1315 = vrot.slane %v578, %v1314
      %v1316 = vlaneseq
      %v1317 = vshrl.u32 %v1316, 7
      %v1318 = vsub.s32 0, %v1317
      %v1319 = vrot.slane %v586, %v1318
      %v1320 = vlaneseq
      %v1321 = vshrl.u32 %v1320, 7
      %v1322 = vsub.s32 0, %v1321
      %v1323 = vrot.slane %v588, %v1322
      %v1324 = vlaneseq
      %v1325 = vshrl.u32 %v1324, 7
      %v1326 = vsub.s32 0, %v1325
      %v1327 = vrot.slane %v571, %v1326
      %v1328 = vlaneseq
      %v1329 = vshrl.u32 %v1328, 7
      %v1330 = vsub.s32 0, %v1329
      %v1331 = vrot.slane %v585, %v1330
      %v1332 = vlaneseq
      %v1333 = vshrl.u32 %v1332, 7
      %v1334 = vsub.s32 0, %v1333
      %v1335 = vrot.slane %v587, %v1334
      %v1336 = vlaneseq
      %v1337 = vshrl.u32 %v1336, 7
      %v1338 = vsub.s32 0, %v1337
      %v1339 = vrot.slane %v589, %v1338
      %v1340 = vlaneseq
      %v1341 = vshrl.u32 %v1340, 7
      %v1342 = vsub.s32 0, %v1341
      %v1343 = vrot.slane %v613, %v1342
      %v1344 = vlaneseq
      %v1345 = vshrl.u32 %v1344, 7
      %v1346 = vsub.s32 0, %v1345
      %v1347 = vrot.slane %v627, %v1346
      %v1348 = vlaneseq
      %v1349 = vshrl.u32 %v1348, 7
      %v1350 = vsub.s32 0, %v1349
      %v1351 = vrot.slane %v635, %v1350
      %v1352 = vlaneseq
      %v1353 = vshrl.u32 %v1352, 7
      %v1354 = vsub.s32 0, %v1353
      %v1355 = vrot.slane %v637, %v1354
      %v1356 = vlaneseq
      %v1357 = vshrl.u32 %v1356, 7
      %v1358 = vsub.s32 0, %v1357
      %v1359 = vrot.slane %v620, %v1358
      %v1360 = vlaneseq
      %v1361 = vshrl.u32 %v1360, 7
      %v1362 = vsub.s32 0, %v1361
      %v1363 = vrot.slane %v634, %v1362
      %v1364 = vlaneseq
      %v1365 = vshrl.u32 %v1364, 7
      %v1366 = vsub.s32 0, %v1365
      %v1367 = vrot.slane %v636, %v1366
      %v1368 = vlaneseq
      %v1369 = vshrl.u32 %v1368, 7
      %v1370 = vsub.s32 0, %v1369
      %v1371 = vrot.slane %v638, %v1370
      %v1372 = vlaneseq
      %v1373 = vshrl.u32 %v1372, 7
      %v1374 = vsub.s32 0, %v1373
      %v1375 = vrot.slane %v662, %v1374
      %v1376 = vlaneseq
      %v1377 = vshrl.u32 %v1376, 7
      %v1378 = vsub.s32 0, %v1377
      %v1379 = vrot.slane %v676, %v1378
      %v1380 = vlaneseq
      %v1381 = vshrl.u32 %v1380, 7
      %v1382 = vsub.s32 0, %v1381
      %v1383 = vrot.slane %v684, %v1382
      %v1384 = vlaneseq
      %v1385 = vshrl.u32 %v1384, 7
      %v1386 = vsub.s32 0, %v1385
      %v1387 = vrot.slane %v686, %v1386
      %v1388 = vlaneseq
      %v1389 = vshrl.u32 %v1388, 7
      %v1390 = vsub.s32 0, %v1389
      %v1391 = vrot.slane %v669, %v1390
      %v1392 = vlaneseq
      %v1393 = vshrl.u32 %v1392, 7
      %v1394 = vsub.s32 0, %v1393
      %v1395 = vrot.slane %v683, %v1394
      %v1396 = vlaneseq
      %v1397 = vshrl.u32 %v1396, 7
      %v1398 = vsub.s32 0, %v1397
      %v1399 = vrot.slane %v685, %v1398
      %v1400 = vlaneseq
      %v1401 = vshrl.u32 %v1400, 7
      %v1402 = vsub.s32 0, %v1401
      %v1403 = vrot.slane %v687, %v1402
      %v1404 = vlaneseq
      %v1405 = vshrl.u32 %v1404, 7
      %v1406 = vsub.s32 0, %v1405
      %v1407 = vrot.slane %v711, %v1406
      %v1408 = vlaneseq
      %v1409 = vshrl.u32 %v1408, 7
      %v1410 = vsub.s32 0, %v1409
      %v1411 = vrot.slane %v725, %v1410
      %v1412 = vlaneseq
      %v1413 = vshrl.u32 %v1412, 7
      %v1414 = vsub.s32 0, %v1413
      %v1415 = vrot.slane %v733, %v1414
      %v1416 = vlaneseq
      %v1417 = vshrl.u32 %v1416, 7
      %v1418 = vsub.s32 0, %v1417
      %v1419 = vrot.slane %v735, %v1418
      %v1420 = vlaneseq
      %v1421 = vshrl.u32 %v1420, 7
      %v1422 = vsub.s32 0, %v1421
      %v1423 = vrot.slane %v718, %v1422
      %v1424 = vlaneseq
      %v1425 = vshrl.u32 %v1424, 7
      %v1426 = vsub.s32 0, %v1425
      %v1427 = vrot.slane %v732, %v1426
      %v1428 = vlaneseq
      %v1429 = vshrl.u32 %v1428, 7
      %v1430 = vsub.s32 0, %v1429
      %v1431 = vrot.slane %v734, %v1430
      %v1432 = vlaneseq
      %v1433 = vshrl.u32 %v1432, 7
      %v1434 = vsub.s32 0, %v1433
      %v1435 = vrot.slane %v736, %v1434
      %v1436 = vlaneseq
      %v1437 = vshrl.u32 %v1436, 7
      %v1438 = vsub.s32 0, %v1437
      %v1439 = vrot.slane %v760, %v1438
      %v1440 = vlaneseq
      %v1441 = vshrl.u32 %v1440, 7
      %v1442 = vsub.s32 0, %v1441
      %v1443 = vrot.slane %v774, %v1442
      %v1444 = vlaneseq
      %v1445 = vshrl.u32 %v1444, 7
      %v1446 = vsub.s32 0, %v1445
      %v1447 = vrot.slane %v782, %v1446
      %v1448 = vlaneseq
      %v1449 = vshrl.u32 %v1448, 7
      %v1450 = vsub.s32 0, %v1449
      %v1451 = vrot.slane %v784, %v1450
      %v1452 = vlaneseq
      %v1453 = vshrl.u32 %v1452, 7
      %v1454 = vsub.s32 0, %v1453
      %v1455 = vrot.slane %v767, %v1454
      %v1456 = vlaneseq
      %v1457 = vshrl.u32 %v1456, 7
      %v1458 = vsub.s32 0, %v1457
      %v1459 = vrot.slane %v781, %v1458
      %v1460 = vlaneseq
      %v1461 = vshrl.u32 %v1460, 7
      %v1462 = vsub.s32 0, %v1461
      %v1463 = vrot.slane %v783, %v1462
      %v1464 = vlaneseq
      %v1465 = vshrl.u32 %v1464, 7
      %v1466 = vsub.s32 0, %v1465
      %v1467 = vrot.slane %v785, %v1466
      %v1468 = vlaneseq
      %v1469 = vshrl.u32 %v1468, 7
      %v1470 = vsub.s32 0, %v1469
      %v1471 = vrot.slane %v809, %v1470
      %v1472 = vlaneseq
      %v1473 = vshrl.u32 %v1472, 7
      %v1474 = vsub.s32 0, %v1473
      %v1475 = vrot.slane %v823, %v1474
      %v1476 = vlaneseq
      %v1477 = vshrl.u32 %v1476, 7
      %v1478 = vsub.s32 0, %v1477
      %v1479 = vrot.slane %v831, %v1478
      %v1480 = vlaneseq
      %v1481 = vshrl.u32 %v1480, 7
      %v1482 = vsub.s32 0, %v1481
      %v1483 = vrot.slane %v833, %v1482
      %v1484 = vlaneseq
      %v1485 = vshrl.u32 %v1484, 7
      %v1486 = vsub.s32 0, %v1485
      %v1487 = vrot.slane %v816, %v1486
      %v1488 = vlaneseq
      %v1489 = vshrl.u32 %v1488, 7
      %v1490 = vsub.s32 0, %v1489
      %v1491 = vrot.slane %v830, %v1490
      %v1492 = vlaneseq
      %v1493 = vshrl.u32 %v1492, 7
      %v1494 = vsub.s32 0, %v1493
      %v1495 = vrot.slane %v832, %v1494
      %v1496 = vlaneseq
      %v1497 = vshrl.u32 %v1496, 7
      %v1498 = vsub.s32 0, %v1497
      %v1499 = vrot.slane %v834, %v1498
      %v1500 = vlaneseq
      %v1501 = vshrl.u32 %v1500, 7
      %v1502 = vsub.s32 0, %v1501
      %v1503 = vrot.slane %v858, %v1502
      %v1504 = vlaneseq
      %v1505 = vshrl.u32 %v1504, 7
      %v1506 = vsub.s32 0, %v1505
      %v1507 = vrot.slane %v872, %v1506
      %v1508 = vlaneseq
      %v1509 = vshrl.u32 %v1508, 7
      %v1510 = vsub.s32 0, %v1509
      %v1511 = vrot.slane %v880, %v1510
      %v1512 = vlaneseq
      %v1513 = vshrl.u32 %v1512, 7
      %v1514 = vsub.s32 0, %v1513
      %v1515 = vrot.slane %v882, %v1514
      %v1516 = vlaneseq
      %v1517 = vshrl.u32 %v1516, 7
      %v1518 = vsub.s32 0, %v1517
      %v1519 = vrot.slane %v865, %v1518
      %v1520 = vlaneseq
      %v1521 = vshrl.u32 %v1520, 7
      %v1522 = vsub.s32 0, %v1521
      %v1523 = vrot.slane %v879, %v1522
      %v1524 = vlaneseq
      %v1525 = vshrl.u32 %v1524, 7
      %v1526 = vsub.s32 0, %v1525
      %v1527 = vrot.slane %v881, %v1526
      %v1528 = vlaneseq
      %v1529 = vshrl.u32 %v1528, 7
      %v1530 = vsub.s32 0, %v1529
      %v1531 = vrot.slane %v883, %v1530
      %v1532 = vlaneseq
      %v1533 = vshrl.u32 %v1532, 7
      %v1534 = vsub.s32 0, %v1533
      %v1535 = vrot.slane %v907, %v1534
      %v1536 = vlaneseq
      %v1537 = vshrl.u32 %v1536, 7
      %v1538 = vsub.s32 0, %v1537
      %v1539 = vrot.slane %v921, %v1538
      %v1540 = vlaneseq
      %v1541 = vshrl.u32 %v1540, 7
      %v1542 = vsub.s32 0, %v1541
      %v1543 = vrot.slane %v929, %v1542
      %v1544 = vlaneseq
      %v1545 = vshrl.u32 %v1544, 7
      %v1546 = vsub.s32 0, %v1545
      %v1547 = vrot.slane %v931, %v1546
      %v1548 = vlaneseq
      %v1549 = vshrl.u32 %v1548, 7
      %v1550 = vsub.s32 0, %v1549
      %v1551 = vrot.slane %v914, %v1550
      %v1552 = vlaneseq
      %v1553 = vshrl.u32 %v1552, 7
      %v1554 = vsub.s32 0, %v1553
      %v1555 = vrot.slane %v928, %v1554
      %v1556 = vlaneseq
      %v1557 = vshrl.u32 %v1556, 7
      %v1558 = vsub.s32 0, %v1557
      %v1559 = vrot.slane %v930, %v1558
      %v1560 = vlaneseq
      %v1561 = vshrl.u32 %v1560, 7
      %v1562 = vsub.s32 0, %v1561
      %v1563 = vrot.slane %v932, %v1562
      %v1564 = vlaneseq
      %v1565 = vshrl.u32 %v1564, 7
      %v1566 = vsub.s32 0, %v1565
      %v1567 = vrot.slane %v956, %v1566
      %v1568 = vlaneseq
      %v1569 = vshrl.u32 %v1568, 7
      %v1570 = vsub.s32 0, %v1569
      %v1571 = vrot.slane %v970, %v1570
      %v1572 = vlaneseq
      %v1573 = vshrl.u32 %v1572, 7
      %v1574 = vsub.s32 0, %v1573
      %v1575 = vrot.slane %v978, %v1574
      %v1576 = vlaneseq
      %v1577 = vshrl.u32 %v1576, 7
      %v1578 = vsub.s32 0, %v1577
      %v1579 = vrot.slane %v980, %v1578
      %v1580 = vlaneseq
      %v1581 = vshrl.u32 %v1580, 7
      %v1582 = vsub.s32 0, %v1581
      %v1583 = vrot.slane %v963, %v1582
      %v1584 = vlaneseq
      %v1585 = vshrl.u32 %v1584, 7
      %v1586 = vsub.s32 0, %v1585
      %v1587 = vrot.slane %v977, %v1586
      %v1588 = vlaneseq
      %v1589 = vshrl.u32 %v1588, 7
      %v1590 = vsub.s32 0, %v1589
      %v1591 = vrot.slane %v979, %v1590
      %v1592 = vlaneseq
      %v1593 = vshrl.u32 %v1592, 7
      %v1594 = vsub.s32 0, %v1593
      %v1595 = vrot.slane %v981, %v1594
      %v1596 = vlaneseq
      %v1597 = vshrl.u32 %v1596, 7
      %v1598 = vsub.s32 0, %v1597
      %v1599 = vrot.slane %v1005, %v1598
      %v1600 = vlaneseq
      %v1601 = vshrl.u32 %v1600, 7
      %v1602 = vsub.s32 0, %v1601
      %v1603 = vrot.slane %v1019, %v1602
      %v1604 = vlaneseq
      %v1605 = vshrl.u32 %v1604, 7
      %v1606 = vsub.s32 0, %v1605
      %v1607 = vrot.slane %v1027, %v1606
      %v1608 = vlaneseq
      %v1609 = vshrl.u32 %v1608, 7
      %v1610 = vsub.s32 0, %v1609
      %v1611 = vrot.slane %v1029, %v1610
      %v1612 = vlaneseq
      %v1613 = vshrl.u32 %v1612, 7
      %v1614 = vsub.s32 0, %v1613
      %v1615 = vrot.slane %v1012, %v1614
      %v1616 = vlaneseq
      %v1617 = vshrl.u32 %v1616, 7
      %v1618 = vsub.s32 0, %v1617
      %v1619 = vrot.slane %v1026, %v1618
      %v1620 = vlaneseq
      %v1621 = vshrl.u32 %v1620, 7
      %v1622 = vsub.s32 0, %v1621
      %v1623 = vrot.slane %v1028, %v1622
      %v1624 = vlaneseq
      %v1625 = vshrl.u32 %v1624, 7
      %v1626 = vsub.s32 0, %v1625
      %v1627 = vrot.slane %v1030, %v1626
      %v1628 = vlaneseq
      %v1629 = vshrl.u32 %v1628, 7
      %v1630 = vsub.s32 0, %v1629
      %v1631 = vrot.slane %v1054, %v1630
      %v1632 = vlaneseq
      %v1633 = vshrl.u32 %v1632, 7
      %v1634 = vsub.s32 0, %v1633
      %v1635 = vrot.slane %v1068, %v1634
      %v1636 = vlaneseq
      %v1637 = vshrl.u32 %v1636, 7
      %v1638 = vsub.s32 0, %v1637
      %v1639 = vrot.slane %v1076, %v1638
      %v1640 = vlaneseq
      %v1641 = vshrl.u32 %v1640, 7
      %v1642 = vsub.s32 0, %v1641
      %v1643 = vrot.slane %v1078, %v1642
      %v1644 = vlaneseq
      %v1645 = vshrl.u32 %v1644, 7
      %v1646 = vsub.s32 0, %v1645
      %v1647 = vrot.slane %v1061, %v1646
      %v1648 = vlaneseq
      %v1649 = vshrl.u32 %v1648, 7
      %v1650 = vsub.s32 0, %v1649
      %v1651 = vrot.slane %v1075, %v1650
      %v1652 = vlaneseq
      %v1653 = vshrl.u32 %v1652, 7
      %v1654 = vsub.s32 0, %v1653
      %v1655 = vrot.slane %v1077, %v1654
      %v1656 = vlaneseq
      %v1657 = vshrl.u32 %v1656, 7
      %v1658 = vsub.s32 0, %v1657
      %v1659 = vrot.slane %v1079, %v1658
      %v1660 = vlaneseq
      %v1661 = vshrl.u32 %v1660, 7
      %v1662 = vsub.s32 0, %v1661
      %v1663 = vrot.slane %v1103, %v1662
      %v1664 = vlaneseq
      %v1665 = vshrl.u32 %v1664, 7
      %v1666 = vsub.s32 0, %v1665
      %v1667 = vrot.slane %v1117, %v1666
      %v1668 = vlaneseq
      %v1669 = vshrl.u32 %v1668, 7
      %v1670 = vsub.s32 0, %v1669
      %v1671 = vrot.slane %v1125, %v1670
      %v1672 = vlaneseq
      %v1673 = vshrl.u32 %v1672, 7
      %v1674 = vsub.s32 0, %v1673
      %v1675 = vrot.slane %v1127, %v1674
      %v1676 = vlaneseq
      %v1677 = vshrl.u32 %v1676, 7
      %v1678 = vsub.s32 0, %v1677
      %v1679 = vrot.slane %v1110, %v1678
      %v1680 = vlaneseq
      %v1681 = vshrl.u32 %v1680, 7
      %v1682 = vsub.s32 0, %v1681
      %v1683 = vrot.slane %v1124, %v1682
      %v1684 = vlaneseq
      %v1685 = vshrl.u32 %v1684, 7
      %v1686 = vsub.s32 0, %v1685
      %v1687 = vrot.slane %v1126, %v1686
      %v1688 = vlaneseq
      %v1689 = vshrl.u32 %v1688, 7
      %v1690 = vsub.s32 0, %v1689
      %v1691 = vrot.slane %v1128, %v1690
      %v1692 = vlaneseq
      %v1693 = vshrl.u32 %v1692, 7
      %v1694 = vsub.s32 0, %v1693
      %v1695 = vrot.slane %v1152, %v1694
      %v1696 = vlaneseq
      %v1697 = vshrl.u32 %v1696, 7
      %v1698 = vsub.s32 0, %v1697
      %v1699 = vrot.slane %v1166, %v1698
      %v1700 = vlaneseq
      %v1701 = vshrl.u32 %v1700, 7
      %v1702 = vsub.s32 0, %v1701
      %v1703 = vrot.slane %v1174, %v1702
      %v1704 = vlaneseq
      %v1705 = vshrl.u32 %v1704, 7
      %v1706 = vsub.s32 0, %v1705
      %v1707 = vrot.slane %v1176, %v1706
      %v1708 = vlaneseq
      %v1709 = vshrl.u32 %v1708, 7
      %v1710 = vsub.s32 0, %v1709
      %v1711 = vrot.slane %v1159, %v1710
      %v1712 = vlaneseq
      %v1713 = vshrl.u32 %v1712, 7
      %v1714 = vsub.s32 0, %v1713
      %v1715 = vrot.slane %v1173, %v1714
      %v1716 = vlaneseq
      %v1717 = vshrl.u32 %v1716, 7
      %v1718 = vsub.s32 0, %v1717
      %v1719 = vrot.slane %v1175, %v1718
      %v1720 = vlaneseq
      %v1721 = vshrl.u32 %v1720, 7
      %v1722 = vsub.s32 0, %v1721
      %v1723 = vrot.slane %v1177, %v1722
      %v1724 = vlaneseq
      %v1725 = vshrl.u32 %v1724, 7
      %v1726 = vsub.s32 0, %v1725
      %v1727 = vrot.slane %v1201, %v1726
      %v1728 = vlaneseq
      %v1729 = vshrl.u32 %v1728, 7
      %v1730 = vsub.s32 0, %v1729
      %v1731 = vrot.slane %v1215, %v1730
      %v1732 = vlaneseq
      %v1733 = vshrl.u32 %v1732, 7
      %v1734 = vsub.s32 0, %v1733
      %v1735 = vrot.slane %v1223, %v1734
      %v1736 = vlaneseq
      %v1737 = vshrl.u32 %v1736, 7
      %v1738 = vsub.s32 0, %v1737
      %v1739 = vrot.slane %v1225, %v1738
      %v1740 = vlaneseq
      %v1741 = vshrl.u32 %v1740, 7
      %v1742 = vsub.s32 0, %v1741
      %v1743 = vrot.slane %v1208, %v1742
      %v1744 = vlaneseq
      %v1745 = vshrl.u32 %v1744, 7
      %v1746 = vsub.s32 0, %v1745
      %v1747 = vrot.slane %v1222, %v1746
      %v1748 = vlaneseq
      %v1749 = vshrl.u32 %v1748, 7
      %v1750 = vsub.s32 0, %v1749
      %v1751 = vrot.slane %v1224, %v1750
      %v1752 = vlaneseq
      %v1753 = vshrl.u32 %v1752, 7
      %v1754 = vsub.s32 0, %v1753
      %v1755 = vrot.slane %v1226, %v1754
      %v1756 = vlaneseq
      %v1757 = vshrl.u32 %v1756, 7
      %v1758 = vsub.s32 0, %v1757
      %v1759 = vrot.slane %v1250, %v1758
      %v1760 = vlaneseq
      %v1761 = vshrl.u32 %v1760, 7
      %v1762 = vsub.s32 0, %v1761
      %v1763 = vrot.slane %v1264, %v1762
      %v1764 = vlaneseq
      %v1765 = vshrl.u32 %v1764, 7
      %v1766 = vsub.s32 0, %v1765
      %v1767 = vrot.slane %v1272, %v1766
      %v1768 = vlaneseq
      %v1769 = vshrl.u32 %v1768, 7
      %v1770 = vsub.s32 0, %v1769
      %v1771 = vrot.slane %v1274, %v1770
      %v1772 = vlaneseq
      %v1773 = vshrl.u32 %v1772, 7
      %v1774 = vsub.s32 0, %v1773
      %v1775 = vrot.slane %v1257, %v1774
      %v1776 = vlaneseq
      %v1777 = vshrl.u32 %v1776, 7
      %v1778 = vsub.s32 0, %v1777
      %v1779 = vrot.slane %v1271, %v1778
      %v1780 = vlaneseq
      %v1781 = vshrl.u32 %v1780, 7
      %v1782 = vsub.s32 0, %v1781
      %v1783 = vrot.slane %v1273, %v1782
      %v1784 = vlaneseq
      %v1785 = vshrl.u32 %v1784, 7
      %v1786 = vsub.s32 0, %v1785
      %v1787 = vrot.slane %v1275, %v1786
      %v1916 = vmul.f32 %v348, %v1279
      %v1917 = vmul.f32 %v349, %v1283
      %v1918 = vmul.f32 %v350, %v1287
      %v1919 = vmul.f32 %v351, %v1291
      %v1920 = vmul.f32 %v352, %v1295
      %v1921 = vmul.f32 %v353, %v1299
      %v1922 = vmul.f32 %v354, %v1303
      %v1923 = vmul.f32 %v355, %v1307
      %v1924 = vmul.f32 %v356, %v1311
      %v1925 = vmul.f32 %v357, %v1315
      %v1926 = vmul.f32 %v358, %v1319
      %v1927 = vmul.f32 %v359, %v1323
      %v1928 = vmul.f32 %v360, %v1327
      %v1929 = vmul.f32 %v361, %v1331
      %v1930 = vmul.f32 %v362, %v1335
      %v1931 = vmul.f32 %v363, %v1339
      %v1932 = vmul.f32 %v364, %v1343
      %v1933 = vmul.f32 %v365, %v1347
      %v1934 = vmul.f32 %v366, %v1351
      %v1935 = vmul.f32 %v367, %v1355
      %v1936 = vmul.f32 %v368, %v1359
      %v1937 = vmul.f32 %v369, %v1363
      %v1938 = vmul.f32 %v370, %v1367
      %v1939 = vmul.f32 %v371, %v1371
      %v1940 = vmul.f32 %v372, %v1375
      %v1941 = vmul.f32 %v373, %v1379
      %v1942 = vmul.f32 %v374, %v1383
      %v1943 = vmul.f32 %v375, %v1387
      %v1944 = vmul.f32 %v376, %v1391
      %v1945 = vmul.f32 %v377, %v1395
      %v1946 = vmul.f32 %v378, %v1399
      %v1947 = vmul.f32 %v379, %v1403
      %v1948 = vmul.f32 %v380, %v1407
      %v1949 = vmul.f32 %v381, %v1411
      %v1950 = vmul.f32 %v382, %v1415
      %v1951 = vmul.f32 %v383, %v1419
      %v1952 = vmul.f32 %v384, %v1423
      %v1953 = vmul.f32 %v385, %v1427
      %v1954 = vmul.f32 %v386, %v1431
      %v1955 = vmul.f32 %v387, %v1435
      %v1956 = vmul.f32 %v388, %v1439
      %v1957 = vmul.f32 %v389, %v1443
      %v1958 = vmul.f32 %v390, %v1447
      %v1959 = vmul.f32 %v391, %v1451
      %v1960 = vmul.f32 %v392, %v1455
      %v1961 = vmul.f32 %v393, %v1459
      %v1962 = vmul.f32 %v394, %v1463
      %v1963 = vmul.f32 %v395, %v1467
      %v1964 = vmul.f32 %v396, %v1471
      %v1965 = vmul.f32 %v397, %v1475
      %v1966 = vmul.f32 %v398, %v1479
      %v1967 = vmul.f32 %v399, %v1483
      %v1968 = vmul.f32 %v400, %v1487
      %v1969 = vmul.f32 %v401, %v1491
      %v1970 = vmul.f32 %v402, %v1495
      %v1971 = vmul.f32 %v403, %v1499
      %v1972 = vmul.f32 %v404, %v1503
      %v1973 = vmul.f32 %v405, %v1507
      %v1974 = vmul.f32 %v406, %v1511
      %v1975 = vmul.f32 %v407, %v1515
      %v1976 = vmul.f32 %v408, %v1519
      %v1977 = vmul.f32 %v409, %v1523
      %v1978 = vmul.f32 %v410, %v1527
      %v1979 = vmul.f32 %v411, %v1531
      %v1980 = vmul.f32 %v412, %v1535
      %v1981 = vmul.f32 %v413, %v1539
      %v1982 = vmul.f32 %v414, %v1543
      %v1983 = vmul.f32 %v415, %v1547
      %v1984 = vmul.f32 %v416, %v1551
      %v1985 = vmul.f32 %v417, %v1555
      %v1986 = vmul.f32 %v418, %v1559
      %v1987 = vmul.f32 %v419, %v1563
      %v1988 = vmul.f32 %v420, %v1567
      %v1989 = vmul.f32 %v421, %v1571
      %v1990 = vmul.f32 %v422, %v1575
      %v1991 = vmul.f32 %v423, %v1579
      %v1992 = vmul.f32 %v424, %v1583
      %v1993 = vmul.f32 %v425, %v1587
      %v1994 = vmul.f32 %v426, %v1591
      %v1995 = vmul.f32 %v427, %v1595
      %v1996 = vmul.f32 %v428, %v1599
      %v1997 = vmul.f32 %v429, %v1603
      %v1998 = vmul.f32 %v430, %v1607
      %v1999 = vmul.f32 %v431, %v1611
      %v2000 = vmul.f32 %v432, %v1615
      %v2001 = vmul.f32 %v433, %v1619
      %v2002 = vmul.f32 %v434, %v1623
      %v2003 = vmul.f32 %v435, %v1627
      %v2004 = vmul.f32 %v436, %v1631
      %v2005 = vmul.f32 %v437, %v1635
      %v2006 = vmul.f32 %v438, %v1639
      %v2007 = vmul.f32 %v439, %v1643
      %v2008 = vmul.f32 %v440, %v1647
      %v2009 = vmul.f32 %v441, %v1651
      %v2010 = vmul.f32 %v442, %v1655
      %v2011 = vmul.f32 %v443, %v1659
      %v2012 = vmul.f32 %v444, %v1663
      %v2013 = vmul.f32 %v445, %v1667
      %v2014 = vmul.f32 %v446, %v1671
      %v2015 = vmul.f32 %v447, %v1675
      %v2016 = vmul.f32 %v448, %v1679
      %v2017 = vmul.f32 %v449, %v1683
      %v2018 = vmul.f32 %v450, %v1687
      %v2019 = vmul.f32 %v451, %v1691
      %v2020 = vmul.f32 %v452, %v1695
      %v2021 = vmul.f32 %v453, %v1699
      %v2022 = vmul.f32 %v454, %v1703
      %v2023 = vmul.f32 %v455, %v1707
      %v2024 = vmul.f32 %v456, %v1711
      %v2025 = vmul.f32 %v457, %v1715
      %v2026 = vmul.f32 %v458, %v1719
      %v2027 = vmul.f32 %v459, %v1723
      %v2028 = vmul.f32 %v460, %v1727
      %v2029 = vmul.f32 %v461, %v1731
      %v2030 = vmul.f32 %v462, %v1735
      %v2031 = vmul.f32 %v463, %v1739
      %v2032 = vmul.f32 %v464, %v1743
      %v2033 = vmul.f32 %v465, %v1747
      %v2034 = vmul.f32 %v466, %v1751
      %v2035 = vmul.f32 %v467, %v1755
      %v2036 = vmul.f32 %v468, %v1759
      %v2037 = vmul.f32 %v469, %v1763
      %v2038 = vmul.f32 %v470, %v1767
      %v2039 = vmul.f32 %v471, %v1771
      %v2040 = vmul.f32 %v472, %v1775
      %v2041 = vmul.f32 %v473, %v1779
      %v2042 = vmul.f32 %v474, %v1783
      %v2043 = vmul.f32 %v475, %v1787
      %v2044 = vld [vmem:[%s2] sm:$0xf]
      %v2045 = vld [vmem:[%s5] sm:$0x1]
      %v2047 = vlaneseq
      %v2048 = vshrl.u32 %v2047, 7
      %v2049 = vsub.s32 0, %v2048
      %v2050 = vrot.slane %v2045, %v2049
      %vm2052 = vcmask 31744
      %v2053 = vsel %vm2052, %v332, 0
      %v2055 = vsel %vm2052, %v333, 0
      %v2057 = vsel %vm2052, %v334, 0
      %v2059 = vsel %vm2052, %v335, 0
      %v2061 = vsel %vm2052, %v336, 0
      %v2063 = vsel %vm2052, %v337, 0
      %v2065 = vsel %vm2052, %v338, 0
      %v2067 = vsel %vm2052, %v339, 0
      %v2069 = vsel %vm2052, %v340, 0
      %v2071 = vsel %vm2052, %v341, 0
      %v2073 = vsel %vm2052, %v342, 0
      %v2075 = vsel %vm2052, %v343, 0
      %v2077 = vsel %vm2052, %v344, 0
      %v2079 = vsel %vm2052, %v345, 0
      %v2081 = vsel %vm2052, %v346, 0
      %v2083 = vsel %vm2052, %v347, 0
      %vm2085 = vcmask 1043456
      %v2087 = vsel %vm2085, %v2044, 0
      %2089 = vmatprep.subr.mxu0 0.0
      %2090 = vmatpush1.msra.mxu0 %v2087
      %2091 = vmatprep.subr.mxu0 0.0
      %2092 = vmatpush1.msra.mxu0 0.0
      %2093 = vmatprep.subr.mxu0 0.0
      %2094 = vmatpush1.msra.mxu0 0.0
      %2095 = vmatprep.subr.mxu0 0.0
      %2096 = vmatpush1.msra.mxu0 0.0
      %2097 = vmatprep.subr.mxu0 0.0
      %2098 = vmatpush1.msra.mxu0 0.0
      %2099 = vmatprep.subr.mxu0 0.0
      %2100 = vmatpush1.msra.mxu0 0.0
      %2101 = vmatprep.subr.mxu0 0.0
      %2102 = vmatpush1.msra.mxu0 0.0
      %2103 = vmatprep.subr.mxu0 0.0
      %2104 = vmatpush1.msra.mxu0 0.0
      %2105 = vmatprep.subr.mxu0 0.0
      %2106 = vmatpush1.msra.mxu0 0.0
      %2107 = vmatprep.subr.mxu0 0.0
      %2108 = vmatpush1.msra.mxu0 0.0
      %2109 = vmatprep.subr.mxu0 0.0
      %2110 = vmatpush1.msra.mxu0 0.0
      %2111 = vmatprep.subr.mxu0 0.0
      %2112 = vmatpush1.msra.mxu0 0.0
      %2113 = vmatprep.subr.mxu0 0.0
      %2114 = vmatpush1.msra.mxu0 0.0
      %2115 = vmatprep.subr.mxu0 0.0
      %2116 = vmatpush1.msra.mxu0 0.0
      %2117 = vmatprep.subr.mxu0 0.0
      %2118 = vmatpush1.msra.mxu0 0.0
      %2119 = vmatprep.subr.mxu0 0.0
      %2120 = vmatpush1.msra.mxu0 0.0
      %2121 = vmatprep.subr.mxu0 0.0
      %2122 = vmatpush1.msra.mxu0 0.0
      %2123 = vmatprep.subr.mxu0 0.0
      %2124 = vmatpush1.msra.mxu0 0.0
      %2125 = vmatprep.subr.mxu0 0.0
      %2126 = vmatpush1.msra.mxu0 0.0
      %2127 = vmatprep.subr.mxu0 0.0
      %2128 = vmatpush1.msra.mxu0 0.0
      %2129 = vmatprep.subr.mxu0 0.0
      %2130 = vmatpush1.msra.mxu0 0.0
      %2131 = vmatprep.subr.mxu0 0.0
      %2132 = vmatpush1.msra.mxu0 0.0
      %2133 = vmatprep.subr.mxu0 0.0
      %2134 = vmatpush1.msra.mxu0 0.0
      %2135 = vmatprep.subr.mxu0 0.0
      %2136 = vmatpush1.msra.mxu0 0.0
      %2137 = vmatprep.subr.mxu0 0.0
      %2138 = vmatpush1.msra.mxu0 0.0
      %2139 = vmatprep.subr.mxu0 0.0
      %2140 = vmatpush1.msra.mxu0 0.0
      %2141 = vmatprep.subr.mxu0 0.0
      %2142 = vmatpush1.msra.mxu0 0.0
      %2143 = vmatprep.subr.mxu0 0.0
      %2144 = vmatpush1.msra.mxu0 0.0
      %2145 = vmatprep.subr.mxu0 0.0
      %2146 = vmatpush1.msra.mxu0 0.0
      %2147 = vmatprep.subr.mxu0 0.0
      %2148 = vmatpush1.msra.mxu0 0.0
      %2149 = vmatprep.subr.mxu0 0.0
      %2150 = vmatpush1.msra.mxu0 0.0
      %2151 = vmatprep.subr.mxu0 0.0
      %2152 = vmatpush1.msra.mxu0 0.0
      %2153 = vmatprep.mubr.f32.mxu0 0.0
      %2154 = vmatmul.mubr.f32.gmra.mrb[0].mxu0 %v2053
      %v2155 = vpop.f32.mrb[0].mxu0
      %v2156 = vadd.f32 %v2050, %v2155
      %v2157 = vpop.f32.mrb[0].mxu0
      %2158 = vmatprep.mubr.f32.mxu0 0.0
      %2159 = vmatmul.mubr.f32.gmra.mrb[0].mxu0 %v2055
      %v2160 = vpop.f32.mrb[0].mxu0
      %v2161 = vadd.f32 %v2050, %v2160
      %v2162 = vpop.f32.mrb[0].mxu0
      %2163 = vmatprep.mubr.f32.mxu0 0.0
      %2164 = vmatmul.mubr.f32.gmra.mrb[0].mxu0 %v2057
      %v2165 = vpop.f32.mrb[0].mxu0
      %v2166 = vadd.f32 %v2050, %v2165
      %v2167 = vpop.f32.mrb[0].mxu0
      %2168 = vmatprep.mubr.f32.mxu0 0.0
      %2169 = vmatmul.mubr.f32.gmra.mrb[0].mxu0 %v2059
      %v2170 = vpop.f32.mrb[0].mxu0
      %v2171 = vadd.f32 %v2050, %v2170
      %v2172 = vpop.f32.mrb[0].mxu0
      %2173 = vmatprep.mubr.f32.mxu0 0.0
      %2174 = vmatmul.mubr.f32.gmra.mrb[0].mxu0 %v2061
      %v2175 = vpop.f32.mrb[0].mxu0
      %v2176 = vadd.f32 %v2050, %v2175
      %v2177 = vpop.f32.mrb[0].mxu0
      %2178 = vmatprep.mubr.f32.mxu0 0.0
      %2179 = vmatmul.mubr.f32.gmra.mrb[0].mxu0 %v2063
      %v2180 = vpop.f32.mrb[0].mxu0
      %v2181 = vadd.f32 %v2050, %v2180
      %v2182 = vpop.f32.mrb[0].mxu0
      %2183 = vmatprep.mubr.f32.mxu0 0.0
      %2184 = vmatmul.mubr.f32.gmra.mrb[0].mxu0 %v2065
      %v2185 = vpop.f32.mrb[0].mxu0
      %v2186 = vadd.f32 %v2050, %v2185
      %v2187 = vpop.f32.mrb[0].mxu0
      %2188 = vmatprep.mubr.f32.mxu0 0.0
      %2189 = vmatmul.mubr.f32.gmra.mrb[0].mxu0 %v2067
      %v2190 = vpop.f32.mrb[0].mxu0
      %v2191 = vadd.f32 %v2050, %v2190
      %v2192 = vpop.f32.mrb[0].mxu0
      %2193 = vmatprep.mubr.f32.mxu0 0.0
      %2194 = vmatmul.mubr.f32.gmra.mrb[0].mxu0 %v2069
      %v2195 = vpop.f32.mrb[0].mxu0
      %v2196 = vadd.f32 %v2050, %v2195
      %v2197 = vpop.f32.mrb[0].mxu0
      %2198 = vmatprep.mubr.f32.mxu0 0.0
      %2199 = vmatmul.mubr.f32.gmra.mrb[0].mxu0 %v2071
      %v2200 = vpop.f32.mrb[0].mxu0
      %v2201 = vadd.f32 %v2050, %v2200
      %v2202 = vpop.f32.mrb[0].mxu0
      %2203 = vmatprep.mubr.f32.mxu0 0.0
      %2204 = vmatmul.mubr.f32.gmra.mrb[0].mxu0 %v2073
      %v2205 = vpop.f32.mrb[0].mxu0
      %v2206 = vadd.f32 %v2050, %v2205
      %v2207 = vpop.f32.mrb[0].mxu0
      %2208 = vmatprep.mubr.f32.mxu0 0.0
      %2209 = vmatmul.mubr.f32.gmra.mrb[0].mxu0 %v2075
      %v2210 = vpop.f32.mrb[0].mxu0
      %v2211 = vadd.f32 %v2050, %v2210
      %v2212 = vpop.f32.mrb[0].mxu0
      %2213 = vmatprep.mubr.f32.mxu0 0.0
      %2214 = vmatmul.mubr.f32.gmra.mrb[0].mxu0 %v2077
      %v2215 = vpop.f32.mrb[0].mxu0
      %v2216 = vadd.f32 %v2050, %v2215
      %v2217 = vpop.f32.mrb[0].mxu0
      %2218 = vmatprep.mubr.f32.mxu0 0.0
      %2219 = vmatmul.mubr.f32.gmra.mrb[0].mxu0 %v2079
      %v2220 = vpop.f32.mrb[0].mxu0
      %v2221 = vadd.f32 %v2050, %v2220
      %v2222 = vpop.f32.mrb[0].mxu0
      %2223 = vmatprep.mubr.f32.mxu0 0.0
      %2224 = vmatmul.mubr.f32.gmra.mrb[0].mxu0 %v2081
      %v2225 = vpop.f32.mrb[0].mxu0
      %v2226 = vadd.f32 %v2050, %v2225
      %v2227 = vpop.f32.mrb[0].mxu0
      %2228 = vmatprep.mubr.f32.mxu0 0.0
      %2229 = vmatmul.mubr.f32.gmra.mrb[0].mxu0 %v2083
      %v2230 = vpop.f32.mrb[0].mxu0
      %v2231 = vadd.f32 %v2050, %v2230
      %v2232 = vpop.f32.mrb[0].mxu0
      %2233 = vdwg.mxu0
      %v2234 = vld [vmem:[%s3] sm:$0xf]
      %v2235 = vld [vmem:[%s4] sm:$0xf]
      %v2237 = vsel %vm2052, %v1916, 0
      %v2240 = vsel %vm2052, %v1917, 0
      %v2243 = vsel %vm2052, %v1918, 0
      %v2246 = vsel %vm2052, %v1919, 0
      %v2249 = vsel %vm2052, %v1920, 0
      %v2252 = vsel %vm2052, %v1921, 0
      %v2255 = vsel %vm2052, %v1922, 0
      %v2258 = vsel %vm2052, %v1923, 0
      %v2261 = vsel %vm2052, %v1924, 0
      %v2264 = vsel %vm2052, %v1925, 0
      %v2267 = vsel %vm2052, %v1926, 0
      %v2270 = vsel %vm2052, %v1927, 0
      %v2273 = vsel %vm2052, %v1928, 0
      %v2276 = vsel %vm2052, %v1929, 0
      %v2279 = vsel %vm2052, %v1930, 0
      %v2282 = vsel %vm2052, %v1931, 0
      %v2285 = vsel %vm2052, %v1932, 0
      %v2288 = vsel %vm2052, %v1933, 0
      %v2291 = vsel %vm2052, %v1934, 0
      %v2294 = vsel %vm2052, %v1935, 0
      %v2297 = vsel %vm2052, %v1936, 0
      %v2300 = vsel %vm2052, %v1937, 0
      %v2303 = vsel %vm2052, %v1938, 0
      %v2306 = vsel %vm2052, %v1939, 0
      %v2309 = vsel %vm2052, %v1940, 0
      %v2312 = vsel %vm2052, %v1941, 0
      %v2315 = vsel %vm2052, %v1942, 0
      %v2318 = vsel %vm2052, %v1943, 0
      %v2321 = vsel %vm2052, %v1944, 0
      %v2324 = vsel %vm2052, %v1945, 0
      %v2327 = vsel %vm2052, %v1946, 0
      %v2330 = vsel %vm2052, %v1947, 0
      %v2333 = vsel %vm2052, %v1948, 0
      %v2336 = vsel %vm2052, %v1949, 0
      %v2339 = vsel %vm2052, %v1950, 0
      %v2342 = vsel %vm2052, %v1951, 0
      %v2345 = vsel %vm2052, %v1952, 0
      %v2348 = vsel %vm2052, %v1953, 0
      %v2351 = vsel %vm2052, %v1954, 0
      %v2354 = vsel %vm2052, %v1955, 0
      %v2357 = vsel %vm2052, %v1956, 0
      %v2360 = vsel %vm2052, %v1957, 0
      %v2363 = vsel %vm2052, %v1958, 0
      %v2366 = vsel %vm2052, %v1959, 0
      %v2369 = vsel %vm2052, %v1960, 0
      %v2372 = vsel %vm2052, %v1961, 0
      %v2375 = vsel %vm2052, %v1962, 0
      %v2378 = vsel %vm2052, %v1963, 0
      %v2381 = vsel %vm2052, %v1964, 0
      %v2384 = vsel %vm2052, %v1965, 0
      %v2387 = vsel %vm2052, %v1966, 0
      %v2390 = vsel %vm2052, %v1967, 0
      %v2393 = vsel %vm2052, %v1968, 0
      %v2396 = vsel %vm2052, %v1969, 0
      %v2399 = vsel %vm2052, %v1970, 0
      %v2402 = vsel %vm2052, %v1971, 0
      %v2405 = vsel %vm2052, %v1972, 0
      %v2408 = vsel %vm2052, %v1973, 0
      %v2411 = vsel %vm2052, %v1974, 0
      %v2414 = vsel %vm2052, %v1975, 0
      %v2417 = vsel %vm2052, %v1976, 0
      %v2420 = vsel %vm2052, %v1977, 0
      %v2423 = vsel %vm2052, %v1978, 0
      %v2426 = vsel %vm2052, %v1979, 0
      %v2429 = vsel %vm2052, %v1980, 0
      %v2432 = vsel %vm2052, %v1981, 0
      %v2435 = vsel %vm2052, %v1982, 0
      %v2438 = vsel %vm2052, %v1983, 0
      %v2441 = vsel %vm2052, %v1984, 0
      %v2444 = vsel %vm2052, %v1985, 0
      %v2447 = vsel %vm2052, %v1986, 0
      %v2450 = vsel %vm2052, %v1987, 0
      %v2453 = vsel %vm2052, %v1988, 0
      %v2456 = vsel %vm2052, %v1989, 0
      %v2459 = vsel %vm2052, %v1990, 0
      %v2462 = vsel %vm2052, %v1991, 0
      %v2465 = vsel %vm2052, %v1992, 0
      %v2468 = vsel %vm2052, %v1993, 0
      %v2471 = vsel %vm2052, %v1994, 0
      %v2474 = vsel %vm2052, %v1995, 0
      %v2477 = vsel %vm2052, %v1996, 0
      %v2480 = vsel %vm2052, %v1997, 0
      %v2483 = vsel %vm2052, %v1998, 0
      %v2486 = vsel %vm2052, %v1999, 0
      %v2489 = vsel %vm2052, %v2000, 0
      %v2492 = vsel %vm2052, %v2001, 0
      %v2495 = vsel %vm2052, %v2002, 0
      %v2498 = vsel %vm2052, %v2003, 0
      %v2501 = vsel %vm2052, %v2004, 0
      %v2504 = vsel %vm2052, %v2005, 0
      %v2507 = vsel %vm2052, %v2006, 0
      %v2510 = vsel %vm2052, %v2007, 0
      %v2513 = vsel %vm2052, %v2008, 0
      %v2516 = vsel %vm2052, %v2009, 0
      %v2519 = vsel %vm2052, %v2010, 0
      %v2522 = vsel %vm2052, %v2011, 0
      %v2525 = vsel %vm2052, %v2012, 0
      %v2528 = vsel %vm2052, %v2013, 0
      %v2531 = vsel %vm2052, %v2014, 0
      %v2534 = vsel %vm2052, %v2015, 0
      %v2537 = vsel %vm2052, %v2016, 0
      %v2540 = vsel %vm2052, %v2017, 0
      %v2543 = vsel %vm2052, %v2018, 0
      %v2546 = vsel %vm2052, %v2019, 0
      %v2549 = vsel %vm2052, %v2020, 0
      %v2552 = vsel %vm2052, %v2021, 0
      %v2555 = vsel %vm2052, %v2022, 0
      %v2558 = vsel %vm2052, %v2023, 0
      %v2561 = vsel %vm2052, %v2024, 0
      %v2564 = vsel %vm2052, %v2025, 0
      %v2567 = vsel %vm2052, %v2026, 0
      %v2570 = vsel %vm2052, %v2027, 0
      %v2573 = vsel %vm2052, %v2028, 0
      %v2576 = vsel %vm2052, %v2029, 0
      %v2579 = vsel %vm2052, %v2030, 0
      %v2582 = vsel %vm2052, %v2031, 0
      %v2585 = vsel %vm2052, %v2032, 0
      %v2588 = vsel %vm2052, %v2033, 0
      %v2591 = vsel %vm2052, %v2034, 0
      %v2594 = vsel %vm2052, %v2035, 0
      %v2597 = vsel %vm2052, %v2036, 0
      %v2600 = vsel %vm2052, %v2037, 0
      %v2603 = vsel %vm2052, %v2038, 0
      %v2606 = vsel %vm2052, %v2039, 0
      %v2609 = vsel %vm2052, %v2040, 0
      %v2612 = vsel %vm2052, %v2041, 0
      %v2615 = vsel %vm2052, %v2042, 0
      %v2618 = vsel %vm2052, %v2043, 0
      %v2621 = vsel %vm2085, %v2235, 0
      %2623 = vmatprep.subr.mxu0 0.0
      %2624 = vmatpush1.msra.mxu0 %v2621
      %2625 = vmatprep.subr.mxu0 0.0
      %2626 = vmatpush1.msra.mxu0 0.0
      %2627 = vmatprep.subr.mxu0 0.0
      %2628 = vmatpush1.msra.mxu0 0.0
      %2629 = vmatprep.subr.mxu0 0.0
      %2630 = vmatpush1.msra.mxu0 0.0
      %2631 = vmatprep.subr.mxu0 0.0
      %2632 = vmatpush1.msra.mxu0 0.0
      %2633 = vmatprep.subr.mxu0 0.0
      %2634 = vmatpush1.msra.mxu0 0.0
      %2635 = vmatprep.subr.mxu0 0.0
      %2636 = vmatpush1.msra.mxu0 0.0
      %2637 = vmatprep.subr.mxu0 0.0
      %2638 = vmatpush1.msra.mxu0 0.0
      %2639 = vmatprep.subr.mxu0 0.0
      %2640 = vmatpush1.msra.mxu0 0.0
      %2641 = vmatprep.subr.mxu0 0.0
      %2642 = vmatpush1.msra.mxu0 0.0
      %2643 = vmatprep.subr.mxu0 0.0
      %2644 = vmatpush1.msra.mxu0 0.0
      %2645 = vmatprep.subr.mxu0 0.0
      %2646 = vmatpush1.msra.mxu0 0.0
      %2647 = vmatprep.subr.mxu0 0.0
      %2648 = vmatpush1.msra.mxu0 0.0
      %2649 = vmatprep.subr.mxu0 0.0
      %2650 = vmatpush1.msra.mxu0 0.0
      %2651 = vmatprep.subr.mxu0 0.0
      %2652 = vmatpush1.msra.mxu0 0.0
      %2653 = vmatprep.subr.mxu0 0.0
      %2654 = vmatpush1.msra.mxu0 0.0
      %2655 = vmatprep.subr.mxu0 0.0
      %2656 = vmatpush1.msra.mxu0 0.0
      %2657 = vmatprep.subr.mxu0 0.0
      %2658 = vmatpush1.msra.mxu0 0.0
      %2659 = vmatprep.subr.mxu0 0.0
      %2660 = vmatpush1.msra.mxu0 0.0
      %2661 = vmatprep.subr.mxu0 0.0
      %2662 = vmatpush1.msra.mxu0 0.0
      %2663 = vmatprep.subr.mxu0 0.0
      %2664 = vmatpush1.msra.mxu0 0.0
      %2665 = vmatprep.subr.mxu0 0.0
      %2666 = vmatpush1.msra.mxu0 0.0
      %2667 = vmatprep.subr.mxu0 0.0
      %2668 = vmatpush1.msra.mxu0 0.0
      %2669 = vmatprep.subr.mxu0 0.0
      %2670 = vmatpush1.msra.mxu0 0.0
      %2671 = vmatprep.subr.mxu0 0.0
      %2672 = vmatpush1.msra.mxu0 0.0
      %2673 = vmatprep.subr.mxu0 0.0
      %2674 = vmatpush1.msra.mxu0 0.0
      %2675 = vmatprep.subr.mxu0 0.0
      %2676 = vmatpush1.msra.mxu0 0.0
      %2677 = vmatprep.subr.mxu0 0.0
      %2678 = vmatpush1.msra.mxu0 0.0
      %2679 = vmatprep.subr.mxu0 0.0
      %2680 = vmatpush1.msra.mxu0 0.0
      %2681 = vmatprep.subr.mxu0 0.0
      %2682 = vmatpush1.msra.mxu0 0.0
      %2683 = vmatprep.subr.mxu0 0.0
      %2684 = vmatpush1.msra.mxu0 0.0
      %2685 = vmatprep.subr.mxu0 0.0
      %2686 = vmatpush1.msra.mxu0 0.0
      %2687 = vmatprep.mubr.f32.mxu0 0.0
      %2688 = vmatmul.mubr.f32.gmra.mrb[0].mxu0 %v2237
      %v2689 = vpop.f32.mrb[0].mxu0
      %v2690 = vadd.f32 0.0, %v2689
      %v2691 = vpop.f32.mrb[0].mxu0
      %2692 = vmatprep.mubr.f32.mxu0 0.0
      %2693 = vmatmul.mubr.f32.gmra.mrb[0].mxu0 %v2240
      %v2694 = vpop.f32.mrb[0].mxu0
      %v2695 = vadd.f32 0.0, %v2694
      %v2696 = vpop.f32.mrb[0].mxu0
      %2697 = vmatprep.mubr.f32.mxu0 0.0
      %2698 = vmatmul.mubr.f32.gmra.mrb[0].mxu0 %v2243
      %v2699 = vpop.f32.mrb[0].mxu0
      %v2700 = vadd.f32 0.0, %v2699
      %v2701 = vpop.f32.mrb[0].mxu0
      %2702 = vmatprep.mubr.f32.mxu0 0.0
      %2703 = vmatmul.mubr.f32.gmra.mrb[0].mxu0 %v2246
      %v2704 = vpop.f32.mrb[0].mxu0
      %v2705 = vadd.f32 0.0, %v2704
      %v2706 = vpop.f32.mrb[0].mxu0
      %2707 = vmatprep.mubr.f32.mxu0 0.0
      %2708 = vmatmul.mubr.f32.gmra.mrb[0].mxu0 %v2249
      %v2709 = vpop.f32.mrb[0].mxu0
      %v2710 = vadd.f32 0.0, %v2709
      %v2711 = vpop.f32.mrb[0].mxu0
      %2712 = vmatprep.mubr.f32.mxu0 0.0
      %2713 = vmatmul.mubr.f32.gmra.mrb[0].mxu0 %v2252
      %v2714 = vpop.f32.mrb[0].mxu0
      %v2715 = vadd.f32 0.0, %v2714
      %v2716 = vpop.f32.mrb[0].mxu0
      %2717 = vmatprep.mubr.f32.mxu0 0.0
      %2718 = vmatmul.mubr.f32.gmra.mrb[0].mxu0 %v2255
      %v2719 = vpop.f32.mrb[0].mxu0
      %v2720 = vadd.f32 0.0, %v2719
      %v2721 = vpop.f32.mrb[0].mxu0
      %2722 = vmatprep.mubr.f32.mxu0 0.0
      %2723 = vmatmul.mubr.f32.gmra.mrb[0].mxu0 %v2258
      %v2724 = vpop.f32.mrb[0].mxu0
      %v2725 = vadd.f32 0.0, %v2724
      %v2726 = vpop.f32.mrb[0].mxu0
      %2727 = vmatprep.mubr.f32.mxu0 0.0
      %2728 = vmatmul.mubr.f32.gmra.mrb[0].mxu0 %v2261
      %v2729 = vpop.f32.mrb[0].mxu0
      %v2730 = vadd.f32 0.0, %v2729
      %v2731 = vpop.f32.mrb[0].mxu0
      %2732 = vmatprep.mubr.f32.mxu0 0.0
      %2733 = vmatmul.mubr.f32.gmra.mrb[0].mxu0 %v2264
      %v2734 = vpop.f32.mrb[0].mxu0
      %v2735 = vadd.f32 0.0, %v2734
      %v2736 = vpop.f32.mrb[0].mxu0
      %2737 = vmatprep.mubr.f32.mxu0 0.0
      %2738 = vmatmul.mubr.f32.gmra.mrb[0].mxu0 %v2267
      %v2739 = vpop.f32.mrb[0].mxu0
      %v2740 = vadd.f32 0.0, %v2739
      %v2741 = vpop.f32.mrb[0].mxu0
      %2742 = vmatprep.mubr.f32.mxu0 0.0
      %2743 = vmatmul.mubr.f32.gmra.mrb[0].mxu0 %v2270
      %v2744 = vpop.f32.mrb[0].mxu0
      %v2745 = vadd.f32 0.0, %v2744
      %v2746 = vpop.f32.mrb[0].mxu0
      %2747 = vmatprep.mubr.f32.mxu0 0.0
      %2748 = vmatmul.mubr.f32.gmra.mrb[0].mxu0 %v2273
      %v2749 = vpop.f32.mrb[0].mxu0
      %v2750 = vadd.f32 0.0, %v2749
      %v2751 = vpop.f32.mrb[0].mxu0
      %2752 = vmatprep.mubr.f32.mxu0 0.0
      %2753 = vmatmul.mubr.f32.gmra.mrb[0].mxu0 %v2276
      %v2754 = vpop.f32.mrb[0].mxu0
      %v2755 = vadd.f32 0.0, %v2754
      %v2756 = vpop.f32.mrb[0].mxu0
      %2757 = vmatprep.mubr.f32.mxu0 0.0
      %2758 = vmatmul.mubr.f32.gmra.mrb[0].mxu0 %v2279
      %v2759 = vpop.f32.mrb[0].mxu0
      %v2760 = vadd.f32 0.0, %v2759
      %v2761 = vpop.f32.mrb[0].mxu0
      %2762 = vmatprep.mubr.f32.mxu0 0.0
      %2763 = vmatmul.mubr.f32.gmra.mrb[0].mxu0 %v2282
      %v2764 = vpop.f32.mrb[0].mxu0
      %v2765 = vadd.f32 0.0, %v2764
      %v2766 = vpop.f32.mrb[0].mxu0
      %2767 = vmatprep.mubr.f32.mxu0 0.0
      %2768 = vmatmul.mubr.f32.gmra.mrb[0].mxu0 %v2285
      %v2769 = vpop.f32.mrb[0].mxu0
      %v2770 = vadd.f32 0.0, %v2769
      %v2771 = vpop.f32.mrb[0].mxu0
      %2772 = vmatprep.mubr.f32.mxu0 0.0
      %2773 = vmatmul.mubr.f32.gmra.mrb[0].mxu0 %v2288
      %v2774 = vpop.f32.mrb[0].mxu0
      %v2775 = vadd.f32 0.0, %v2774
      %v2776 = vpop.f32.mrb[0].mxu0
      %2777 = vmatprep.mubr.f32.mxu0 0.0
      %2778 = vmatmul.mubr.f32.gmra.mrb[0].mxu0 %v2291
      %v2779 = vpop.f32.mrb[0].mxu0
      %v2780 = vadd.f32 0.0, %v2779
      %v2781 = vpop.f32.mrb[0].mxu0
      %2782 = vmatprep.mubr.f32.mxu0 0.0
      %2783 = vmatmul.mubr.f32.gmra.mrb[0].mxu0 %v2294
      %v2784 = vpop.f32.mrb[0].mxu0
      %v2785 = vadd.f32 0.0, %v2784
      %v2786 = vpop.f32.mrb[0].mxu0
      %2787 = vmatprep.mubr.f32.mxu0 0.0
      %2788 = vmatmul.mubr.f32.gmra.mrb[0].mxu0 %v2297
      %v2789 = vpop.f32.mrb[0].mxu0
      %v2790 = vadd.f32 0.0, %v2789
      %v2791 = vpop.f32.mrb[0].mxu0
      %2792 = vmatprep.mubr.f32.mxu0 0.0
      %2793 = vmatmul.mubr.f32.gmra.mrb[0].mxu0 %v2300
      %v2794 = vpop.f32.mrb[0].mxu0
      %v2795 = vadd.f32 0.0, %v2794
      %v2796 = vpop.f32.mrb[0].mxu0
      %2797 = vmatprep.mubr.f32.mxu0 0.0
      %2798 = vmatmul.mubr.f32.gmra.mrb[0].mxu0 %v2303
      %v2799 = vpop.f32.mrb[0].mxu0
      %v2800 = vadd.f32 0.0, %v2799
      %v2801 = vpop.f32.mrb[0].mxu0
      %2802 = vmatprep.mubr.f32.mxu0 0.0
      %2803 = vmatmul.mubr.f32.gmra.mrb[0].mxu0 %v2306
      %v2804 = vpop.f32.mrb[0].mxu0
      %v2805 = vadd.f32 0.0, %v2804
      %v2806 = vpop.f32.mrb[0].mxu0
      %2807 = vmatprep.mubr.f32.mxu0 0.0
      %2808 = vmatmul.mubr.f32.gmra.mrb[0].mxu0 %v2309
      %v2809 = vpop.f32.mrb[0].mxu0
      %v2810 = vadd.f32 0.0, %v2809
      %v2811 = vpop.f32.mrb[0].mxu0
      %2812 = vmatprep.mubr.f32.mxu0 0.0
      %2813 = vmatmul.mubr.f32.gmra.mrb[0].mxu0 %v2312
      %v2814 = vpop.f32.mrb[0].mxu0
      %v2815 = vadd.f32 0.0, %v2814
      %v2816 = vpop.f32.mrb[0].mxu0
      %2817 = vmatprep.mubr.f32.mxu0 0.0
      %2818 = vmatmul.mubr.f32.gmra.mrb[0].mxu0 %v2315
      %v2819 = vpop.f32.mrb[0].mxu0
      %v2820 = vadd.f32 0.0, %v2819
      %v2821 = vpop.f32.mrb[0].mxu0
      %2822 = vmatprep.mubr.f32.mxu0 0.0
      %2823 = vmatmul.mubr.f32.gmra.mrb[0].mxu0 %v2318
      %v2824 = vpop.f32.mrb[0].mxu0
      %v2825 = vadd.f32 0.0, %v2824
      %v2826 = vpop.f32.mrb[0].mxu0
      %2827 = vmatprep.mubr.f32.mxu0 0.0
      %2828 = vmatmul.mubr.f32.gmra.mrb[0].mxu0 %v2321
      %v2829 = vpop.f32.mrb[0].mxu0
      %v2830 = vadd.f32 0.0, %v2829
      %v2831 = vpop.f32.mrb[0].mxu0
      %2832 = vmatprep.mubr.f32.mxu0 0.0
      %2833 = vmatmul.mubr.f32.gmra.mrb[0].mxu0 %v2324
      %v2834 = vpop.f32.mrb[0].mxu0
      %v2835 = vadd.f32 0.0, %v2834
      %v2836 = vpop.f32.mrb[0].mxu0
      %2837 = vmatprep.mubr.f32.mxu0 0.0
      %2838 = vmatmul.mubr.f32.gmra.mrb[0].mxu0 %v2327
      %v2839 = vpop.f32.mrb[0].mxu0
      %v2840 = vadd.f32 0.0, %v2839
      %v2841 = vpop.f32.mrb[0].mxu0
      %2842 = vmatprep.mubr.f32.mxu0 0.0
      %2843 = vmatmul.mubr.f32.gmra.mrb[0].mxu0 %v2330
      %v2844 = vpop.f32.mrb[0].mxu0
      %v2845 = vadd.f32 0.0, %v2844
      %v2846 = vpop.f32.mrb[0].mxu0
      %2847 = vmatprep.mubr.f32.mxu0 0.0
      %2848 = vmatmul.mubr.f32.gmra.mrb[0].mxu0 %v2333
      %v2849 = vpop.f32.mrb[0].mxu0
      %v2850 = vadd.f32 0.0, %v2849
      %v2851 = vpop.f32.mrb[0].mxu0
      %2852 = vmatprep.mubr.f32.mxu0 0.0
      %2853 = vmatmul.mubr.f32.gmra.mrb[0].mxu0 %v2336
      %v2854 = vpop.f32.mrb[0].mxu0
      %v2855 = vadd.f32 0.0, %v2854
      %v2856 = vpop.f32.mrb[0].mxu0
      %2857 = vmatprep.mubr.f32.mxu0 0.0
      %2858 = vmatmul.mubr.f32.gmra.mrb[0].mxu0 %v2339
      %v2859 = vpop.f32.mrb[0].mxu0
      %v2860 = vadd.f32 0.0, %v2859
      %v2861 = vpop.f32.mrb[0].mxu0
      %2862 = vmatprep.mubr.f32.mxu0 0.0
      %2863 = vmatmul.mubr.f32.gmra.mrb[0].mxu0 %v2342
      %v2864 = vpop.f32.mrb[0].mxu0
      %v2865 = vadd.f32 0.0, %v2864
      %v2866 = vpop.f32.mrb[0].mxu0
      %2867 = vmatprep.mubr.f32.mxu0 0.0
      %2868 = vmatmul.mubr.f32.gmra.mrb[0].mxu0 %v2345
      %v2869 = vpop.f32.mrb[0].mxu0
      %v2870 = vadd.f32 0.0, %v2869
      %v2871 = vpop.f32.mrb[0].mxu0
      %2872 = vmatprep.mubr.f32.mxu0 0.0
      %2873 = vmatmul.mubr.f32.gmra.mrb[0].mxu0 %v2348
      %v2874 = vpop.f32.mrb[0].mxu0
      %v2875 = vadd.f32 0.0, %v2874
      %v2876 = vpop.f32.mrb[0].mxu0
      %2877 = vmatprep.mubr.f32.mxu0 0.0
      %2878 = vmatmul.mubr.f32.gmra.mrb[0].mxu0 %v2351
      %v2879 = vpop.f32.mrb[0].mxu0
      %v2880 = vadd.f32 0.0, %v2879
      %v2881 = vpop.f32.mrb[0].mxu0
      %2882 = vmatprep.mubr.f32.mxu0 0.0
      %2883 = vmatmul.mubr.f32.gmra.mrb[0].mxu0 %v2354
      %v2884 = vpop.f32.mrb[0].mxu0
      %v2885 = vadd.f32 0.0, %v2884
      %v2886 = vpop.f32.mrb[0].mxu0
      %2887 = vmatprep.mubr.f32.mxu0 0.0
      %2888 = vmatmul.mubr.f32.gmra.mrb[0].mxu0 %v2357
      %v2889 = vpop.f32.mrb[0].mxu0
      %v2890 = vadd.f32 0.0, %v2889
      %v2891 = vpop.f32.mrb[0].mxu0
      %2892 = vmatprep.mubr.f32.mxu0 0.0
      %2893 = vmatmul.mubr.f32.gmra.mrb[0].mxu0 %v2360
      %v2894 = vpop.f32.mrb[0].mxu0
      %v2895 = vadd.f32 0.0, %v2894
      %v2896 = vpop.f32.mrb[0].mxu0
      %2897 = vmatprep.mubr.f32.mxu0 0.0
      %2898 = vmatmul.mubr.f32.gmra.mrb[0].mxu0 %v2363
      %v2899 = vpop.f32.mrb[0].mxu0
      %v2900 = vadd.f32 0.0, %v2899
      %v2901 = vpop.f32.mrb[0].mxu0
      %2902 = vmatprep.mubr.f32.mxu0 0.0
      %2903 = vmatmul.mubr.f32.gmra.mrb[0].mxu0 %v2366
      %v2904 = vpop.f32.mrb[0].mxu0
      %v2905 = vadd.f32 0.0, %v2904
      %v2906 = vpop.f32.mrb[0].mxu0
      %2907 = vmatprep.mubr.f32.mxu0 0.0
      %2908 = vmatmul.mubr.f32.gmra.mrb[0].mxu0 %v2369
      %v2909 = vpop.f32.mrb[0].mxu0
      %v2910 = vadd.f32 0.0, %v2909
      %v2911 = vpop.f32.mrb[0].mxu0
      %2912 = vmatprep.mubr.f32.mxu0 0.0
      %2913 = vmatmul.mubr.f32.gmra.mrb[0].mxu0 %v2372
      %v2914 = vpop.f32.mrb[0].mxu0
      %v2915 = vadd.f32 0.0, %v2914
      %v2916 = vpop.f32.mrb[0].mxu0
      %2917 = vmatprep.mubr.f32.mxu0 0.0
      %2918 = vmatmul.mubr.f32.gmra.mrb[0].mxu0 %v2375
      %v2919 = vpop.f32.mrb[0].mxu0
      %v2920 = vadd.f32 0.0, %v2919
      %v2921 = vpop.f32.mrb[0].mxu0
      %2922 = vmatprep.mubr.f32.mxu0 0.0
      %2923 = vmatmul.mubr.f32.gmra.mrb[0].mxu0 %v2378
      %v2924 = vpop.f32.mrb[0].mxu0
      %v2925 = vadd.f32 0.0, %v2924
      %v2926 = vpop.f32.mrb[0].mxu0
      %2927 = vmatprep.mubr.f32.mxu0 0.0
      %2928 = vmatmul.mubr.f32.gmra.mrb[0].mxu0 %v2381
      %v2929 = vpop.f32.mrb[0].mxu0
      %v2930 = vadd.f32 0.0, %v2929
      %v2931 = vpop.f32.mrb[0].mxu0
      %2932 = vmatprep.mubr.f32.mxu0 0.0
      %2933 = vmatmul.mubr.f32.gmra.mrb[0].mxu0 %v2384
      %v2934 = vpop.f32.mrb[0].mxu0
      %v2935 = vadd.f32 0.0, %v2934
      %v2936 = vpop.f32.mrb[0].mxu0
      %2937 = vmatprep.mubr.f32.mxu0 0.0
      %2938 = vmatmul.mubr.f32.gmra.mrb[0].mxu0 %v2387
      %v2939 = vpop.f32.mrb[0].mxu0
      %v2940 = vadd.f32 0.0, %v2939
      %v2941 = vpop.f32.mrb[0].mxu0
      %2942 = vmatprep.mubr.f32.mxu0 0.0
      %2943 = vmatmul.mubr.f32.gmra.mrb[0].mxu0 %v2390
      %v2944 = vpop.f32.mrb[0].mxu0
      %v2945 = vadd.f32 0.0, %v2944
      %v2946 = vpop.f32.mrb[0].mxu0
      %2947 = vmatprep.mubr.f32.mxu0 0.0
      %2948 = vmatmul.mubr.f32.gmra.mrb[0].mxu0 %v2393
      %v2949 = vpop.f32.mrb[0].mxu0
      %v2950 = vadd.f32 0.0, %v2949
      %v2951 = vpop.f32.mrb[0].mxu0
      %2952 = vmatprep.mubr.f32.mxu0 0.0
      %2953 = vmatmul.mubr.f32.gmra.mrb[0].mxu0 %v2396
      %v2954 = vpop.f32.mrb[0].mxu0
      %v2955 = vadd.f32 0.0, %v2954
      %v2956 = vpop.f32.mrb[0].mxu0
      %2957 = vmatprep.mubr.f32.mxu0 0.0
      %2958 = vmatmul.mubr.f32.gmra.mrb[0].mxu0 %v2399
      %v2959 = vpop.f32.mrb[0].mxu0
      %v2960 = vadd.f32 0.0, %v2959
      %v2961 = vpop.f32.mrb[0].mxu0
      %2962 = vmatprep.mubr.f32.mxu0 0.0
      %2963 = vmatmul.mubr.f32.gmra.mrb[0].mxu0 %v2402
      %v2964 = vpop.f32.mrb[0].mxu0
      %v2965 = vadd.f32 0.0, %v2964
      %v2966 = vpop.f32.mrb[0].mxu0
      %2967 = vmatprep.mubr.f32.mxu0 0.0
      %2968 = vmatmul.mubr.f32.gmra.mrb[0].mxu0 %v2405
      %v2969 = vpop.f32.mrb[0].mxu0
      %v2970 = vadd.f32 0.0, %v2969
      %v2971 = vpop.f32.mrb[0].mxu0
      %2972 = vmatprep.mubr.f32.mxu0 0.0
      %2973 = vmatmul.mubr.f32.gmra.mrb[0].mxu0 %v2408
      %v2974 = vpop.f32.mrb[0].mxu0
      %v2975 = vadd.f32 0.0, %v2974
      %v2976 = vpop.f32.mrb[0].mxu0
      %2977 = vmatprep.mubr.f32.mxu0 0.0
      %2978 = vmatmul.mubr.f32.gmra.mrb[0].mxu0 %v2411
      %v2979 = vpop.f32.mrb[0].mxu0
      %v2980 = vadd.f32 0.0, %v2979
      %v2981 = vpop.f32.mrb[0].mxu0
      %2982 = vmatprep.mubr.f32.mxu0 0.0
      %2983 = vmatmul.mubr.f32.gmra.mrb[0].mxu0 %v2414
      %v2984 = vpop.f32.mrb[0].mxu0
      %v2985 = vadd.f32 0.0, %v2984
      %v2986 = vpop.f32.mrb[0].mxu0
      %2987 = vmatprep.mubr.f32.mxu0 0.0
      %2988 = vmatmul.mubr.f32.gmra.mrb[0].mxu0 %v2417
      %v2989 = vpop.f32.mrb[0].mxu0
      %v2990 = vadd.f32 0.0, %v2989
      %v2991 = vpop.f32.mrb[0].mxu0
      %2992 = vmatprep.mubr.f32.mxu0 0.0
      %2993 = vmatmul.mubr.f32.gmra.mrb[0].mxu0 %v2420
      %v2994 = vpop.f32.mrb[0].mxu0
      %v2995 = vadd.f32 0.0, %v2994
      %v2996 = vpop.f32.mrb[0].mxu0
      %2997 = vmatprep.mubr.f32.mxu0 0.0
      %2998 = vmatmul.mubr.f32.gmra.mrb[0].mxu0 %v2423
      %v2999 = vpop.f32.mrb[0].mxu0
      %v3000 = vadd.f32 0.0, %v2999
      %v3001 = vpop.f32.mrb[0].mxu0
      %3002 = vmatprep.mubr.f32.mxu0 0.0
      %3003 = vmatmul.mubr.f32.gmra.mrb[0].mxu0 %v2426
      %v3004 = vpop.f32.mrb[0].mxu0
      %v3005 = vadd.f32 0.0, %v3004
      %v3006 = vpop.f32.mrb[0].mxu0
      %3007 = vmatprep.mubr.f32.mxu0 0.0
      %3008 = vmatmul.mubr.f32.gmra.mrb[0].mxu0 %v2429
      %v3009 = vpop.f32.mrb[0].mxu0
      %v3010 = vadd.f32 0.0, %v3009
      %v3011 = vpop.f32.mrb[0].mxu0
      %3012 = vmatprep.mubr.f32.mxu0 0.0
      %3013 = vmatmul.mubr.f32.gmra.mrb[0].mxu0 %v2432
      %v3014 = vpop.f32.mrb[0].mxu0
      %v3015 = vadd.f32 0.0, %v3014
      %v3016 = vpop.f32.mrb[0].mxu0
      %3017 = vmatprep.mubr.f32.mxu0 0.0
      %3018 = vmatmul.mubr.f32.gmra.mrb[0].mxu0 %v2435
      %v3019 = vpop.f32.mrb[0].mxu0
      %v3020 = vadd.f32 0.0, %v3019
      %v3021 = vpop.f32.mrb[0].mxu0
      %3022 = vmatprep.mubr.f32.mxu0 0.0
      %3023 = vmatmul.mubr.f32.gmra.mrb[0].mxu0 %v2438
      %v3024 = vpop.f32.mrb[0].mxu0
      %v3025 = vadd.f32 0.0, %v3024
      %v3026 = vpop.f32.mrb[0].mxu0
      %3027 = vmatprep.mubr.f32.mxu0 0.0
      %3028 = vmatmul.mubr.f32.gmra.mrb[0].mxu0 %v2441
      %v3029 = vpop.f32.mrb[0].mxu0
      %v3030 = vadd.f32 0.0, %v3029
      %v3031 = vpop.f32.mrb[0].mxu0
      %3032 = vmatprep.mubr.f32.mxu0 0.0
      %3033 = vmatmul.mubr.f32.gmra.mrb[0].mxu0 %v2444
      %v3034 = vpop.f32.mrb[0].mxu0
      %v3035 = vadd.f32 0.0, %v3034
      %v3036 = vpop.f32.mrb[0].mxu0
      %3037 = vmatprep.mubr.f32.mxu0 0.0
      %3038 = vmatmul.mubr.f32.gmra.mrb[0].mxu0 %v2447
      %v3039 = vpop.f32.mrb[0].mxu0
      %v3040 = vadd.f32 0.0, %v3039
      %v3041 = vpop.f32.mrb[0].mxu0
      %3042 = vmatprep.mubr.f32.mxu0 0.0
      %3043 = vmatmul.mubr.f32.gmra.mrb[0].mxu0 %v2450
      %v3044 = vpop.f32.mrb[0].mxu0
      %v3045 = vadd.f32 0.0, %v3044
      %v3046 = vpop.f32.mrb[0].mxu0
      %3047 = vmatprep.mubr.f32.mxu0 0.0
      %3048 = vmatmul.mubr.f32.gmra.mrb[0].mxu0 %v2453
      %v3049 = vpop.f32.mrb[0].mxu0
      %v3050 = vadd.f32 0.0, %v3049
      %v3051 = vpop.f32.mrb[0].mxu0
      %3052 = vmatprep.mubr.f32.mxu0 0.0
      %3053 = vmatmul.mubr.f32.gmra.mrb[0].mxu0 %v2456
      %v3054 = vpop.f32.mrb[0].mxu0
      %v3055 = vadd.f32 0.0, %v3054
      %v3056 = vpop.f32.mrb[0].mxu0
      %3057 = vmatprep.mubr.f32.mxu0 0.0
      %3058 = vmatmul.mubr.f32.gmra.mrb[0].mxu0 %v2459
      %v3059 = vpop.f32.mrb[0].mxu0
      %v3060 = vadd.f32 0.0, %v3059
      %v3061 = vpop.f32.mrb[0].mxu0
      %3062 = vmatprep.mubr.f32.mxu0 0.0
      %3063 = vmatmul.mubr.f32.gmra.mrb[0].mxu0 %v2462
      %v3064 = vpop.f32.mrb[0].mxu0
      %v3065 = vadd.f32 0.0, %v3064
      %v3066 = vpop.f32.mrb[0].mxu0
      %3067 = vmatprep.mubr.f32.mxu0 0.0
      %3068 = vmatmul.mubr.f32.gmra.mrb[0].mxu0 %v2465
      %v3069 = vpop.f32.mrb[0].mxu0
      %v3070 = vadd.f32 0.0, %v3069
      %v3071 = vpop.f32.mrb[0].mxu0
      %3072 = vmatprep.mubr.f32.mxu0 0.0
      %3073 = vmatmul.mubr.f32.gmra.mrb[0].mxu0 %v2468
      %v3074 = vpop.f32.mrb[0].mxu0
      %v3075 = vadd.f32 0.0, %v3074
      %v3076 = vpop.f32.mrb[0].mxu0
      %3077 = vmatprep.mubr.f32.mxu0 0.0
      %3078 = vmatmul.mubr.f32.gmra.mrb[0].mxu0 %v2471
      %v3079 = vpop.f32.mrb[0].mxu0
      %v3080 = vadd.f32 0.0, %v3079
      %v3081 = vpop.f32.mrb[0].mxu0
      %3082 = vmatprep.mubr.f32.mxu0 0.0
      %3083 = vmatmul.mubr.f32.gmra.mrb[0].mxu0 %v2474
      %v3084 = vpop.f32.mrb[0].mxu0
      %v3085 = vadd.f32 0.0, %v3084
      %v3086 = vpop.f32.mrb[0].mxu0
      %3087 = vmatprep.mubr.f32.mxu0 0.0
      %3088 = vmatmul.mubr.f32.gmra.mrb[0].mxu0 %v2477
      %v3089 = vpop.f32.mrb[0].mxu0
      %v3090 = vadd.f32 0.0, %v3089
      %v3091 = vpop.f32.mrb[0].mxu0
      %3092 = vmatprep.mubr.f32.mxu0 0.0
      %3093 = vmatmul.mubr.f32.gmra.mrb[0].mxu0 %v2480
      %v3094 = vpop.f32.mrb[0].mxu0
      %v3095 = vadd.f32 0.0, %v3094
      %v3096 = vpop.f32.mrb[0].mxu0
      %3097 = vmatprep.mubr.f32.mxu0 0.0
      %3098 = vmatmul.mubr.f32.gmra.mrb[0].mxu0 %v2483
      %v3099 = vpop.f32.mrb[0].mxu0
      %v3100 = vadd.f32 0.0, %v3099
      %v3101 = vpop.f32.mrb[0].mxu0
      %3102 = vmatprep.mubr.f32.mxu0 0.0
      %3103 = vmatmul.mubr.f32.gmra.mrb[0].mxu0 %v2486
      %v3104 = vpop.f32.mrb[0].mxu0
      %v3105 = vadd.f32 0.0, %v3104
      %v3106 = vpop.f32.mrb[0].mxu0
      %3107 = vmatprep.mubr.f32.mxu0 0.0
      %3108 = vmatmul.mubr.f32.gmra.mrb[0].mxu0 %v2489
      %v3109 = vpop.f32.mrb[0].mxu0
      %v3110 = vadd.f32 0.0, %v3109
      %v3111 = vpop.f32.mrb[0].mxu0
      %3112 = vmatprep.mubr.f32.mxu0 0.0
      %3113 = vmatmul.mubr.f32.gmra.mrb[0].mxu0 %v2492
      %v3114 = vpop.f32.mrb[0].mxu0
      %v3115 = vadd.f32 0.0, %v3114
      %v3116 = vpop.f32.mrb[0].mxu0
      %3117 = vmatprep.mubr.f32.mxu0 0.0
      %3118 = vmatmul.mubr.f32.gmra.mrb[0].mxu0 %v2495
      %v3119 = vpop.f32.mrb[0].mxu0
      %v3120 = vadd.f32 0.0, %v3119
      %v3121 = vpop.f32.mrb[0].mxu0
      %3122 = vmatprep.mubr.f32.mxu0 0.0
      %3123 = vmatmul.mubr.f32.gmra.mrb[0].mxu0 %v2498
      %v3124 = vpop.f32.mrb[0].mxu0
      %v3125 = vadd.f32 0.0, %v3124
      %v3126 = vpop.f32.mrb[0].mxu0
      %3127 = vmatprep.mubr.f32.mxu0 0.0
      %3128 = vmatmul.mubr.f32.gmra.mrb[0].mxu0 %v2501
      %v3129 = vpop.f32.mrb[0].mxu0
      %v3130 = vadd.f32 0.0, %v3129
      %v3131 = vpop.f32.mrb[0].mxu0
      %3132 = vmatprep.mubr.f32.mxu0 0.0
      %3133 = vmatmul.mubr.f32.gmra.mrb[0].mxu0 %v2504
      %v3134 = vpop.f32.mrb[0].mxu0
      %v3135 = vadd.f32 0.0, %v3134
      %v3136 = vpop.f32.mrb[0].mxu0
      %3137 = vmatprep.mubr.f32.mxu0 0.0
      %3138 = vmatmul.mubr.f32.gmra.mrb[0].mxu0 %v2507
      %v3139 = vpop.f32.mrb[0].mxu0
      %v3140 = vadd.f32 0.0, %v3139
      %v3141 = vpop.f32.mrb[0].mxu0
      %3142 = vmatprep.mubr.f32.mxu0 0.0
      %3143 = vmatmul.mubr.f32.gmra.mrb[0].mxu0 %v2510
      %v3144 = vpop.f32.mrb[0].mxu0
      %v3145 = vadd.f32 0.0, %v3144
      %v3146 = vpop.f32.mrb[0].mxu0
      %3147 = vmatprep.mubr.f32.mxu0 0.0
      %3148 = vmatmul.mubr.f32.gmra.mrb[0].mxu0 %v2513
      %v3149 = vpop.f32.mrb[0].mxu0
      %v3150 = vadd.f32 0.0, %v3149
      %v3151 = vpop.f32.mrb[0].mxu0
      %3152 = vmatprep.mubr.f32.mxu0 0.0
      %3153 = vmatmul.mubr.f32.gmra.mrb[0].mxu0 %v2516
      %v3154 = vpop.f32.mrb[0].mxu0
      %v3155 = vadd.f32 0.0, %v3154
      %v3156 = vpop.f32.mrb[0].mxu0
      %3157 = vmatprep.mubr.f32.mxu0 0.0
      %3158 = vmatmul.mubr.f32.gmra.mrb[0].mxu0 %v2519
      %v3159 = vpop.f32.mrb[0].mxu0
      %v3160 = vadd.f32 0.0, %v3159
      %v3161 = vpop.f32.mrb[0].mxu0
      %3162 = vmatprep.mubr.f32.mxu0 0.0
      %3163 = vmatmul.mubr.f32.gmra.mrb[0].mxu0 %v2522
      %v3164 = vpop.f32.mrb[0].mxu0
      %v3165 = vadd.f32 0.0, %v3164
      %v3166 = vpop.f32.mrb[0].mxu0
      %3167 = vmatprep.mubr.f32.mxu0 0.0
      %3168 = vmatmul.mubr.f32.gmra.mrb[0].mxu0 %v2525
      %v3169 = vpop.f32.mrb[0].mxu0
      %v3170 = vadd.f32 0.0, %v3169
      %v3171 = vpop.f32.mrb[0].mxu0
      %3172 = vmatprep.mubr.f32.mxu0 0.0
      %3173 = vmatmul.mubr.f32.gmra.mrb[0].mxu0 %v2528
      %v3174 = vpop.f32.mrb[0].mxu0
      %v3175 = vadd.f32 0.0, %v3174
      %v3176 = vpop.f32.mrb[0].mxu0
      %3177 = vmatprep.mubr.f32.mxu0 0.0
      %3178 = vmatmul.mubr.f32.gmra.mrb[0].mxu0 %v2531
      %v3179 = vpop.f32.mrb[0].mxu0
      %v3180 = vadd.f32 0.0, %v3179
      %v3181 = vpop.f32.mrb[0].mxu0
      %3182 = vmatprep.mubr.f32.mxu0 0.0
      %3183 = vmatmul.mubr.f32.gmra.mrb[0].mxu0 %v2534
      %v3184 = vpop.f32.mrb[0].mxu0
      %v3185 = vadd.f32 0.0, %v3184
      %v3186 = vpop.f32.mrb[0].mxu0
      %3187 = vmatprep.mubr.f32.mxu0 0.0
      %3188 = vmatmul.mubr.f32.gmra.mrb[0].mxu0 %v2537
      %v3189 = vpop.f32.mrb[0].mxu0
      %v3190 = vadd.f32 0.0, %v3189
      %v3191 = vpop.f32.mrb[0].mxu0
      %3192 = vmatprep.mubr.f32.mxu0 0.0
      %3193 = vmatmul.mubr.f32.gmra.mrb[0].mxu0 %v2540
      %v3194 = vpop.f32.mrb[0].mxu0
      %v3195 = vadd.f32 0.0, %v3194
      %v3196 = vpop.f32.mrb[0].mxu0
      %3197 = vmatprep.mubr.f32.mxu0 0.0
      %3198 = vmatmul.mubr.f32.gmra.mrb[0].mxu0 %v2543
      %v3199 = vpop.f32.mrb[0].mxu0
      %v3200 = vadd.f32 0.0, %v3199
      %v3201 = vpop.f32.mrb[0].mxu0
      %3202 = vmatprep.mubr.f32.mxu0 0.0
      %3203 = vmatmul.mubr.f32.gmra.mrb[0].mxu0 %v2546
      %v3204 = vpop.f32.mrb[0].mxu0
      %v3205 = vadd.f32 0.0, %v3204
      %v3206 = vpop.f32.mrb[0].mxu0
      %3207 = vmatprep.mubr.f32.mxu0 0.0
      %3208 = vmatmul.mubr.f32.gmra.mrb[0].mxu0 %v2549
      %v3209 = vpop.f32.mrb[0].mxu0
      %v3210 = vadd.f32 0.0, %v3209
      %v3211 = vpop.f32.mrb[0].mxu0
      %3212 = vmatprep.mubr.f32.mxu0 0.0
      %3213 = vmatmul.mubr.f32.gmra.mrb[0].mxu0 %v2552
      %v3214 = vpop.f32.mrb[0].mxu0
      %v3215 = vadd.f32 0.0, %v3214
      %v3216 = vpop.f32.mrb[0].mxu0
      %3217 = vmatprep.mubr.f32.mxu0 0.0
      %3218 = vmatmul.mubr.f32.gmra.mrb[0].mxu0 %v2555
      %v3219 = vpop.f32.mrb[0].mxu0
      %v3220 = vadd.f32 0.0, %v3219
      %v3221 = vpop.f32.mrb[0].mxu0
      %3222 = vmatprep.mubr.f32.mxu0 0.0
      %3223 = vmatmul.mubr.f32.gmra.mrb[0].mxu0 %v2558
      %v3224 = vpop.f32.mrb[0].mxu0
      %v3225 = vadd.f32 0.0, %v3224
      %v3226 = vpop.f32.mrb[0].mxu0
      %3227 = vmatprep.mubr.f32.mxu0 0.0
      %3228 = vmatmul.mubr.f32.gmra.mrb[0].mxu0 %v2561
      %v3229 = vpop.f32.mrb[0].mxu0
      %v3230 = vadd.f32 0.0, %v3229
      %v3231 = vpop.f32.mrb[0].mxu0
      %3232 = vmatprep.mubr.f32.mxu0 0.0
      %3233 = vmatmul.mubr.f32.gmra.mrb[0].mxu0 %v2564
      %v3234 = vpop.f32.mrb[0].mxu0
      %v3235 = vadd.f32 0.0, %v3234
      %v3236 = vpop.f32.mrb[0].mxu0
      %3237 = vmatprep.mubr.f32.mxu0 0.0
      %3238 = vmatmul.mubr.f32.gmra.mrb[0].mxu0 %v2567
      %v3239 = vpop.f32.mrb[0].mxu0
      %v3240 = vadd.f32 0.0, %v3239
      %v3241 = vpop.f32.mrb[0].mxu0
      %3242 = vmatprep.mubr.f32.mxu0 0.0
      %3243 = vmatmul.mubr.f32.gmra.mrb[0].mxu0 %v2570
      %v3244 = vpop.f32.mrb[0].mxu0
      %v3245 = vadd.f32 0.0, %v3244
      %v3246 = vpop.f32.mrb[0].mxu0
      %3247 = vmatprep.mubr.f32.mxu0 0.0
      %3248 = vmatmul.mubr.f32.gmra.mrb[0].mxu0 %v2573
      %v3249 = vpop.f32.mrb[0].mxu0
      %v3250 = vadd.f32 0.0, %v3249
      %v3251 = vpop.f32.mrb[0].mxu0
      %3252 = vmatprep.mubr.f32.mxu0 0.0
      %3253 = vmatmul.mubr.f32.gmra.mrb[0].mxu0 %v2576
      %v3254 = vpop.f32.mrb[0].mxu0
      %v3255 = vadd.f32 0.0, %v3254
      %v3256 = vpop.f32.mrb[0].mxu0
      %3257 = vmatprep.mubr.f32.mxu0 0.0
      %3258 = vmatmul.mubr.f32.gmra.mrb[0].mxu0 %v2579
      %v3259 = vpop.f32.mrb[0].mxu0
      %v3260 = vadd.f32 0.0, %v3259
      %v3261 = vpop.f32.mrb[0].mxu0
      %3262 = vmatprep.mubr.f32.mxu0 0.0
      %3263 = vmatmul.mubr.f32.gmra.mrb[0].mxu0 %v2582
      %v3264 = vpop.f32.mrb[0].mxu0
      %v3265 = vadd.f32 0.0, %v3264
      %v3266 = vpop.f32.mrb[0].mxu0
      %3267 = vmatprep.mubr.f32.mxu0 0.0
      %3268 = vmatmul.mubr.f32.gmra.mrb[0].mxu0 %v2585
      %v3269 = vpop.f32.mrb[0].mxu0
      %v3270 = vadd.f32 0.0, %v3269
      %v3271 = vpop.f32.mrb[0].mxu0
      %3272 = vmatprep.mubr.f32.mxu0 0.0
      %3273 = vmatmul.mubr.f32.gmra.mrb[0].mxu0 %v2588
      %v3274 = vpop.f32.mrb[0].mxu0
      %v3275 = vadd.f32 0.0, %v3274
      %v3276 = vpop.f32.mrb[0].mxu0
      %3277 = vmatprep.mubr.f32.mxu0 0.0
      %3278 = vmatmul.mubr.f32.gmra.mrb[0].mxu0 %v2591
      %v3279 = vpop.f32.mrb[0].mxu0
      %v3280 = vadd.f32 0.0, %v3279
      %v3281 = vpop.f32.mrb[0].mxu0
      %3282 = vmatprep.mubr.f32.mxu0 0.0
      %3283 = vmatmul.mubr.f32.gmra.mrb[0].mxu0 %v2594
      %v3284 = vpop.f32.mrb[0].mxu0
      %v3285 = vadd.f32 0.0, %v3284
      %v3286 = vpop.f32.mrb[0].mxu0
      %3287 = vmatprep.mubr.f32.mxu0 0.0
      %3288 = vmatmul.mubr.f32.gmra.mrb[0].mxu0 %v2597
      %v3289 = vpop.f32.mrb[0].mxu0
      %v3290 = vadd.f32 0.0, %v3289
      %v3291 = vpop.f32.mrb[0].mxu0
      %3292 = vmatprep.mubr.f32.mxu0 0.0
      %3293 = vmatmul.mubr.f32.gmra.mrb[0].mxu0 %v2600
      %v3294 = vpop.f32.mrb[0].mxu0
      %v3295 = vadd.f32 0.0, %v3294
      %v3296 = vpop.f32.mrb[0].mxu0
      %3297 = vmatprep.mubr.f32.mxu0 0.0
      %3298 = vmatmul.mubr.f32.gmra.mrb[0].mxu0 %v2603
      %v3299 = vpop.f32.mrb[0].mxu0
      %v3300 = vadd.f32 0.0, %v3299
      %v3301 = vpop.f32.mrb[0].mxu0
      %3302 = vmatprep.mubr.f32.mxu0 0.0
      %3303 = vmatmul.mubr.f32.gmra.mrb[0].mxu0 %v2606
      %v3304 = vpop.f32.mrb[0].mxu0
      %v3305 = vadd.f32 0.0, %v3304
      %v3306 = vpop.f32.mrb[0].mxu0
      %3307 = vmatprep.mubr.f32.mxu0 0.0
      %3308 = vmatmul.mubr.f32.gmra.mrb[0].mxu0 %v2609
      %v3309 = vpop.f32.mrb[0].mxu0
      %v3310 = vadd.f32 0.0, %v3309
      %v3311 = vpop.f32.mrb[0].mxu0
      %3312 = vmatprep.mubr.f32.mxu0 0.0
      %3313 = vmatmul.mubr.f32.gmra.mrb[0].mxu0 %v2612
      %v3314 = vpop.f32.mrb[0].mxu0
      %v3315 = vadd.f32 0.0, %v3314
      %v3316 = vpop.f32.mrb[0].mxu0
      %3317 = vmatprep.mubr.f32.mxu0 0.0
      %3318 = vmatmul.mubr.f32.gmra.mrb[0].mxu0 %v2615
      %v3319 = vpop.f32.mrb[0].mxu0
      %v3320 = vadd.f32 0.0, %v3319
      %v3321 = vpop.f32.mrb[0].mxu0
      %3322 = vmatprep.mubr.f32.mxu0 0.0
      %3323 = vmatmul.mubr.f32.gmra.mrb[0].mxu0 %v2618
      %v3324 = vpop.f32.mrb[0].mxu0
      %v3325 = vadd.f32 0.0, %v3324
      %v3326 = vpop.f32.mrb[0].mxu0
      %3327 = vdwg.mxu0
      %v3329 = vsel %vm2052, %v348, 0
      %v3332 = vsel %vm2052, %v349, 0
      %v3335 = vsel %vm2052, %v350, 0
      %v3338 = vsel %vm2052, %v351, 0
      %v3341 = vsel %vm2052, %v352, 0
      %v3344 = vsel %vm2052, %v353, 0
      %v3347 = vsel %vm2052, %v354, 0
      %v3350 = vsel %vm2052, %v355, 0
      %v3353 = vsel %vm2052, %v356, 0
      %v3356 = vsel %vm2052, %v357, 0
      %v3359 = vsel %vm2052, %v358, 0
      %v3362 = vsel %vm2052, %v359, 0
      %v3365 = vsel %vm2052, %v360, 0
      %v3368 = vsel %vm2052, %v361, 0
      %v3371 = vsel %vm2052, %v362, 0
      %v3374 = vsel %vm2052, %v363, 0
      %v3377 = vsel %vm2052, %v364, 0
      %v3380 = vsel %vm2052, %v365, 0
      %v3383 = vsel %vm2052, %v366, 0
      %v3386 = vsel %vm2052, %v367, 0
      %v3389 = vsel %vm2052, %v368, 0
      %v3392 = vsel %vm2052, %v369, 0
      %v3395 = vsel %vm2052, %v370, 0
      %v3398 = vsel %vm2052, %v371, 0
      %v3401 = vsel %vm2052, %v372, 0
      %v3404 = vsel %vm2052, %v373, 0
      %v3407 = vsel %vm2052, %v374, 0
      %v3410 = vsel %vm2052, %v375, 0
      %v3413 = vsel %vm2052, %v376, 0
      %v3416 = vsel %vm2052, %v377, 0
      %v3419 = vsel %vm2052, %v378, 0
      %v3422 = vsel %vm2052, %v379, 0
      %v3425 = vsel %vm2052, %v380, 0
      %v3428 = vsel %vm2052, %v381, 0
      %v3431 = vsel %vm2052, %v382, 0
      %v3434 = vsel %vm2052, %v383, 0
      %v3437 = vsel %vm2052, %v384, 0
      %v3440 = vsel %vm2052, %v385, 0
      %v3443 = vsel %vm2052, %v386, 0
      %v3446 = vsel %vm2052, %v387, 0
      %v3449 = vsel %vm2052, %v388, 0
      %v3452 = vsel %vm2052, %v389, 0
      %v3455 = vsel %vm2052, %v390, 0
      %v3458 = vsel %vm2052, %v391, 0
      %v3461 = vsel %vm2052, %v392, 0
      %v3464 = vsel %vm2052, %v393, 0
      %v3467 = vsel %vm2052, %v394, 0
      %v3470 = vsel %vm2052, %v395, 0
      %v3473 = vsel %vm2052, %v396, 0
      %v3476 = vsel %vm2052, %v397, 0
      %v3479 = vsel %vm2052, %v398, 0
      %v3482 = vsel %vm2052, %v399, 0
      %v3485 = vsel %vm2052, %v400, 0
      %v3488 = vsel %vm2052, %v401, 0
      %v3491 = vsel %vm2052, %v402, 0
      %v3494 = vsel %vm2052, %v403, 0
      %v3497 = vsel %vm2052, %v404, 0
      %v3500 = vsel %vm2052, %v405, 0
      %v3503 = vsel %vm2052, %v406, 0
      %v3506 = vsel %vm2052, %v407, 0
      %v3509 = vsel %vm2052, %v408, 0
      %v3512 = vsel %vm2052, %v409, 0
      %v3515 = vsel %vm2052, %v410, 0
      %v3518 = vsel %vm2052, %v411, 0
      %v3521 = vsel %vm2052, %v412, 0
      %v3524 = vsel %vm2052, %v413, 0
      %v3527 = vsel %vm2052, %v414, 0
      %v3530 = vsel %vm2052, %v415, 0
      %v3533 = vsel %vm2052, %v416, 0
      %v3536 = vsel %vm2052, %v417, 0
      %v3539 = vsel %vm2052, %v418, 0
      %v3542 = vsel %vm2052, %v419, 0
      %v3545 = vsel %vm2052, %v420, 0
      %v3548 = vsel %vm2052, %v421, 0
      %v3551 = vsel %vm2052, %v422, 0
      %v3554 = vsel %vm2052, %v423, 0
      %v3557 = vsel %vm2052, %v424, 0
      %v3560 = vsel %vm2052, %v425, 0
      %v3563 = vsel %vm2052, %v426, 0
      %v3566 = vsel %vm2052, %v427, 0
      %v3569 = vsel %vm2052, %v428, 0
      %v3572 = vsel %vm2052, %v429, 0
      %v3575 = vsel %vm2052, %v430, 0
      %v3578 = vsel %vm2052, %v431, 0
      %v3581 = vsel %vm2052, %v432, 0
      %v3584 = vsel %vm2052, %v433, 0
      %v3587 = vsel %vm2052, %v434, 0
      %v3590 = vsel %vm2052, %v435, 0
      %v3593 = vsel %vm2052, %v436, 0
      %v3596 = vsel %vm2052, %v437, 0
      %v3599 = vsel %vm2052, %v438, 0
      %v3602 = vsel %vm2052, %v439, 0
      %v3605 = vsel %vm2052, %v440, 0
      %v3608 = vsel %vm2052, %v441, 0
      %v3611 = vsel %vm2052, %v442, 0
      %v3614 = vsel %vm2052, %v443, 0
      %v3617 = vsel %vm2052, %v444, 0
      %v3620 = vsel %vm2052, %v445, 0
      %v3623 = vsel %vm2052, %v446, 0
      %v3626 = vsel %vm2052, %v447, 0
      %v3629 = vsel %vm2052, %v448, 0
      %v3632 = vsel %vm2052, %v449, 0
      %v3635 = vsel %vm2052, %v450, 0
      %v3638 = vsel %vm2052, %v451, 0
      %v3641 = vsel %vm2052, %v452, 0
      %v3644 = vsel %vm2052, %v453, 0
      %v3647 = vsel %vm2052, %v454, 0
      %v3650 = vsel %vm2052, %v455, 0
      %v3653 = vsel %vm2052, %v456, 0
      %v3656 = vsel %vm2052, %v457, 0
      %v3659 = vsel %vm2052, %v458, 0
      %v3662 = vsel %vm2052, %v459, 0
      %v3665 = vsel %vm2052, %v460, 0
      %v3668 = vsel %vm2052, %v461, 0
      %v3671 = vsel %vm2052, %v462, 0
      %v3674 = vsel %vm2052, %v463, 0
      %v3677 = vsel %vm2052, %v464, 0
      %v3680 = vsel %vm2052, %v465, 0
      %v3683 = vsel %vm2052, %v466, 0
      %v3686 = vsel %vm2052, %v467, 0
      %v3689 = vsel %vm2052, %v468, 0
      %v3692 = vsel %vm2052, %v469, 0
      %v3695 = vsel %vm2052, %v470, 0
      %v3698 = vsel %vm2052, %v471, 0
      %v3701 = vsel %vm2052, %v472, 0
      %v3704 = vsel %vm2052, %v473, 0
      %v3707 = vsel %vm2052, %v474, 0
      %v3710 = vsel %vm2052, %v475, 0
      %v3713 = vsel %vm2085, %v2234, 0
      %3715 = vmatprep.subr.mxu0 0.0
      %3716 = vmatpush1.msra.mxu0 %v3713
      %3717 = vmatprep.subr.mxu0 0.0
      %3718 = vmatpush1.msra.mxu0 0.0
      %3719 = vmatprep.subr.mxu0 0.0
      %3720 = vmatpush1.msra.mxu0 0.0
      %3721 = vmatprep.subr.mxu0 0.0
      %3722 = vmatpush1.msra.mxu0 0.0
      %3723 = vmatprep.subr.mxu0 0.0
      %3724 = vmatpush1.msra.mxu0 0.0
      %3725 = vmatprep.subr.mxu0 0.0
      %3726 = vmatpush1.msra.mxu0 0.0
      %3727 = vmatprep.subr.mxu0 0.0
      %3728 = vmatpush1.msra.mxu0 0.0
      %3729 = vmatprep.subr.mxu0 0.0
      %3730 = vmatpush1.msra.mxu0 0.0
      %3731 = vmatprep.subr.mxu0 0.0
      %3732 = vmatpush1.msra.mxu0 0.0
      %3733 = vmatprep.subr.mxu0 0.0
      %3734 = vmatpush1.msra.mxu0 0.0
      %3735 = vmatprep.subr.mxu0 0.0
      %3736 = vmatpush1.msra.mxu0 0.0
      %3737 = vmatprep.subr.mxu0 0.0
      %3738 = vmatpush1.msra.mxu0 0.0
      %3739 = vmatprep.subr.mxu0 0.0
      %3740 = vmatpush1.msra.mxu0 0.0
      %3741 = vmatprep.subr.mxu0 0.0
      %3742 = vmatpush1.msra.mxu0 0.0
      %3743 = vmatprep.subr.mxu0 0.0
      %3744 = vmatpush1.msra.mxu0 0.0
      %3745 = vmatprep.subr.mxu0 0.0
      %3746 = vmatpush1.msra.mxu0 0.0
      %3747 = vmatprep.subr.mxu0 0.0
      %3748 = vmatpush1.msra.mxu0 0.0
      %3749 = vmatprep.subr.mxu0 0.0
      %3750 = vmatpush1.msra.mxu0 0.0
      %3751 = vmatprep.subr.mxu0 0.0
      %3752 = vmatpush1.msra.mxu0 0.0
      %3753 = vmatprep.subr.mxu0 0.0
      %3754 = vmatpush1.msra.mxu0 0.0
      %3755 = vmatprep.subr.mxu0 0.0
      %3756 = vmatpush1.msra.mxu0 0.0
      %3757 = vmatprep.subr.mxu0 0.0
      %3758 = vmatpush1.msra.mxu0 0.0
      %3759 = vmatprep.subr.mxu0 0.0
      %3760 = vmatpush1.msra.mxu0 0.0
      %3761 = vmatprep.subr.mxu0 0.0
      %3762 = vmatpush1.msra.mxu0 0.0
      %3763 = vmatprep.subr.mxu0 0.0
      %3764 = vmatpush1.msra.mxu0 0.0
      %3765 = vmatprep.subr.mxu0 0.0
      %3766 = vmatpush1.msra.mxu0 0.0
      %3767 = vmatprep.subr.mxu0 0.0
      %3768 = vmatpush1.msra.mxu0 0.0
      %3769 = vmatprep.subr.mxu0 0.0
      %3770 = vmatpush1.msra.mxu0 0.0
      %3771 = vmatprep.subr.mxu0 0.0
      %3772 = vmatpush1.msra.mxu0 0.0
      %3773 = vmatprep.subr.mxu0 0.0
      %3774 = vmatpush1.msra.mxu0 0.0
      %3775 = vmatprep.subr.mxu0 0.0
      %3776 = vmatpush1.msra.mxu0 0.0
      %3777 = vmatprep.subr.mxu0 0.0
      %3778 = vmatpush1.msra.mxu0 0.0
      %3779 = vmatprep.mubr.f32.mxu0 0.0
      %3780 = vmatmul.mubr.f32.gmra.mrb[0].mxu0 %v3329
      %v3781 = vpop.f32.mrb[0].mxu0
      %v3782 = vadd.f32 %v2690, %v3781
      %v3783 = vpop.f32.mrb[0].mxu0
      %3784 = vmatprep.mubr.f32.mxu0 0.0
      %3785 = vmatmul.mubr.f32.gmra.mrb[0].mxu0 %v3332
      %v3786 = vpop.f32.mrb[0].mxu0
      %v3787 = vadd.f32 %v2695, %v3786
      %v3788 = vpop.f32.mrb[0].mxu0
      %3789 = vmatprep.mubr.f32.mxu0 0.0
      %3790 = vmatmul.mubr.f32.gmra.mrb[0].mxu0 %v3335
      %v3791 = vpop.f32.mrb[0].mxu0
      %v3792 = vadd.f32 %v2700, %v3791
      %v3793 = vpop.f32.mrb[0].mxu0
      %3794 = vmatprep.mubr.f32.mxu0 0.0
      %3795 = vmatmul.mubr.f32.gmra.mrb[0].mxu0 %v3338
      %v3796 = vpop.f32.mrb[0].mxu0
      %v3797 = vadd.f32 %v2705, %v3796
      %v3798 = vpop.f32.mrb[0].mxu0
      %3799 = vmatprep.mubr.f32.mxu0 0.0
      %3800 = vmatmul.mubr.f32.gmra.mrb[0].mxu0 %v3341
      %v3801 = vpop.f32.mrb[0].mxu0
      %v3802 = vadd.f32 %v2710, %v3801
      %v3803 = vpop.f32.mrb[0].mxu0
      %3804 = vmatprep.mubr.f32.mxu0 0.0
      %3805 = vmatmul.mubr.f32.gmra.mrb[0].mxu0 %v3344
      %v3806 = vpop.f32.mrb[0].mxu0
      %v3807 = vadd.f32 %v2715, %v3806
      %v3808 = vpop.f32.mrb[0].mxu0
      %3809 = vmatprep.mubr.f32.mxu0 0.0
      %3810 = vmatmul.mubr.f32.gmra.mrb[0].mxu0 %v3347
      %v3811 = vpop.f32.mrb[0].mxu0
      %v3812 = vadd.f32 %v2720, %v3811
      %v3813 = vpop.f32.mrb[0].mxu0
      %3814 = vmatprep.mubr.f32.mxu0 0.0
      %3815 = vmatmul.mubr.f32.gmra.mrb[0].mxu0 %v3350
      %v3816 = vpop.f32.mrb[0].mxu0
      %v3817 = vadd.f32 %v2725, %v3816
      %v3818 = vpop.f32.mrb[0].mxu0
      %3819 = vmatprep.mubr.f32.mxu0 0.0
      %3820 = vmatmul.mubr.f32.gmra.mrb[0].mxu0 %v3353
      %v3821 = vpop.f32.mrb[0].mxu0
      %v3822 = vadd.f32 %v2730, %v3821
      %v3823 = vpop.f32.mrb[0].mxu0
      %3824 = vmatprep.mubr.f32.mxu0 0.0
      %3825 = vmatmul.mubr.f32.gmra.mrb[0].mxu0 %v3356
      %v3826 = vpop.f32.mrb[0].mxu0
      %v3827 = vadd.f32 %v2735, %v3826
      %v3828 = vpop.f32.mrb[0].mxu0
      %3829 = vmatprep.mubr.f32.mxu0 0.0
      %3830 = vmatmul.mubr.f32.gmra.mrb[0].mxu0 %v3359
      %v3831 = vpop.f32.mrb[0].mxu0
      %v3832 = vadd.f32 %v2740, %v3831
      %v3833 = vpop.f32.mrb[0].mxu0
      %3834 = vmatprep.mubr.f32.mxu0 0.0
      %3835 = vmatmul.mubr.f32.gmra.mrb[0].mxu0 %v3362
      %v3836 = vpop.f32.mrb[0].mxu0
      %v3837 = vadd.f32 %v2745, %v3836
      %v3838 = vpop.f32.mrb[0].mxu0
      %3839 = vmatprep.mubr.f32.mxu0 0.0
      %3840 = vmatmul.mubr.f32.gmra.mrb[0].mxu0 %v3365
      %v3841 = vpop.f32.mrb[0].mxu0
      %v3842 = vadd.f32 %v2750, %v3841
      %v3843 = vpop.f32.mrb[0].mxu0
      %3844 = vmatprep.mubr.f32.mxu0 0.0
      %3845 = vmatmul.mubr.f32.gmra.mrb[0].mxu0 %v3368
      %v3846 = vpop.f32.mrb[0].mxu0
      %v3847 = vadd.f32 %v2755, %v3846
      %v3848 = vpop.f32.mrb[0].mxu0
      %3849 = vmatprep.mubr.f32.mxu0 0.0
      %3850 = vmatmul.mubr.f32.gmra.mrb[0].mxu0 %v3371
      %v3851 = vpop.f32.mrb[0].mxu0
      %v3852 = vadd.f32 %v2760, %v3851
      %v3853 = vpop.f32.mrb[0].mxu0
      %3854 = vmatprep.mubr.f32.mxu0 0.0
      %3855 = vmatmul.mubr.f32.gmra.mrb[0].mxu0 %v3374
      %v3856 = vpop.f32.mrb[0].mxu0
      %v3857 = vadd.f32 %v2765, %v3856
      %v3858 = vpop.f32.mrb[0].mxu0
      %3859 = vmatprep.mubr.f32.mxu0 0.0
      %3860 = vmatmul.mubr.f32.gmra.mrb[0].mxu0 %v3377
      %v3861 = vpop.f32.mrb[0].mxu0
      %v3862 = vadd.f32 %v2770, %v3861
      %v3863 = vpop.f32.mrb[0].mxu0
      %3864 = vmatprep.mubr.f32.mxu0 0.0
      %3865 = vmatmul.mubr.f32.gmra.mrb[0].mxu0 %v3380
      %v3866 = vpop.f32.mrb[0].mxu0
      %v3867 = vadd.f32 %v2775, %v3866
      %v3868 = vpop.f32.mrb[0].mxu0
      %3869 = vmatprep.mubr.f32.mxu0 0.0
      %3870 = vmatmul.mubr.f32.gmra.mrb[0].mxu0 %v3383
      %v3871 = vpop.f32.mrb[0].mxu0
      %v3872 = vadd.f32 %v2780, %v3871
      %v3873 = vpop.f32.mrb[0].mxu0
      %3874 = vmatprep.mubr.f32.mxu0 0.0
      %3875 = vmatmul.mubr.f32.gmra.mrb[0].mxu0 %v3386
      %v3876 = vpop.f32.mrb[0].mxu0
      %v3877 = vadd.f32 %v2785, %v3876
      %v3878 = vpop.f32.mrb[0].mxu0
      %3879 = vmatprep.mubr.f32.mxu0 0.0
      %3880 = vmatmul.mubr.f32.gmra.mrb[0].mxu0 %v3389
      %v3881 = vpop.f32.mrb[0].mxu0
      %v3882 = vadd.f32 %v2790, %v3881
      %v3883 = vpop.f32.mrb[0].mxu0
      %3884 = vmatprep.mubr.f32.mxu0 0.0
      %3885 = vmatmul.mubr.f32.gmra.mrb[0].mxu0 %v3392
      %v3886 = vpop.f32.mrb[0].mxu0
      %v3887 = vadd.f32 %v2795, %v3886
      %v3888 = vpop.f32.mrb[0].mxu0
      %3889 = vmatprep.mubr.f32.mxu0 0.0
      %3890 = vmatmul.mubr.f32.gmra.mrb[0].mxu0 %v3395
      %v3891 = vpop.f32.mrb[0].mxu0
      %v3892 = vadd.f32 %v2800, %v3891
      %v3893 = vpop.f32.mrb[0].mxu0
      %3894 = vmatprep.mubr.f32.mxu0 0.0
      %3895 = vmatmul.mubr.f32.gmra.mrb[0].mxu0 %v3398
      %v3896 = vpop.f32.mrb[0].mxu0
      %v3897 = vadd.f32 %v2805, %v3896
      %v3898 = vpop.f32.mrb[0].mxu0
      %3899 = vmatprep.mubr.f32.mxu0 0.0
      %3900 = vmatmul.mubr.f32.gmra.mrb[0].mxu0 %v3401
      %v3901 = vpop.f32.mrb[0].mxu0
      %v3902 = vadd.f32 %v2810, %v3901
      %v3903 = vpop.f32.mrb[0].mxu0
      %3904 = vmatprep.mubr.f32.mxu0 0.0
      %3905 = vmatmul.mubr.f32.gmra.mrb[0].mxu0 %v3404
      %v3906 = vpop.f32.mrb[0].mxu0
      %v3907 = vadd.f32 %v2815, %v3906
      %v3908 = vpop.f32.mrb[0].mxu0
      %3909 = vmatprep.mubr.f32.mxu0 0.0
      %3910 = vmatmul.mubr.f32.gmra.mrb[0].mxu0 %v3407
      %v3911 = vpop.f32.mrb[0].mxu0
      %v3912 = vadd.f32 %v2820, %v3911
      %v3913 = vpop.f32.mrb[0].mxu0
      %3914 = vmatprep.mubr.f32.mxu0 0.0
      %3915 = vmatmul.mubr.f32.gmra.mrb[0].mxu0 %v3410
      %v3916 = vpop.f32.mrb[0].mxu0
      %v3917 = vadd.f32 %v2825, %v3916
      %v3918 = vpop.f32.mrb[0].mxu0
      %3919 = vmatprep.mubr.f32.mxu0 0.0
      %3920 = vmatmul.mubr.f32.gmra.mrb[0].mxu0 %v3413
      %v3921 = vpop.f32.mrb[0].mxu0
      %v3922 = vadd.f32 %v2830, %v3921
      %v3923 = vpop.f32.mrb[0].mxu0
      %3924 = vmatprep.mubr.f32.mxu0 0.0
      %3925 = vmatmul.mubr.f32.gmra.mrb[0].mxu0 %v3416
      %v3926 = vpop.f32.mrb[0].mxu0
      %v3927 = vadd.f32 %v2835, %v3926
      %v3928 = vpop.f32.mrb[0].mxu0
      %3929 = vmatprep.mubr.f32.mxu0 0.0
      %3930 = vmatmul.mubr.f32.gmra.mrb[0].mxu0 %v3419
      %v3931 = vpop.f32.mrb[0].mxu0
      %v3932 = vadd.f32 %v2840, %v3931
      %v3933 = vpop.f32.mrb[0].mxu0
      %3934 = vmatprep.mubr.f32.mxu0 0.0
      %3935 = vmatmul.mubr.f32.gmra.mrb[0].mxu0 %v3422
      %v3936 = vpop.f32.mrb[0].mxu0
      %v3937 = vadd.f32 %v2845, %v3936
      %v3938 = vpop.f32.mrb[0].mxu0
      %3939 = vmatprep.mubr.f32.mxu0 0.0
      %3940 = vmatmul.mubr.f32.gmra.mrb[0].mxu0 %v3425
      %v3941 = vpop.f32.mrb[0].mxu0
      %v3942 = vadd.f32 %v2850, %v3941
      %v3943 = vpop.f32.mrb[0].mxu0
      %3944 = vmatprep.mubr.f32.mxu0 0.0
      %3945 = vmatmul.mubr.f32.gmra.mrb[0].mxu0 %v3428
      %v3946 = vpop.f32.mrb[0].mxu0
      %v3947 = vadd.f32 %v2855, %v3946
      %v3948 = vpop.f32.mrb[0].mxu0
      %3949 = vmatprep.mubr.f32.mxu0 0.0
      %3950 = vmatmul.mubr.f32.gmra.mrb[0].mxu0 %v3431
      %v3951 = vpop.f32.mrb[0].mxu0
      %v3952 = vadd.f32 %v2860, %v3951
      %v3953 = vpop.f32.mrb[0].mxu0
      %3954 = vmatprep.mubr.f32.mxu0 0.0
      %3955 = vmatmul.mubr.f32.gmra.mrb[0].mxu0 %v3434
      %v3956 = vpop.f32.mrb[0].mxu0
      %v3957 = vadd.f32 %v2865, %v3956
      %v3958 = vpop.f32.mrb[0].mxu0
      %3959 = vmatprep.mubr.f32.mxu0 0.0
      %3960 = vmatmul.mubr.f32.gmra.mrb[0].mxu0 %v3437
      %v3961 = vpop.f32.mrb[0].mxu0
      %v3962 = vadd.f32 %v2870, %v3961
      %v3963 = vpop.f32.mrb[0].mxu0
      %3964 = vmatprep.mubr.f32.mxu0 0.0
      %3965 = vmatmul.mubr.f32.gmra.mrb[0].mxu0 %v3440
      %v3966 = vpop.f32.mrb[0].mxu0
      %v3967 = vadd.f32 %v2875, %v3966
      %v3968 = vpop.f32.mrb[0].mxu0
      %3969 = vmatprep.mubr.f32.mxu0 0.0
      %3970 = vmatmul.mubr.f32.gmra.mrb[0].mxu0 %v3443
      %v3971 = vpop.f32.mrb[0].mxu0
      %v3972 = vadd.f32 %v2880, %v3971
      %v3973 = vpop.f32.mrb[0].mxu0
      %3974 = vmatprep.mubr.f32.mxu0 0.0
      %3975 = vmatmul.mubr.f32.gmra.mrb[0].mxu0 %v3446
      %v3976 = vpop.f32.mrb[0].mxu0
      %v3977 = vadd.f32 %v2885, %v3976
      %v3978 = vpop.f32.mrb[0].mxu0
      %3979 = vmatprep.mubr.f32.mxu0 0.0
      %3980 = vmatmul.mubr.f32.gmra.mrb[0].mxu0 %v3449
      %v3981 = vpop.f32.mrb[0].mxu0
      %v3982 = vadd.f32 %v2890, %v3981
      %v3983 = vpop.f32.mrb[0].mxu0
      %3984 = vmatprep.mubr.f32.mxu0 0.0
      %3985 = vmatmul.mubr.f32.gmra.mrb[0].mxu0 %v3452
      %v3986 = vpop.f32.mrb[0].mxu0
      %v3987 = vadd.f32 %v2895, %v3986
      %v3988 = vpop.f32.mrb[0].mxu0
      %3989 = vmatprep.mubr.f32.mxu0 0.0
      %3990 = vmatmul.mubr.f32.gmra.mrb[0].mxu0 %v3455
      %v3991 = vpop.f32.mrb[0].mxu0
      %v3992 = vadd.f32 %v2900, %v3991
      %v3993 = vpop.f32.mrb[0].mxu0
      %3994 = vmatprep.mubr.f32.mxu0 0.0
      %3995 = vmatmul.mubr.f32.gmra.mrb[0].mxu0 %v3458
      %v3996 = vpop.f32.mrb[0].mxu0
      %v3997 = vadd.f32 %v2905, %v3996
      %v3998 = vpop.f32.mrb[0].mxu0
      %3999 = vmatprep.mubr.f32.mxu0 0.0
      %4000 = vmatmul.mubr.f32.gmra.mrb[0].mxu0 %v3461
      %v4001 = vpop.f32.mrb[0].mxu0
      %v4002 = vadd.f32 %v2910, %v4001
      %v4003 = vpop.f32.mrb[0].mxu0
      %4004 = vmatprep.mubr.f32.mxu0 0.0
      %4005 = vmatmul.mubr.f32.gmra.mrb[0].mxu0 %v3464
      %v4006 = vpop.f32.mrb[0].mxu0
      %v4007 = vadd.f32 %v2915, %v4006
      %v4008 = vpop.f32.mrb[0].mxu0
      %4009 = vmatprep.mubr.f32.mxu0 0.0
      %4010 = vmatmul.mubr.f32.gmra.mrb[0].mxu0 %v3467
      %v4011 = vpop.f32.mrb[0].mxu0
      %v4012 = vadd.f32 %v2920, %v4011
      %v4013 = vpop.f32.mrb[0].mxu0
      %4014 = vmatprep.mubr.f32.mxu0 0.0
      %4015 = vmatmul.mubr.f32.gmra.mrb[0].mxu0 %v3470
      %v4016 = vpop.f32.mrb[0].mxu0
      %v4017 = vadd.f32 %v2925, %v4016
      %v4018 = vpop.f32.mrb[0].mxu0
      %4019 = vmatprep.mubr.f32.mxu0 0.0
      %4020 = vmatmul.mubr.f32.gmra.mrb[0].mxu0 %v3473
      %v4021 = vpop.f32.mrb[0].mxu0
      %v4022 = vadd.f32 %v2930, %v4021
      %v4023 = vpop.f32.mrb[0].mxu0
      %4024 = vmatprep.mubr.f32.mxu0 0.0
      %4025 = vmatmul.mubr.f32.gmra.mrb[0].mxu0 %v3476
      %v4026 = vpop.f32.mrb[0].mxu0
      %v4027 = vadd.f32 %v2935, %v4026
      %v4028 = vpop.f32.mrb[0].mxu0
      %4029 = vmatprep.mubr.f32.mxu0 0.0
      %4030 = vmatmul.mubr.f32.gmra.mrb[0].mxu0 %v3479
      %v4031 = vpop.f32.mrb[0].mxu0
      %v4032 = vadd.f32 %v2940, %v4031
      %v4033 = vpop.f32.mrb[0].mxu0
      %4034 = vmatprep.mubr.f32.mxu0 0.0
      %4035 = vmatmul.mubr.f32.gmra.mrb[0].mxu0 %v3482
      %v4036 = vpop.f32.mrb[0].mxu0
      %v4037 = vadd.f32 %v2945, %v4036
      %v4038 = vpop.f32.mrb[0].mxu0
      %4039 = vmatprep.mubr.f32.mxu0 0.0
      %4040 = vmatmul.mubr.f32.gmra.mrb[0].mxu0 %v3485
      %v4041 = vpop.f32.mrb[0].mxu0
      %v4042 = vadd.f32 %v2950, %v4041
      %v4043 = vpop.f32.mrb[0].mxu0
      %4044 = vmatprep.mubr.f32.mxu0 0.0
      %4045 = vmatmul.mubr.f32.gmra.mrb[0].mxu0 %v3488
      %v4046 = vpop.f32.mrb[0].mxu0
      %v4047 = vadd.f32 %v2955, %v4046
      %v4048 = vpop.f32.mrb[0].mxu0
      %4049 = vmatprep.mubr.f32.mxu0 0.0
      %4050 = vmatmul.mubr.f32.gmra.mrb[0].mxu0 %v3491
      %v4051 = vpop.f32.mrb[0].mxu0
      %v4052 = vadd.f32 %v2960, %v4051
      %v4053 = vpop.f32.mrb[0].mxu0
      %4054 = vmatprep.mubr.f32.mxu0 0.0
      %4055 = vmatmul.mubr.f32.gmra.mrb[0].mxu0 %v3494
      %v4056 = vpop.f32.mrb[0].mxu0
      %v4057 = vadd.f32 %v2965, %v4056
      %v4058 = vpop.f32.mrb[0].mxu0
      %4059 = vmatprep.mubr.f32.mxu0 0.0
      %4060 = vmatmul.mubr.f32.gmra.mrb[0].mxu0 %v3497
      %v4061 = vpop.f32.mrb[0].mxu0
      %v4062 = vadd.f32 %v2970, %v4061
      %v4063 = vpop.f32.mrb[0].mxu0
      %4064 = vmatprep.mubr.f32.mxu0 0.0
      %4065 = vmatmul.mubr.f32.gmra.mrb[0].mxu0 %v3500
      %v4066 = vpop.f32.mrb[0].mxu0
      %v4067 = vadd.f32 %v2975, %v4066
      %v4068 = vpop.f32.mrb[0].mxu0
      %4069 = vmatprep.mubr.f32.mxu0 0.0
      %4070 = vmatmul.mubr.f32.gmra.mrb[0].mxu0 %v3503
      %v4071 = vpop.f32.mrb[0].mxu0
      %v4072 = vadd.f32 %v2980, %v4071
      %v4073 = vpop.f32.mrb[0].mxu0
      %4074 = vmatprep.mubr.f32.mxu0 0.0
      %4075 = vmatmul.mubr.f32.gmra.mrb[0].mxu0 %v3506
      %v4076 = vpop.f32.mrb[0].mxu0
      %v4077 = vadd.f32 %v2985, %v4076
      %v4078 = vpop.f32.mrb[0].mxu0
      %4079 = vmatprep.mubr.f32.mxu0 0.0
      %4080 = vmatmul.mubr.f32.gmra.mrb[0].mxu0 %v3509
      %v4081 = vpop.f32.mrb[0].mxu0
      %v4082 = vadd.f32 %v2990, %v4081
      %v4083 = vpop.f32.mrb[0].mxu0
      %4084 = vmatprep.mubr.f32.mxu0 0.0
      %4085 = vmatmul.mubr.f32.gmra.mrb[0].mxu0 %v3512
      %v4086 = vpop.f32.mrb[0].mxu0
      %v4087 = vadd.f32 %v2995, %v4086
      %v4088 = vpop.f32.mrb[0].mxu0
      %4089 = vmatprep.mubr.f32.mxu0 0.0
      %4090 = vmatmul.mubr.f32.gmra.mrb[0].mxu0 %v3515
      %v4091 = vpop.f32.mrb[0].mxu0
      %v4092 = vadd.f32 %v3000, %v4091
      %v4093 = vpop.f32.mrb[0].mxu0
      %4094 = vmatprep.mubr.f32.mxu0 0.0
      %4095 = vmatmul.mubr.f32.gmra.mrb[0].mxu0 %v3518
      %v4096 = vpop.f32.mrb[0].mxu0
      %v4097 = vadd.f32 %v3005, %v4096
      %v4098 = vpop.f32.mrb[0].mxu0
      %4099 = vmatprep.mubr.f32.mxu0 0.0
      %4100 = vmatmul.mubr.f32.gmra.mrb[0].mxu0 %v3521
      %v4101 = vpop.f32.mrb[0].mxu0
      %v4102 = vadd.f32 %v3010, %v4101
      %v4103 = vpop.f32.mrb[0].mxu0
      %4104 = vmatprep.mubr.f32.mxu0 0.0
      %4105 = vmatmul.mubr.f32.gmra.mrb[0].mxu0 %v3524
      %v4106 = vpop.f32.mrb[0].mxu0
      %v4107 = vadd.f32 %v3015, %v4106
      %v4108 = vpop.f32.mrb[0].mxu0
      %4109 = vmatprep.mubr.f32.mxu0 0.0
      %4110 = vmatmul.mubr.f32.gmra.mrb[0].mxu0 %v3527
      %v4111 = vpop.f32.mrb[0].mxu0
      %v4112 = vadd.f32 %v3020, %v4111
      %v4113 = vpop.f32.mrb[0].mxu0
      %4114 = vmatprep.mubr.f32.mxu0 0.0
      %4115 = vmatmul.mubr.f32.gmra.mrb[0].mxu0 %v3530
      %v4116 = vpop.f32.mrb[0].mxu0
      %v4117 = vadd.f32 %v3025, %v4116
      %v4118 = vpop.f32.mrb[0].mxu0
      %4119 = vmatprep.mubr.f32.mxu0 0.0
      %4120 = vmatmul.mubr.f32.gmra.mrb[0].mxu0 %v3533
      %v4121 = vpop.f32.mrb[0].mxu0
      %v4122 = vadd.f32 %v3030, %v4121
      %v4123 = vpop.f32.mrb[0].mxu0
      %4124 = vmatprep.mubr.f32.mxu0 0.0
      %4125 = vmatmul.mubr.f32.gmra.mrb[0].mxu0 %v3536
      %v4126 = vpop.f32.mrb[0].mxu0
      %v4127 = vadd.f32 %v3035, %v4126
      %v4128 = vpop.f32.mrb[0].mxu0
      %4129 = vmatprep.mubr.f32.mxu0 0.0
      %4130 = vmatmul.mubr.f32.gmra.mrb[0].mxu0 %v3539
      %v4131 = vpop.f32.mrb[0].mxu0
      %v4132 = vadd.f32 %v3040, %v4131
      %v4133 = vpop.f32.mrb[0].mxu0
      %4134 = vmatprep.mubr.f32.mxu0 0.0
      %4135 = vmatmul.mubr.f32.gmra.mrb[0].mxu0 %v3542
      %v4136 = vpop.f32.mrb[0].mxu0
      %v4137 = vadd.f32 %v3045, %v4136
      %v4138 = vpop.f32.mrb[0].mxu0
      %4139 = vmatprep.mubr.f32.mxu0 0.0
      %4140 = vmatmul.mubr.f32.gmra.mrb[0].mxu0 %v3545
      %v4141 = vpop.f32.mrb[0].mxu0
      %v4142 = vadd.f32 %v3050, %v4141
      %v4143 = vpop.f32.mrb[0].mxu0
      %4144 = vmatprep.mubr.f32.mxu0 0.0
      %4145 = vmatmul.mubr.f32.gmra.mrb[0].mxu0 %v3548
      %v4146 = vpop.f32.mrb[0].mxu0
      %v4147 = vadd.f32 %v3055, %v4146
      %v4148 = vpop.f32.mrb[0].mxu0
      %4149 = vmatprep.mubr.f32.mxu0 0.0
      %4150 = vmatmul.mubr.f32.gmra.mrb[0].mxu0 %v3551
      %v4151 = vpop.f32.mrb[0].mxu0
      %v4152 = vadd.f32 %v3060, %v4151
      %v4153 = vpop.f32.mrb[0].mxu0
      %4154 = vmatprep.mubr.f32.mxu0 0.0
      %4155 = vmatmul.mubr.f32.gmra.mrb[0].mxu0 %v3554
      %v4156 = vpop.f32.mrb[0].mxu0
      %v4157 = vadd.f32 %v3065, %v4156
      %v4158 = vpop.f32.mrb[0].mxu0
      %4159 = vmatprep.mubr.f32.mxu0 0.0
      %4160 = vmatmul.mubr.f32.gmra.mrb[0].mxu0 %v3557
      %v4161 = vpop.f32.mrb[0].mxu0
      %v4162 = vadd.f32 %v3070, %v4161
      %v4163 = vpop.f32.mrb[0].mxu0
      %4164 = vmatprep.mubr.f32.mxu0 0.0
      %4165 = vmatmul.mubr.f32.gmra.mrb[0].mxu0 %v3560
      %v4166 = vpop.f32.mrb[0].mxu0
      %v4167 = vadd.f32 %v3075, %v4166
      %v4168 = vpop.f32.mrb[0].mxu0
      %4169 = vmatprep.mubr.f32.mxu0 0.0
      %4170 = vmatmul.mubr.f32.gmra.mrb[0].mxu0 %v3563
      %v4171 = vpop.f32.mrb[0].mxu0
      %v4172 = vadd.f32 %v3080, %v4171
      %v4173 = vpop.f32.mrb[0].mxu0
      %4174 = vmatprep.mubr.f32.mxu0 0.0
      %4175 = vmatmul.mubr.f32.gmra.mrb[0].mxu0 %v3566
      %v4176 = vpop.f32.mrb[0].mxu0
      %v4177 = vadd.f32 %v3085, %v4176
      %v4178 = vpop.f32.mrb[0].mxu0
      %4179 = vmatprep.mubr.f32.mxu0 0.0
      %4180 = vmatmul.mubr.f32.gmra.mrb[0].mxu0 %v3569
      %v4181 = vpop.f32.mrb[0].mxu0
      %v4182 = vadd.f32 %v3090, %v4181
      %v4183 = vpop.f32.mrb[0].mxu0
      %4184 = vmatprep.mubr.f32.mxu0 0.0
      %4185 = vmatmul.mubr.f32.gmra.mrb[0].mxu0 %v3572
      %v4186 = vpop.f32.mrb[0].mxu0
      %v4187 = vadd.f32 %v3095, %v4186
      %v4188 = vpop.f32.mrb[0].mxu0
      %4189 = vmatprep.mubr.f32.mxu0 0.0
      %4190 = vmatmul.mubr.f32.gmra.mrb[0].mxu0 %v3575
      %v4191 = vpop.f32.mrb[0].mxu0
      %v4192 = vadd.f32 %v3100, %v4191
      %v4193 = vpop.f32.mrb[0].mxu0
      %4194 = vmatprep.mubr.f32.mxu0 0.0
      %4195 = vmatmul.mubr.f32.gmra.mrb[0].mxu0 %v3578
      %v4196 = vpop.f32.mrb[0].mxu0
      %v4197 = vadd.f32 %v3105, %v4196
      %v4198 = vpop.f32.mrb[0].mxu0
      %4199 = vmatprep.mubr.f32.mxu0 0.0
      %4200 = vmatmul.mubr.f32.gmra.mrb[0].mxu0 %v3581
      %v4201 = vpop.f32.mrb[0].mxu0
      %v4202 = vadd.f32 %v3110, %v4201
      %v4203 = vpop.f32.mrb[0].mxu0
      %4204 = vmatprep.mubr.f32.mxu0 0.0
      %4205 = vmatmul.mubr.f32.gmra.mrb[0].mxu0 %v3584
      %v4206 = vpop.f32.mrb[0].mxu0
      %v4207 = vadd.f32 %v3115, %v4206
      %v4208 = vpop.f32.mrb[0].mxu0
      %4209 = vmatprep.mubr.f32.mxu0 0.0
      %4210 = vmatmul.mubr.f32.gmra.mrb[0].mxu0 %v3587
      %v4211 = vpop.f32.mrb[0].mxu0
      %v4212 = vadd.f32 %v3120, %v4211
      %v4213 = vpop.f32.mrb[0].mxu0
      %4214 = vmatprep.mubr.f32.mxu0 0.0
      %4215 = vmatmul.mubr.f32.gmra.mrb[0].mxu0 %v3590
      %v4216 = vpop.f32.mrb[0].mxu0
      %v4217 = vadd.f32 %v3125, %v4216
      %v4218 = vpop.f32.mrb[0].mxu0
      %4219 = vmatprep.mubr.f32.mxu0 0.0
      %4220 = vmatmul.mubr.f32.gmra.mrb[0].mxu0 %v3593
      %v4221 = vpop.f32.mrb[0].mxu0
      %v4222 = vadd.f32 %v3130, %v4221
      %v4223 = vpop.f32.mrb[0].mxu0
      %4224 = vmatprep.mubr.f32.mxu0 0.0
      %4225 = vmatmul.mubr.f32.gmra.mrb[0].mxu0 %v3596
      %v4226 = vpop.f32.mrb[0].mxu0
      %v4227 = vadd.f32 %v3135, %v4226
      %v4228 = vpop.f32.mrb[0].mxu0
      %4229 = vmatprep.mubr.f32.mxu0 0.0
      %4230 = vmatmul.mubr.f32.gmra.mrb[0].mxu0 %v3599
      %v4231 = vpop.f32.mrb[0].mxu0
      %v4232 = vadd.f32 %v3140, %v4231
      %v4233 = vpop.f32.mrb[0].mxu0
      %4234 = vmatprep.mubr.f32.mxu0 0.0
      %4235 = vmatmul.mubr.f32.gmra.mrb[0].mxu0 %v3602
      %v4236 = vpop.f32.mrb[0].mxu0
      %v4237 = vadd.f32 %v3145, %v4236
      %v4238 = vpop.f32.mrb[0].mxu0
      %4239 = vmatprep.mubr.f32.mxu0 0.0
      %4240 = vmatmul.mubr.f32.gmra.mrb[0].mxu0 %v3605
      %v4241 = vpop.f32.mrb[0].mxu0
      %v4242 = vadd.f32 %v3150, %v4241
      %v4243 = vpop.f32.mrb[0].mxu0
      %4244 = vmatprep.mubr.f32.mxu0 0.0
      %4245 = vmatmul.mubr.f32.gmra.mrb[0].mxu0 %v3608
      %v4246 = vpop.f32.mrb[0].mxu0
      %v4247 = vadd.f32 %v3155, %v4246
      %v4248 = vpop.f32.mrb[0].mxu0
      %4249 = vmatprep.mubr.f32.mxu0 0.0
      %4250 = vmatmul.mubr.f32.gmra.mrb[0].mxu0 %v3611
      %v4251 = vpop.f32.mrb[0].mxu0
      %v4252 = vadd.f32 %v3160, %v4251
      %v4253 = vpop.f32.mrb[0].mxu0
      %4254 = vmatprep.mubr.f32.mxu0 0.0
      %4255 = vmatmul.mubr.f32.gmra.mrb[0].mxu0 %v3614
      %v4256 = vpop.f32.mrb[0].mxu0
      %v4257 = vadd.f32 %v3165, %v4256
      %v4258 = vpop.f32.mrb[0].mxu0
      %4259 = vmatprep.mubr.f32.mxu0 0.0
      %4260 = vmatmul.mubr.f32.gmra.mrb[0].mxu0 %v3617
      %v4261 = vpop.f32.mrb[0].mxu0
      %v4262 = vadd.f32 %v3170, %v4261
      %v4263 = vpop.f32.mrb[0].mxu0
      %4264 = vmatprep.mubr.f32.mxu0 0.0
      %4265 = vmatmul.mubr.f32.gmra.mrb[0].mxu0 %v3620
      %v4266 = vpop.f32.mrb[0].mxu0
      %v4267 = vadd.f32 %v3175, %v4266
      %v4268 = vpop.f32.mrb[0].mxu0
      %4269 = vmatprep.mubr.f32.mxu0 0.0
      %4270 = vmatmul.mubr.f32.gmra.mrb[0].mxu0 %v3623
      %v4271 = vpop.f32.mrb[0].mxu0
      %v4272 = vadd.f32 %v3180, %v4271
      %v4273 = vpop.f32.mrb[0].mxu0
      %4274 = vmatprep.mubr.f32.mxu0 0.0
      %4275 = vmatmul.mubr.f32.gmra.mrb[0].mxu0 %v3626
      %v4276 = vpop.f32.mrb[0].mxu0
      %v4277 = vadd.f32 %v3185, %v4276
      %v4278 = vpop.f32.mrb[0].mxu0
      %4279 = vmatprep.mubr.f32.mxu0 0.0
      %4280 = vmatmul.mubr.f32.gmra.mrb[0].mxu0 %v3629
      %v4281 = vpop.f32.mrb[0].mxu0
      %v4282 = vadd.f32 %v3190, %v4281
      %v4283 = vpop.f32.mrb[0].mxu0
      %4284 = vmatprep.mubr.f32.mxu0 0.0
      %4285 = vmatmul.mubr.f32.gmra.mrb[0].mxu0 %v3632
      %v4286 = vpop.f32.mrb[0].mxu0
      %v4287 = vadd.f32 %v3195, %v4286
      %v4288 = vpop.f32.mrb[0].mxu0
      %4289 = vmatprep.mubr.f32.mxu0 0.0
      %4290 = vmatmul.mubr.f32.gmra.mrb[0].mxu0 %v3635
      %v4291 = vpop.f32.mrb[0].mxu0
      %v4292 = vadd.f32 %v3200, %v4291
      %v4293 = vpop.f32.mrb[0].mxu0
      %4294 = vmatprep.mubr.f32.mxu0 0.0
      %4295 = vmatmul.mubr.f32.gmra.mrb[0].mxu0 %v3638
      %v4296 = vpop.f32.mrb[0].mxu0
      %v4297 = vadd.f32 %v3205, %v4296
      %v4298 = vpop.f32.mrb[0].mxu0
      %4299 = vmatprep.mubr.f32.mxu0 0.0
      %4300 = vmatmul.mubr.f32.gmra.mrb[0].mxu0 %v3641
      %v4301 = vpop.f32.mrb[0].mxu0
      %v4302 = vadd.f32 %v3210, %v4301
      %v4303 = vpop.f32.mrb[0].mxu0
      %4304 = vmatprep.mubr.f32.mxu0 0.0
      %4305 = vmatmul.mubr.f32.gmra.mrb[0].mxu0 %v3644
      %v4306 = vpop.f32.mrb[0].mxu0
      %v4307 = vadd.f32 %v3215, %v4306
      %v4308 = vpop.f32.mrb[0].mxu0
      %4309 = vmatprep.mubr.f32.mxu0 0.0
      %4310 = vmatmul.mubr.f32.gmra.mrb[0].mxu0 %v3647
      %v4311 = vpop.f32.mrb[0].mxu0
      %v4312 = vadd.f32 %v3220, %v4311
      %v4313 = vpop.f32.mrb[0].mxu0
      %4314 = vmatprep.mubr.f32.mxu0 0.0
      %4315 = vmatmul.mubr.f32.gmra.mrb[0].mxu0 %v3650
      %v4316 = vpop.f32.mrb[0].mxu0
      %v4317 = vadd.f32 %v3225, %v4316
      %v4318 = vpop.f32.mrb[0].mxu0
      %4319 = vmatprep.mubr.f32.mxu0 0.0
      %4320 = vmatmul.mubr.f32.gmra.mrb[0].mxu0 %v3653
      %v4321 = vpop.f32.mrb[0].mxu0
      %v4322 = vadd.f32 %v3230, %v4321
      %v4323 = vpop.f32.mrb[0].mxu0
      %4324 = vmatprep.mubr.f32.mxu0 0.0
      %4325 = vmatmul.mubr.f32.gmra.mrb[0].mxu0 %v3656
      %v4326 = vpop.f32.mrb[0].mxu0
      %v4327 = vadd.f32 %v3235, %v4326
      %v4328 = vpop.f32.mrb[0].mxu0
      %4329 = vmatprep.mubr.f32.mxu0 0.0
      %4330 = vmatmul.mubr.f32.gmra.mrb[0].mxu0 %v3659
      %v4331 = vpop.f32.mrb[0].mxu0
      %v4332 = vadd.f32 %v3240, %v4331
      %v4333 = vpop.f32.mrb[0].mxu0
      %4334 = vmatprep.mubr.f32.mxu0 0.0
      %4335 = vmatmul.mubr.f32.gmra.mrb[0].mxu0 %v3662
      %v4336 = vpop.f32.mrb[0].mxu0
      %v4337 = vadd.f32 %v3245, %v4336
      %v4338 = vpop.f32.mrb[0].mxu0
      %4339 = vmatprep.mubr.f32.mxu0 0.0
      %4340 = vmatmul.mubr.f32.gmra.mrb[0].mxu0 %v3665
      %v4341 = vpop.f32.mrb[0].mxu0
      %v4342 = vadd.f32 %v3250, %v4341
      %v4343 = vpop.f32.mrb[0].mxu0
      %4344 = vmatprep.mubr.f32.mxu0 0.0
      %4345 = vmatmul.mubr.f32.gmra.mrb[0].mxu0 %v3668
      %v4346 = vpop.f32.mrb[0].mxu0
      %v4347 = vadd.f32 %v3255, %v4346
      %v4348 = vpop.f32.mrb[0].mxu0
      %4349 = vmatprep.mubr.f32.mxu0 0.0
      %4350 = vmatmul.mubr.f32.gmra.mrb[0].mxu0 %v3671
      %v4351 = vpop.f32.mrb[0].mxu0
      %v4352 = vadd.f32 %v3260, %v4351
      %v4353 = vpop.f32.mrb[0].mxu0
      %4354 = vmatprep.mubr.f32.mxu0 0.0
      %4355 = vmatmul.mubr.f32.gmra.mrb[0].mxu0 %v3674
      %v4356 = vpop.f32.mrb[0].mxu0
      %v4357 = vadd.f32 %v3265, %v4356
      %v4358 = vpop.f32.mrb[0].mxu0
      %4359 = vmatprep.mubr.f32.mxu0 0.0
      %4360 = vmatmul.mubr.f32.gmra.mrb[0].mxu0 %v3677
      %v4361 = vpop.f32.mrb[0].mxu0
      %v4362 = vadd.f32 %v3270, %v4361
      %v4363 = vpop.f32.mrb[0].mxu0
      %4364 = vmatprep.mubr.f32.mxu0 0.0
      %4365 = vmatmul.mubr.f32.gmra.mrb[0].mxu0 %v3680
      %v4366 = vpop.f32.mrb[0].mxu0
      %v4367 = vadd.f32 %v3275, %v4366
      %v4368 = vpop.f32.mrb[0].mxu0
      %4369 = vmatprep.mubr.f32.mxu0 0.0
      %4370 = vmatmul.mubr.f32.gmra.mrb[0].mxu0 %v3683
      %v4371 = vpop.f32.mrb[0].mxu0
      %v4372 = vadd.f32 %v3280, %v4371
      %v4373 = vpop.f32.mrb[0].mxu0
      %4374 = vmatprep.mubr.f32.mxu0 0.0
      %4375 = vmatmul.mubr.f32.gmra.mrb[0].mxu0 %v3686
      %v4376 = vpop.f32.mrb[0].mxu0
      %v4377 = vadd.f32 %v3285, %v4376
      %v4378 = vpop.f32.mrb[0].mxu0
      %4379 = vmatprep.mubr.f32.mxu0 0.0
      %4380 = vmatmul.mubr.f32.gmra.mrb[0].mxu0 %v3689
      %v4381 = vpop.f32.mrb[0].mxu0
      %v4382 = vadd.f32 %v3290, %v4381
      %v4383 = vpop.f32.mrb[0].mxu0
      %4384 = vmatprep.mubr.f32.mxu0 0.0
      %4385 = vmatmul.mubr.f32.gmra.mrb[0].mxu0 %v3692
      %v4386 = vpop.f32.mrb[0].mxu0
      %v4387 = vadd.f32 %v3295, %v4386
      %v4388 = vpop.f32.mrb[0].mxu0
      %4389 = vmatprep.mubr.f32.mxu0 0.0
      %4390 = vmatmul.mubr.f32.gmra.mrb[0].mxu0 %v3695
      %v4391 = vpop.f32.mrb[0].mxu0
      %v4392 = vadd.f32 %v3300, %v4391
      %v4393 = vpop.f32.mrb[0].mxu0
      %4394 = vmatprep.mubr.f32.mxu0 0.0
      %4395 = vmatmul.mubr.f32.gmra.mrb[0].mxu0 %v3698
      %v4396 = vpop.f32.mrb[0].mxu0
      %v4397 = vadd.f32 %v3305, %v4396
      %v4398 = vpop.f32.mrb[0].mxu0
      %4399 = vmatprep.mubr.f32.mxu0 0.0
      %4400 = vmatmul.mubr.f32.gmra.mrb[0].mxu0 %v3701
      %v4401 = vpop.f32.mrb[0].mxu0
      %v4402 = vadd.f32 %v3310, %v4401
      %v4403 = vpop.f32.mrb[0].mxu0
      %4404 = vmatprep.mubr.f32.mxu0 0.0
      %4405 = vmatmul.mubr.f32.gmra.mrb[0].mxu0 %v3704
      %v4406 = vpop.f32.mrb[0].mxu0
      %v4407 = vadd.f32 %v3315, %v4406
      %v4408 = vpop.f32.mrb[0].mxu0
      %4409 = vmatprep.mubr.f32.mxu0 0.0
      %4410 = vmatmul.mubr.f32.gmra.mrb[0].mxu0 %v3707
      %v4411 = vpop.f32.mrb[0].mxu0
      %v4412 = vadd.f32 %v3320, %v4411
      %v4413 = vpop.f32.mrb[0].mxu0
      %4414 = vmatprep.mubr.f32.mxu0 0.0
      %4415 = vmatmul.mubr.f32.gmra.mrb[0].mxu0 %v3710
      %v4416 = vpop.f32.mrb[0].mxu0
      %v4417 = vadd.f32 %v3325, %v4416
      %v4418 = vpop.f32.mrb[0].mxu0
      %4419 = vdwg.mxu0
      %v4436 = vcombine.high %v2156, %v2156
      %v4438 = vunpack.c.l.s4 1966171168
      %v4439 = vunpack.c.0.s8 %v4438
      %v4440 = vlaneseq
      %v4441 = vshrl.u32 %v4440, 7
      %v4442 = vsub.s32 %v4439, %v4441
      %v4443 = vrot.slane %v2156, %v4442
      %v4445 = vunpack.c.l.s4 1966171168
      %v4446 = vunpack.c.0.s8 %v4445
      %v4447 = vlaneseq
      %v4448 = vshrl.u32 %v4447, 7
      %v4449 = vsub.s32 %v4446, %v4448
      %v4450 = vrot.slane %v4436, %v4449
      %v4451 = vcombine.high %v4443, %v4443
      %v4452 = vcombine.high %v4450, %v4450
      %v4454 = vunpack.c.l.s4 1966171168
      %v4455 = vunpack.c.0.s8 %v4454
      %v4456 = vlaneseq
      %v4457 = vshrl.u32 %v4456, 7
      %v4458 = vsub.s32 %v4455, %v4457
      %v4459 = vrot.slane %v4443, %v4458
      %v4461 = vunpack.c.l.s4 1966171168
      %v4462 = vunpack.c.0.s8 %v4461
      %v4463 = vlaneseq
      %v4464 = vshrl.u32 %v4463, 7
      %v4465 = vsub.s32 %v4462, %v4464
      %v4466 = vrot.slane %v4450, %v4465
      %v4468 = vunpack.c.l.s4 1966171168
      %v4469 = vunpack.c.0.s8 %v4468
      %v4470 = vlaneseq
      %v4471 = vshrl.u32 %v4470, 7
      %v4472 = vsub.s32 %v4469, %v4471
      %v4473 = vrot.slane %v4451, %v4472
      %v4475 = vunpack.c.l.s4 1966171168
      %v4476 = vunpack.c.0.s8 %v4475
      %v4477 = vlaneseq
      %v4478 = vshrl.u32 %v4477, 7
      %v4479 = vsub.s32 %v4476, %v4478
      %v4480 = vrot.slane %v4452, %v4479
      %v4481 = vcombine.high %v4459, %v4459
      %v4482 = vcombine.high %v4466, %v4466
      %v4483 = vcombine.high %v4473, %v4473
      %v4484 = vcombine.high %v4480, %v4480
      %v4485 = vcombine.high %v2161, %v2161
      %v4487 = vunpack.c.l.s4 1966171168
      %v4488 = vunpack.c.0.s8 %v4487
      %v4489 = vlaneseq
      %v4490 = vshrl.u32 %v4489, 7
      %v4491 = vsub.s32 %v4488, %v4490
      %v4492 = vrot.slane %v2161, %v4491
      %v4494 = vunpack.c.l.s4 1966171168
      %v4495 = vunpack.c.0.s8 %v4494
      %v4496 = vlaneseq
      %v4497 = vshrl.u32 %v4496, 7
      %v4498 = vsub.s32 %v4495, %v4497
      %v4499 = vrot.slane %v4485, %v4498
      %v4500 = vcombine.high %v4492, %v4492
      %v4501 = vcombine.high %v4499, %v4499
      %v4503 = vunpack.c.l.s4 1966171168
      %v4504 = vunpack.c.0.s8 %v4503
      %v4505 = vlaneseq
      %v4506 = vshrl.u32 %v4505, 7
      %v4507 = vsub.s32 %v4504, %v4506
      %v4508 = vrot.slane %v4492, %v4507
      %v4510 = vunpack.c.l.s4 1966171168
      %v4511 = vunpack.c.0.s8 %v4510
      %v4512 = vlaneseq
      %v4513 = vshrl.u32 %v4512, 7
      %v4514 = vsub.s32 %v4511, %v4513
      %v4515 = vrot.slane %v4499, %v4514
      %v4517 = vunpack.c.l.s4 1966171168
      %v4518 = vunpack.c.0.s8 %v4517
      %v4519 = vlaneseq
      %v4520 = vshrl.u32 %v4519, 7
      %v4521 = vsub.s32 %v4518, %v4520
      %v4522 = vrot.slane %v4500, %v4521
      %v4524 = vunpack.c.l.s4 1966171168
      %v4525 = vunpack.c.0.s8 %v4524
      %v4526 = vlaneseq
      %v4527 = vshrl.u32 %v4526, 7
      %v4528 = vsub.s32 %v4525, %v4527
      %v4529 = vrot.slane %v4501, %v4528
      %v4530 = vcombine.high %v4508, %v4508
      %v4531 = vcombine.high %v4515, %v4515
      %v4532 = vcombine.high %v4522, %v4522
      %v4533 = vcombine.high %v4529, %v4529
      %v4534 = vcombine.high %v2166, %v2166
      %v4536 = vunpack.c.l.s4 1966171168
      %v4537 = vunpack.c.0.s8 %v4536
      %v4538 = vlaneseq
      %v4539 = vshrl.u32 %v4538, 7
      %v4540 = vsub.s32 %v4537, %v4539
      %v4541 = vrot.slane %v2166, %v4540
      %v4543 = vunpack.c.l.s4 1966171168
      %v4544 = vunpack.c.0.s8 %v4543
      %v4545 = vlaneseq
      %v4546 = vshrl.u32 %v4545, 7
      %v4547 = vsub.s32 %v4544, %v4546
      %v4548 = vrot.slane %v4534, %v4547
      %v4549 = vcombine.high %v4541, %v4541
      %v4550 = vcombine.high %v4548, %v4548
      %v4552 = vunpack.c.l.s4 1966171168
      %v4553 = vunpack.c.0.s8 %v4552
      %v4554 = vlaneseq
      %v4555 = vshrl.u32 %v4554, 7
      %v4556 = vsub.s32 %v4553, %v4555
      %v4557 = vrot.slane %v4541, %v4556
      %v4559 = vunpack.c.l.s4 1966171168
      %v4560 = vunpack.c.0.s8 %v4559
      %v4561 = vlaneseq
      %v4562 = vshrl.u32 %v4561, 7
      %v4563 = vsub.s32 %v4560, %v4562
      %v4564 = vrot.slane %v4548, %v4563
      %v4566 = vunpack.c.l.s4 1966171168
      %v4567 = vunpack.c.0.s8 %v4566
      %v4568 = vlaneseq
      %v4569 = vshrl.u32 %v4568, 7
      %v4570 = vsub.s32 %v4567, %v4569
      %v4571 = vrot.slane %v4549, %v4570
      %v4573 = vunpack.c.l.s4 1966171168
      %v4574 = vunpack.c.0.s8 %v4573
      %v4575 = vlaneseq
      %v4576 = vshrl.u32 %v4575, 7
      %v4577 = vsub.s32 %v4574, %v4576
      %v4578 = vrot.slane %v4550, %v4577
      %v4579 = vcombine.high %v4557, %v4557
      %v4580 = vcombine.high %v4564, %v4564
      %v4581 = vcombine.high %v4571, %v4571
      %v4582 = vcombine.high %v4578, %v4578
      %v4583 = vcombine.high %v2171, %v2171
      %v4585 = vunpack.c.l.s4 1966171168
      %v4586 = vunpack.c.0.s8 %v4585
      %v4587 = vlaneseq
      %v4588 = vshrl.u32 %v4587, 7
      %v4589 = vsub.s32 %v4586, %v4588
      %v4590 = vrot.slane %v2171, %v4589
      %v4592 = vunpack.c.l.s4 1966171168
      %v4593 = vunpack.c.0.s8 %v4592
      %v4594 = vlaneseq
      %v4595 = vshrl.u32 %v4594, 7
      %v4596 = vsub.s32 %v4593, %v4595
      %v4597 = vrot.slane %v4583, %v4596
      %v4598 = vcombine.high %v4590, %v4590
      %v4599 = vcombine.high %v4597, %v4597
      %v4601 = vunpack.c.l.s4 1966171168
      %v4602 = vunpack.c.0.s8 %v4601
      %v4603 = vlaneseq
      %v4604 = vshrl.u32 %v4603, 7
      %v4605 = vsub.s32 %v4602, %v4604
      %v4606 = vrot.slane %v4590, %v4605
      %v4608 = vunpack.c.l.s4 1966171168
      %v4609 = vunpack.c.0.s8 %v4608
      %v4610 = vlaneseq
      %v4611 = vshrl.u32 %v4610, 7
      %v4612 = vsub.s32 %v4609, %v4611
      %v4613 = vrot.slane %v4597, %v4612
      %v4615 = vunpack.c.l.s4 1966171168
      %v4616 = vunpack.c.0.s8 %v4615
      %v4617 = vlaneseq
      %v4618 = vshrl.u32 %v4617, 7
      %v4619 = vsub.s32 %v4616, %v4618
      %v4620 = vrot.slane %v4598, %v4619
      %v4622 = vunpack.c.l.s4 1966171168
      %v4623 = vunpack.c.0.s8 %v4622
      %v4624 = vlaneseq
      %v4625 = vshrl.u32 %v4624, 7
      %v4626 = vsub.s32 %v4623, %v4625
      %v4627 = vrot.slane %v4599, %v4626
      %v4628 = vcombine.high %v4606, %v4606
      %v4629 = vcombine.high %v4613, %v4613
      %v4630 = vcombine.high %v4620, %v4620
      %v4631 = vcombine.high %v4627, %v4627
      %v4632 = vcombine.high %v2176, %v2176
      %v4634 = vunpack.c.l.s4 1966171168
      %v4635 = vunpack.c.0.s8 %v4634
      %v4636 = vlaneseq
      %v4637 = vshrl.u32 %v4636, 7
      %v4638 = vsub.s32 %v4635, %v4637
      %v4639 = vrot.slane %v2176, %v4638
      %v4641 = vunpack.c.l.s4 1966171168
      %v4642 = vunpack.c.0.s8 %v4641
      %v4643 = vlaneseq
      %v4644 = vshrl.u32 %v4643, 7
      %v4645 = vsub.s32 %v4642, %v4644
      %v4646 = vrot.slane %v4632, %v4645
      %v4647 = vcombine.high %v4639, %v4639
      %v4648 = vcombine.high %v4646, %v4646
      %v4650 = vunpack.c.l.s4 1966171168
      %v4651 = vunpack.c.0.s8 %v4650
      %v4652 = vlaneseq
      %v4653 = vshrl.u32 %v4652, 7
      %v4654 = vsub.s32 %v4651, %v4653
      %v4655 = vrot.slane %v4639, %v4654
      %v4657 = vunpack.c.l.s4 1966171168
      %v4658 = vunpack.c.0.s8 %v4657
      %v4659 = vlaneseq
      %v4660 = vshrl.u32 %v4659, 7
      %v4661 = vsub.s32 %v4658, %v4660
      %v4662 = vrot.slane %v4646, %v4661
      %v4664 = vunpack.c.l.s4 1966171168
      %v4665 = vunpack.c.0.s8 %v4664
      %v4666 = vlaneseq
      %v4667 = vshrl.u32 %v4666, 7
      %v4668 = vsub.s32 %v4665, %v4667
      %v4669 = vrot.slane %v4647, %v4668
      %v4671 = vunpack.c.l.s4 1966171168
      %v4672 = vunpack.c.0.s8 %v4671
      %v4673 = vlaneseq
      %v4674 = vshrl.u32 %v4673, 7
      %v4675 = vsub.s32 %v4672, %v4674
      %v4676 = vrot.slane %v4648, %v4675
      %v4677 = vcombine.high %v4655, %v4655
      %v4678 = vcombine.high %v4662, %v4662
      %v4679 = vcombine.high %v4669, %v4669
      %v4680 = vcombine.high %v4676, %v4676
      %v4681 = vcombine.high %v2181, %v2181
      %v4683 = vunpack.c.l.s4 1966171168
      %v4684 = vunpack.c.0.s8 %v4683
      %v4685 = vlaneseq
      %v4686 = vshrl.u32 %v4685, 7
      %v4687 = vsub.s32 %v4684, %v4686
      %v4688 = vrot.slane %v2181, %v4687
      %v4690 = vunpack.c.l.s4 1966171168
      %v4691 = vunpack.c.0.s8 %v4690
      %v4692 = vlaneseq
      %v4693 = vshrl.u32 %v4692, 7
      %v4694 = vsub.s32 %v4691, %v4693
      %v4695 = vrot.slane %v4681, %v4694
      %v4696 = vcombine.high %v4688, %v4688
      %v4697 = vcombine.high %v4695, %v4695
      %v4699 = vunpack.c.l.s4 1966171168
      %v4700 = vunpack.c.0.s8 %v4699
      %v4701 = vlaneseq
      %v4702 = vshrl.u32 %v4701, 7
      %v4703 = vsub.s32 %v4700, %v4702
      %v4704 = vrot.slane %v4688, %v4703
      %v4706 = vunpack.c.l.s4 1966171168
      %v4707 = vunpack.c.0.s8 %v4706
      %v4708 = vlaneseq
      %v4709 = vshrl.u32 %v4708, 7
      %v4710 = vsub.s32 %v4707, %v4709
      %v4711 = vrot.slane %v4695, %v4710
      %v4713 = vunpack.c.l.s4 1966171168
      %v4714 = vunpack.c.0.s8 %v4713
      %v4715 = vlaneseq
      %v4716 = vshrl.u32 %v4715, 7
      %v4717 = vsub.s32 %v4714, %v4716
      %v4718 = vrot.slane %v4696, %v4717
      %v4720 = vunpack.c.l.s4 1966171168
      %v4721 = vunpack.c.0.s8 %v4720
      %v4722 = vlaneseq
      %v4723 = vshrl.u32 %v4722, 7
      %v4724 = vsub.s32 %v4721, %v4723
      %v4725 = vrot.slane %v4697, %v4724
      %v4726 = vcombine.high %v4704, %v4704
      %v4727 = vcombine.high %v4711, %v4711
      %v4728 = vcombine.high %v4718, %v4718
      %v4729 = vcombine.high %v4725, %v4725
      %v4730 = vcombine.high %v2186, %v2186
      %v4732 = vunpack.c.l.s4 1966171168
      %v4733 = vunpack.c.0.s8 %v4732
      %v4734 = vlaneseq
      %v4735 = vshrl.u32 %v4734, 7
      %v4736 = vsub.s32 %v4733, %v4735
      %v4737 = vrot.slane %v2186, %v4736
      %v4739 = vunpack.c.l.s4 1966171168
      %v4740 = vunpack.c.0.s8 %v4739
      %v4741 = vlaneseq
      %v4742 = vshrl.u32 %v4741, 7
      %v4743 = vsub.s32 %v4740, %v4742
      %v4744 = vrot.slane %v4730, %v4743
      %v4745 = vcombine.high %v4737, %v4737
      %v4746 = vcombine.high %v4744, %v4744
      %v4748 = vunpack.c.l.s4 1966171168
      %v4749 = vunpack.c.0.s8 %v4748
      %v4750 = vlaneseq
      %v4751 = vshrl.u32 %v4750, 7
      %v4752 = vsub.s32 %v4749, %v4751
      %v4753 = vrot.slane %v4737, %v4752
      %v4755 = vunpack.c.l.s4 1966171168
      %v4756 = vunpack.c.0.s8 %v4755
      %v4757 = vlaneseq
      %v4758 = vshrl.u32 %v4757, 7
      %v4759 = vsub.s32 %v4756, %v4758
      %v4760 = vrot.slane %v4744, %v4759
      %v4762 = vunpack.c.l.s4 1966171168
      %v4763 = vunpack.c.0.s8 %v4762
      %v4764 = vlaneseq
      %v4765 = vshrl.u32 %v4764, 7
      %v4766 = vsub.s32 %v4763, %v4765
      %v4767 = vrot.slane %v4745, %v4766
      %v4769 = vunpack.c.l.s4 1966171168
      %v4770 = vunpack.c.0.s8 %v4769
      %v4771 = vlaneseq
      %v4772 = vshrl.u32 %v4771, 7
      %v4773 = vsub.s32 %v4770, %v4772
      %v4774 = vrot.slane %v4746, %v4773
      %v4775 = vcombine.high %v4753, %v4753
      %v4776 = vcombine.high %v4760, %v4760
      %v4777 = vcombine.high %v4767, %v4767
      %v4778 = vcombine.high %v4774, %v4774
      %v4779 = vcombine.high %v2191, %v2191
      %v4781 = vunpack.c.l.s4 1966171168
      %v4782 = vunpack.c.0.s8 %v4781
      %v4783 = vlaneseq
      %v4784 = vshrl.u32 %v4783, 7
      %v4785 = vsub.s32 %v4782, %v4784
      %v4786 = vrot.slane %v2191, %v4785
      %v4788 = vunpack.c.l.s4 1966171168
      %v4789 = vunpack.c.0.s8 %v4788
      %v4790 = vlaneseq
      %v4791 = vshrl.u32 %v4790, 7
      %v4792 = vsub.s32 %v4789, %v4791
      %v4793 = vrot.slane %v4779, %v4792
      %v4794 = vcombine.high %v4786, %v4786
      %v4795 = vcombine.high %v4793, %v4793
      %v4797 = vunpack.c.l.s4 1966171168
      %v4798 = vunpack.c.0.s8 %v4797
      %v4799 = vlaneseq
      %v4800 = vshrl.u32 %v4799, 7
      %v4801 = vsub.s32 %v4798, %v4800
      %v4802 = vrot.slane %v4786, %v4801
      %v4804 = vunpack.c.l.s4 1966171168
      %v4805 = vunpack.c.0.s8 %v4804
      %v4806 = vlaneseq
      %v4807 = vshrl.u32 %v4806, 7
      %v4808 = vsub.s32 %v4805, %v4807
      %v4809 = vrot.slane %v4793, %v4808
      %v4811 = vunpack.c.l.s4 1966171168
      %v4812 = vunpack.c.0.s8 %v4811
      %v4813 = vlaneseq
      %v4814 = vshrl.u32 %v4813, 7
      %v4815 = vsub.s32 %v4812, %v4814
      %v4816 = vrot.slane %v4794, %v4815
      %v4818 = vunpack.c.l.s4 1966171168
      %v4819 = vunpack.c.0.s8 %v4818
      %v4820 = vlaneseq
      %v4821 = vshrl.u32 %v4820, 7
      %v4822 = vsub.s32 %v4819, %v4821
      %v4823 = vrot.slane %v4795, %v4822
      %v4824 = vcombine.high %v4802, %v4802
      %v4825 = vcombine.high %v4809, %v4809
      %v4826 = vcombine.high %v4816, %v4816
      %v4827 = vcombine.high %v4823, %v4823
      %v4828 = vcombine.high %v2196, %v2196
      %v4830 = vunpack.c.l.s4 1966171168
      %v4831 = vunpack.c.0.s8 %v4830
      %v4832 = vlaneseq
      %v4833 = vshrl.u32 %v4832, 7
      %v4834 = vsub.s32 %v4831, %v4833
      %v4835 = vrot.slane %v2196, %v4834
      %v4837 = vunpack.c.l.s4 1966171168
      %v4838 = vunpack.c.0.s8 %v4837
      %v4839 = vlaneseq
      %v4840 = vshrl.u32 %v4839, 7
      %v4841 = vsub.s32 %v4838, %v4840
      %v4842 = vrot.slane %v4828, %v4841
      %v4843 = vcombine.high %v4835, %v4835
      %v4844 = vcombine.high %v4842, %v4842
      %v4846 = vunpack.c.l.s4 1966171168
      %v4847 = vunpack.c.0.s8 %v4846
      %v4848 = vlaneseq
      %v4849 = vshrl.u32 %v4848, 7
      %v4850 = vsub.s32 %v4847, %v4849
      %v4851 = vrot.slane %v4835, %v4850
      %v4853 = vunpack.c.l.s4 1966171168
      %v4854 = vunpack.c.0.s8 %v4853
      %v4855 = vlaneseq
      %v4856 = vshrl.u32 %v4855, 7
      %v4857 = vsub.s32 %v4854, %v4856
      %v4858 = vrot.slane %v4842, %v4857
      %v4860 = vunpack.c.l.s4 1966171168
      %v4861 = vunpack.c.0.s8 %v4860
      %v4862 = vlaneseq
      %v4863 = vshrl.u32 %v4862, 7
      %v4864 = vsub.s32 %v4861, %v4863
      %v4865 = vrot.slane %v4843, %v4864
      %v4867 = vunpack.c.l.s4 1966171168
      %v4868 = vunpack.c.0.s8 %v4867
      %v4869 = vlaneseq
      %v4870 = vshrl.u32 %v4869, 7
      %v4871 = vsub.s32 %v4868, %v4870
      %v4872 = vrot.slane %v4844, %v4871
      %v4873 = vcombine.high %v4851, %v4851
      %v4874 = vcombine.high %v4858, %v4858
      %v4875 = vcombine.high %v4865, %v4865
      %v4876 = vcombine.high %v4872, %v4872
      %v4877 = vcombine.high %v2201, %v2201
      %v4879 = vunpack.c.l.s4 1966171168
      %v4880 = vunpack.c.0.s8 %v4879
      %v4881 = vlaneseq
      %v4882 = vshrl.u32 %v4881, 7
      %v4883 = vsub.s32 %v4880, %v4882
      %v4884 = vrot.slane %v2201, %v4883
      %v4886 = vunpack.c.l.s4 1966171168
      %v4887 = vunpack.c.0.s8 %v4886
      %v4888 = vlaneseq
      %v4889 = vshrl.u32 %v4888, 7
      %v4890 = vsub.s32 %v4887, %v4889
      %v4891 = vrot.slane %v4877, %v4890
      %v4892 = vcombine.high %v4884, %v4884
      %v4893 = vcombine.high %v4891, %v4891
      %v4895 = vunpack.c.l.s4 1966171168
      %v4896 = vunpack.c.0.s8 %v4895
      %v4897 = vlaneseq
      %v4898 = vshrl.u32 %v4897, 7
      %v4899 = vsub.s32 %v4896, %v4898
      %v4900 = vrot.slane %v4884, %v4899
      %v4902 = vunpack.c.l.s4 1966171168
      %v4903 = vunpack.c.0.s8 %v4902
      %v4904 = vlaneseq
      %v4905 = vshrl.u32 %v4904, 7
      %v4906 = vsub.s32 %v4903, %v4905
      %v4907 = vrot.slane %v4891, %v4906
      %v4909 = vunpack.c.l.s4 1966171168
      %v4910 = vunpack.c.0.s8 %v4909
      %v4911 = vlaneseq
      %v4912 = vshrl.u32 %v4911, 7
      %v4913 = vsub.s32 %v4910, %v4912
      %v4914 = vrot.slane %v4892, %v4913
      %v4916 = vunpack.c.l.s4 1966171168
      %v4917 = vunpack.c.0.s8 %v4916
      %v4918 = vlaneseq
      %v4919 = vshrl.u32 %v4918, 7
      %v4920 = vsub.s32 %v4917, %v4919
      %v4921 = vrot.slane %v4893, %v4920
      %v4922 = vcombine.high %v4900, %v4900
      %v4923 = vcombine.high %v4907, %v4907
      %v4924 = vcombine.high %v4914, %v4914
      %v4925 = vcombine.high %v4921, %v4921
      %v4926 = vcombine.high %v2206, %v2206
      %v4928 = vunpack.c.l.s4 1966171168
      %v4929 = vunpack.c.0.s8 %v4928
      %v4930 = vlaneseq
      %v4931 = vshrl.u32 %v4930, 7
      %v4932 = vsub.s32 %v4929, %v4931
      %v4933 = vrot.slane %v2206, %v4932
      %v4935 = vunpack.c.l.s4 1966171168
      %v4936 = vunpack.c.0.s8 %v4935
      %v4937 = vlaneseq
      %v4938 = vshrl.u32 %v4937, 7
      %v4939 = vsub.s32 %v4936, %v4938
      %v4940 = vrot.slane %v4926, %v4939
      %v4941 = vcombine.high %v4933, %v4933
      %v4942 = vcombine.high %v4940, %v4940
      %v4944 = vunpack.c.l.s4 1966171168
      %v4945 = vunpack.c.0.s8 %v4944
      %v4946 = vlaneseq
      %v4947 = vshrl.u32 %v4946, 7
      %v4948 = vsub.s32 %v4945, %v4947
      %v4949 = vrot.slane %v4933, %v4948
      %v4951 = vunpack.c.l.s4 1966171168
      %v4952 = vunpack.c.0.s8 %v4951
      %v4953 = vlaneseq
      %v4954 = vshrl.u32 %v4953, 7
      %v4955 = vsub.s32 %v4952, %v4954
      %v4956 = vrot.slane %v4940, %v4955
      %v4958 = vunpack.c.l.s4 1966171168
      %v4959 = vunpack.c.0.s8 %v4958
      %v4960 = vlaneseq
      %v4961 = vshrl.u32 %v4960, 7
      %v4962 = vsub.s32 %v4959, %v4961
      %v4963 = vrot.slane %v4941, %v4962
      %v4965 = vunpack.c.l.s4 1966171168
      %v4966 = vunpack.c.0.s8 %v4965
      %v4967 = vlaneseq
      %v4968 = vshrl.u32 %v4967, 7
      %v4969 = vsub.s32 %v4966, %v4968
      %v4970 = vrot.slane %v4942, %v4969
      %v4971 = vcombine.high %v4949, %v4949
      %v4972 = vcombine.high %v4956, %v4956
      %v4973 = vcombine.high %v4963, %v4963
      %v4974 = vcombine.high %v4970, %v4970
      %v4975 = vcombine.high %v2211, %v2211
      %v4977 = vunpack.c.l.s4 1966171168
      %v4978 = vunpack.c.0.s8 %v4977
      %v4979 = vlaneseq
      %v4980 = vshrl.u32 %v4979, 7
      %v4981 = vsub.s32 %v4978, %v4980
      %v4982 = vrot.slane %v2211, %v4981
      %v4984 = vunpack.c.l.s4 1966171168
      %v4985 = vunpack.c.0.s8 %v4984
      %v4986 = vlaneseq
      %v4987 = vshrl.u32 %v4986, 7
      %v4988 = vsub.s32 %v4985, %v4987
      %v4989 = vrot.slane %v4975, %v4988
      %v4990 = vcombine.high %v4982, %v4982
      %v4991 = vcombine.high %v4989, %v4989
      %v4993 = vunpack.c.l.s4 1966171168
      %v4994 = vunpack.c.0.s8 %v4993
      %v4995 = vlaneseq
      %v4996 = vshrl.u32 %v4995, 7
      %v4997 = vsub.s32 %v4994, %v4996
      %v4998 = vrot.slane %v4982, %v4997
      %v5000 = vunpack.c.l.s4 1966171168
      %v5001 = vunpack.c.0.s8 %v5000
      %v5002 = vlaneseq
      %v5003 = vshrl.u32 %v5002, 7
      %v5004 = vsub.s32 %v5001, %v5003
      %v5005 = vrot.slane %v4989, %v5004
      %v5007 = vunpack.c.l.s4 1966171168
      %v5008 = vunpack.c.0.s8 %v5007
      %v5009 = vlaneseq
      %v5010 = vshrl.u32 %v5009, 7
      %v5011 = vsub.s32 %v5008, %v5010
      %v5012 = vrot.slane %v4990, %v5011
      %v5014 = vunpack.c.l.s4 1966171168
      %v5015 = vunpack.c.0.s8 %v5014
      %v5016 = vlaneseq
      %v5017 = vshrl.u32 %v5016, 7
      %v5018 = vsub.s32 %v5015, %v5017
      %v5019 = vrot.slane %v4991, %v5018
      %v5020 = vcombine.high %v4998, %v4998
      %v5021 = vcombine.high %v5005, %v5005
      %v5022 = vcombine.high %v5012, %v5012
      %v5023 = vcombine.high %v5019, %v5019
      %v5024 = vcombine.high %v2216, %v2216
      %v5026 = vunpack.c.l.s4 1966171168
      %v5027 = vunpack.c.0.s8 %v5026
      %v5028 = vlaneseq
      %v5029 = vshrl.u32 %v5028, 7
      %v5030 = vsub.s32 %v5027, %v5029
      %v5031 = vrot.slane %v2216, %v5030
      %v5033 = vunpack.c.l.s4 1966171168
      %v5034 = vunpack.c.0.s8 %v5033
      %v5035 = vlaneseq
      %v5036 = vshrl.u32 %v5035, 7
      %v5037 = vsub.s32 %v5034, %v5036
      %v5038 = vrot.slane %v5024, %v5037
      %v5039 = vcombine.high %v5031, %v5031
      %v5040 = vcombine.high %v5038, %v5038
      %v5042 = vunpack.c.l.s4 1966171168
      %v5043 = vunpack.c.0.s8 %v5042
      %v5044 = vlaneseq
      %v5045 = vshrl.u32 %v5044, 7
      %v5046 = vsub.s32 %v5043, %v5045
      %v5047 = vrot.slane %v5031, %v5046
      %v5049 = vunpack.c.l.s4 1966171168
      %v5050 = vunpack.c.0.s8 %v5049
      %v5051 = vlaneseq
      %v5052 = vshrl.u32 %v5051, 7
      %v5053 = vsub.s32 %v5050, %v5052
      %v5054 = vrot.slane %v5038, %v5053
      %v5056 = vunpack.c.l.s4 1966171168
      %v5057 = vunpack.c.0.s8 %v5056
      %v5058 = vlaneseq
      %v5059 = vshrl.u32 %v5058, 7
      %v5060 = vsub.s32 %v5057, %v5059
      %v5061 = vrot.slane %v5039, %v5060
      %v5063 = vunpack.c.l.s4 1966171168
      %v5064 = vunpack.c.0.s8 %v5063
      %v5065 = vlaneseq
      %v5066 = vshrl.u32 %v5065, 7
      %v5067 = vsub.s32 %v5064, %v5066
      %v5068 = vrot.slane %v5040, %v5067
      %v5069 = vcombine.high %v5047, %v5047
      %v5070 = vcombine.high %v5054, %v5054
      %v5071 = vcombine.high %v5061, %v5061
      %v5072 = vcombine.high %v5068, %v5068
      %v5073 = vcombine.high %v2221, %v2221
      %v5075 = vunpack.c.l.s4 1966171168
      %v5076 = vunpack.c.0.s8 %v5075
      %v5077 = vlaneseq
      %v5078 = vshrl.u32 %v5077, 7
      %v5079 = vsub.s32 %v5076, %v5078
      %v5080 = vrot.slane %v2221, %v5079
      %v5082 = vunpack.c.l.s4 1966171168
      %v5083 = vunpack.c.0.s8 %v5082
      %v5084 = vlaneseq
      %v5085 = vshrl.u32 %v5084, 7
      %v5086 = vsub.s32 %v5083, %v5085
      %v5087 = vrot.slane %v5073, %v5086
      %v5088 = vcombine.high %v5080, %v5080
      %v5089 = vcombine.high %v5087, %v5087
      %v5091 = vunpack.c.l.s4 1966171168
      %v5092 = vunpack.c.0.s8 %v5091
      %v5093 = vlaneseq
      %v5094 = vshrl.u32 %v5093, 7
      %v5095 = vsub.s32 %v5092, %v5094
      %v5096 = vrot.slane %v5080, %v5095
      %v5098 = vunpack.c.l.s4 1966171168
      %v5099 = vunpack.c.0.s8 %v5098
      %v5100 = vlaneseq
      %v5101 = vshrl.u32 %v5100, 7
      %v5102 = vsub.s32 %v5099, %v5101
      %v5103 = vrot.slane %v5087, %v5102
      %v5105 = vunpack.c.l.s4 1966171168
      %v5106 = vunpack.c.0.s8 %v5105
      %v5107 = vlaneseq
      %v5108 = vshrl.u32 %v5107, 7
      %v5109 = vsub.s32 %v5106, %v5108
      %v5110 = vrot.slane %v5088, %v5109
      %v5112 = vunpack.c.l.s4 1966171168
      %v5113 = vunpack.c.0.s8 %v5112
      %v5114 = vlaneseq
      %v5115 = vshrl.u32 %v5114, 7
      %v5116 = vsub.s32 %v5113, %v5115
      %v5117 = vrot.slane %v5089, %v5116
      %v5118 = vcombine.high %v5096, %v5096
      %v5119 = vcombine.high %v5103, %v5103
      %v5120 = vcombine.high %v5110, %v5110
      %v5121 = vcombine.high %v5117, %v5117
      %v5122 = vcombine.high %v2226, %v2226
      %v5124 = vunpack.c.l.s4 1966171168
      %v5125 = vunpack.c.0.s8 %v5124
      %v5126 = vlaneseq
      %v5127 = vshrl.u32 %v5126, 7
      %v5128 = vsub.s32 %v5125, %v5127
      %v5129 = vrot.slane %v2226, %v5128
      %v5131 = vunpack.c.l.s4 1966171168
      %v5132 = vunpack.c.0.s8 %v5131
      %v5133 = vlaneseq
      %v5134 = vshrl.u32 %v5133, 7
      %v5135 = vsub.s32 %v5132, %v5134
      %v5136 = vrot.slane %v5122, %v5135
      %v5137 = vcombine.high %v5129, %v5129
      %v5138 = vcombine.high %v5136, %v5136
      %v5140 = vunpack.c.l.s4 1966171168
      %v5141 = vunpack.c.0.s8 %v5140
      %v5142 = vlaneseq
      %v5143 = vshrl.u32 %v5142, 7
      %v5144 = vsub.s32 %v5141, %v5143
      %v5145 = vrot.slane %v5129, %v5144
      %v5147 = vunpack.c.l.s4 1966171168
      %v5148 = vunpack.c.0.s8 %v5147
      %v5149 = vlaneseq
      %v5150 = vshrl.u32 %v5149, 7
      %v5151 = vsub.s32 %v5148, %v5150
      %v5152 = vrot.slane %v5136, %v5151
      %v5154 = vunpack.c.l.s4 1966171168
      %v5155 = vunpack.c.0.s8 %v5154
      %v5156 = vlaneseq
      %v5157 = vshrl.u32 %v5156, 7
      %v5158 = vsub.s32 %v5155, %v5157
      %v5159 = vrot.slane %v5137, %v5158
      %v5161 = vunpack.c.l.s4 1966171168
      %v5162 = vunpack.c.0.s8 %v5161
      %v5163 = vlaneseq
      %v5164 = vshrl.u32 %v5163, 7
      %v5165 = vsub.s32 %v5162, %v5164
      %v5166 = vrot.slane %v5138, %v5165
      %v5167 = vcombine.high %v5145, %v5145
      %v5168 = vcombine.high %v5152, %v5152
      %v5169 = vcombine.high %v5159, %v5159
      %v5170 = vcombine.high %v5166, %v5166
      %v5171 = vcombine.high %v2231, %v2231
      %v5173 = vunpack.c.l.s4 1966171168
      %v5174 = vunpack.c.0.s8 %v5173
      %v5175 = vlaneseq
      %v5176 = vshrl.u32 %v5175, 7
      %v5177 = vsub.s32 %v5174, %v5176
      %v5178 = vrot.slane %v2231, %v5177
      %v5180 = vunpack.c.l.s4 1966171168
      %v5181 = vunpack.c.0.s8 %v5180
      %v5182 = vlaneseq
      %v5183 = vshrl.u32 %v5182, 7
      %v5184 = vsub.s32 %v5181, %v5183
      %v5185 = vrot.slane %v5171, %v5184
      %v5186 = vcombine.high %v5178, %v5178
      %v5187 = vcombine.high %v5185, %v5185
      %v5189 = vunpack.c.l.s4 1966171168
      %v5190 = vunpack.c.0.s8 %v5189
      %v5191 = vlaneseq
      %v5192 = vshrl.u32 %v5191, 7
      %v5193 = vsub.s32 %v5190, %v5192
      %v5194 = vrot.slane %v5178, %v5193
      %v5196 = vunpack.c.l.s4 1966171168
      %v5197 = vunpack.c.0.s8 %v5196
      %v5198 = vlaneseq
      %v5199 = vshrl.u32 %v5198, 7
      %v5200 = vsub.s32 %v5197, %v5199
      %v5201 = vrot.slane %v5185, %v5200
      %v5203 = vunpack.c.l.s4 1966171168
      %v5204 = vunpack.c.0.s8 %v5203
      %v5205 = vlaneseq
      %v5206 = vshrl.u32 %v5205, 7
      %v5207 = vsub.s32 %v5204, %v5206
      %v5208 = vrot.slane %v5186, %v5207
      %v5210 = vunpack.c.l.s4 1966171168
      %v5211 = vunpack.c.0.s8 %v5210
      %v5212 = vlaneseq
      %v5213 = vshrl.u32 %v5212, 7
      %v5214 = vsub.s32 %v5211, %v5213
      %v5215 = vrot.slane %v5187, %v5214
      %v5216 = vcombine.high %v5194, %v5194
      %v5217 = vcombine.high %v5201, %v5201
      %v5218 = vcombine.high %v5208, %v5208
      %v5219 = vcombine.high %v5215, %v5215
      %v5220 = vlaneseq
      %v5221 = vshrl.u32 %v5220, 7
      %v5222 = vsub.s32 0, %v5221
      %v5223 = vrot.slane %v4459, %v5222
      %v5224 = vlaneseq
      %v5225 = vshrl.u32 %v5224, 7
      %v5226 = vsub.s32 0, %v5225
      %v5227 = vrot.slane %v4473, %v5226
      %v5228 = vlaneseq
      %v5229 = vshrl.u32 %v5228, 7
      %v5230 = vsub.s32 0, %v5229
      %v5231 = vrot.slane %v4481, %v5230
      %v5232 = vlaneseq
      %v5233 = vshrl.u32 %v5232, 7
      %v5234 = vsub.s32 0, %v5233
      %v5235 = vrot.slane %v4483, %v5234
      %v5236 = vlaneseq
      %v5237 = vshrl.u32 %v5236, 7
      %v5238 = vsub.s32 0, %v5237
      %v5239 = vrot.slane %v4466, %v5238
      %v5240 = vlaneseq
      %v5241 = vshrl.u32 %v5240, 7
      %v5242 = vsub.s32 0, %v5241
      %v5243 = vrot.slane %v4480, %v5242
      %v5244 = vlaneseq
      %v5245 = vshrl.u32 %v5244, 7
      %v5246 = vsub.s32 0, %v5245
      %v5247 = vrot.slane %v4482, %v5246
      %v5248 = vlaneseq
      %v5249 = vshrl.u32 %v5248, 7
      %v5250 = vsub.s32 0, %v5249
      %v5251 = vrot.slane %v4484, %v5250
      %v5252 = vlaneseq
      %v5253 = vshrl.u32 %v5252, 7
      %v5254 = vsub.s32 0, %v5253
      %v5255 = vrot.slane %v4508, %v5254
      %v5256 = vlaneseq
      %v5257 = vshrl.u32 %v5256, 7
      %v5258 = vsub.s32 0, %v5257
      %v5259 = vrot.slane %v4522, %v5258
      %v5260 = vlaneseq
      %v5261 = vshrl.u32 %v5260, 7
      %v5262 = vsub.s32 0, %v5261
      %v5263 = vrot.slane %v4530, %v5262
      %v5264 = vlaneseq
      %v5265 = vshrl.u32 %v5264, 7
      %v5266 = vsub.s32 0, %v5265
      %v5267 = vrot.slane %v4532, %v5266
      %v5268 = vlaneseq
      %v5269 = vshrl.u32 %v5268, 7
      %v5270 = vsub.s32 0, %v5269
      %v5271 = vrot.slane %v4515, %v5270
      %v5272 = vlaneseq
      %v5273 = vshrl.u32 %v5272, 7
      %v5274 = vsub.s32 0, %v5273
      %v5275 = vrot.slane %v4529, %v5274
      %v5276 = vlaneseq
      %v5277 = vshrl.u32 %v5276, 7
      %v5278 = vsub.s32 0, %v5277
      %v5279 = vrot.slane %v4531, %v5278
      %v5280 = vlaneseq
      %v5281 = vshrl.u32 %v5280, 7
      %v5282 = vsub.s32 0, %v5281
      %v5283 = vrot.slane %v4533, %v5282
      %v5284 = vlaneseq
      %v5285 = vshrl.u32 %v5284, 7
      %v5286 = vsub.s32 0, %v5285
      %v5287 = vrot.slane %v4557, %v5286
      %v5288 = vlaneseq
      %v5289 = vshrl.u32 %v5288, 7
      %v5290 = vsub.s32 0, %v5289
      %v5291 = vrot.slane %v4571, %v5290
      %v5292 = vlaneseq
      %v5293 = vshrl.u32 %v5292, 7
      %v5294 = vsub.s32 0, %v5293
      %v5295 = vrot.slane %v4579, %v5294
      %v5296 = vlaneseq
      %v5297 = vshrl.u32 %v5296, 7
      %v5298 = vsub.s32 0, %v5297
      %v5299 = vrot.slane %v4581, %v5298
      %v5300 = vlaneseq
      %v5301 = vshrl.u32 %v5300, 7
      %v5302 = vsub.s32 0, %v5301
      %v5303 = vrot.slane %v4564, %v5302
      %v5304 = vlaneseq
      %v5305 = vshrl.u32 %v5304, 7
      %v5306 = vsub.s32 0, %v5305
      %v5307 = vrot.slane %v4578, %v5306
      %v5308 = vlaneseq
      %v5309 = vshrl.u32 %v5308, 7
      %v5310 = vsub.s32 0, %v5309
      %v5311 = vrot.slane %v4580, %v5310
      %v5312 = vlaneseq
      %v5313 = vshrl.u32 %v5312, 7
      %v5314 = vsub.s32 0, %v5313
      %v5315 = vrot.slane %v4582, %v5314
      %v5316 = vlaneseq
      %v5317 = vshrl.u32 %v5316, 7
      %v5318 = vsub.s32 0, %v5317
      %v5319 = vrot.slane %v4606, %v5318
      %v5320 = vlaneseq
      %v5321 = vshrl.u32 %v5320, 7
      %v5322 = vsub.s32 0, %v5321
      %v5323 = vrot.slane %v4620, %v5322
      %v5324 = vlaneseq
      %v5325 = vshrl.u32 %v5324, 7
      %v5326 = vsub.s32 0, %v5325
      %v5327 = vrot.slane %v4628, %v5326
      %v5328 = vlaneseq
      %v5329 = vshrl.u32 %v5328, 7
      %v5330 = vsub.s32 0, %v5329
      %v5331 = vrot.slane %v4630, %v5330
      %v5332 = vlaneseq
      %v5333 = vshrl.u32 %v5332, 7
      %v5334 = vsub.s32 0, %v5333
      %v5335 = vrot.slane %v4613, %v5334
      %v5336 = vlaneseq
      %v5337 = vshrl.u32 %v5336, 7
      %v5338 = vsub.s32 0, %v5337
      %v5339 = vrot.slane %v4627, %v5338
      %v5340 = vlaneseq
      %v5341 = vshrl.u32 %v5340, 7
      %v5342 = vsub.s32 0, %v5341
      %v5343 = vrot.slane %v4629, %v5342
      %v5344 = vlaneseq
      %v5345 = vshrl.u32 %v5344, 7
      %v5346 = vsub.s32 0, %v5345
      %v5347 = vrot.slane %v4631, %v5346
      %v5348 = vlaneseq
      %v5349 = vshrl.u32 %v5348, 7
      %v5350 = vsub.s32 0, %v5349
      %v5351 = vrot.slane %v4655, %v5350
      %v5352 = vlaneseq
      %v5353 = vshrl.u32 %v5352, 7
      %v5354 = vsub.s32 0, %v5353
      %v5355 = vrot.slane %v4669, %v5354
      %v5356 = vlaneseq
      %v5357 = vshrl.u32 %v5356, 7
      %v5358 = vsub.s32 0, %v5357
      %v5359 = vrot.slane %v4677, %v5358
      %v5360 = vlaneseq
      %v5361 = vshrl.u32 %v5360, 7
      %v5362 = vsub.s32 0, %v5361
      %v5363 = vrot.slane %v4679, %v5362
      %v5364 = vlaneseq
      %v5365 = vshrl.u32 %v5364, 7
      %v5366 = vsub.s32 0, %v5365
      %v5367 = vrot.slane %v4662, %v5366
      %v5368 = vlaneseq
      %v5369 = vshrl.u32 %v5368, 7
      %v5370 = vsub.s32 0, %v5369
      %v5371 = vrot.slane %v4676, %v5370
      %v5372 = vlaneseq
      %v5373 = vshrl.u32 %v5372, 7
      %v5374 = vsub.s32 0, %v5373
      %v5375 = vrot.slane %v4678, %v5374
      %v5376 = vlaneseq
      %v5377 = vshrl.u32 %v5376, 7
      %v5378 = vsub.s32 0, %v5377
      %v5379 = vrot.slane %v4680, %v5378
      %v5380 = vlaneseq
      %v5381 = vshrl.u32 %v5380, 7
      %v5382 = vsub.s32 0, %v5381
      %v5383 = vrot.slane %v4704, %v5382
      %v5384 = vlaneseq
      %v5385 = vshrl.u32 %v5384, 7
      %v5386 = vsub.s32 0, %v5385
      %v5387 = vrot.slane %v4718, %v5386
      %v5388 = vlaneseq
      %v5389 = vshrl.u32 %v5388, 7
      %v5390 = vsub.s32 0, %v5389
      %v5391 = vrot.slane %v4726, %v5390
      %v5392 = vlaneseq
      %v5393 = vshrl.u32 %v5392, 7
      %v5394 = vsub.s32 0, %v5393
      %v5395 = vrot.slane %v4728, %v5394
      %v5396 = vlaneseq
      %v5397 = vshrl.u32 %v5396, 7
      %v5398 = vsub.s32 0, %v5397
      %v5399 = vrot.slane %v4711, %v5398
      %v5400 = vlaneseq
      %v5401 = vshrl.u32 %v5400, 7
      %v5402 = vsub.s32 0, %v5401
      %v5403 = vrot.slane %v4725, %v5402
      %v5404 = vlaneseq
      %v5405 = vshrl.u32 %v5404, 7
      %v5406 = vsub.s32 0, %v5405
      %v5407 = vrot.slane %v4727, %v5406
      %v5408 = vlaneseq
      %v5409 = vshrl.u32 %v5408, 7
      %v5410 = vsub.s32 0, %v5409
      %v5411 = vrot.slane %v4729, %v5410
      %v5412 = vlaneseq
      %v5413 = vshrl.u32 %v5412, 7
      %v5414 = vsub.s32 0, %v5413
      %v5415 = vrot.slane %v4753, %v5414
      %v5416 = vlaneseq
      %v5417 = vshrl.u32 %v5416, 7
      %v5418 = vsub.s32 0, %v5417
      %v5419 = vrot.slane %v4767, %v5418
      %v5420 = vlaneseq
      %v5421 = vshrl.u32 %v5420, 7
      %v5422 = vsub.s32 0, %v5421
      %v5423 = vrot.slane %v4775, %v5422
      %v5424 = vlaneseq
      %v5425 = vshrl.u32 %v5424, 7
      %v5426 = vsub.s32 0, %v5425
      %v5427 = vrot.slane %v4777, %v5426
      %v5428 = vlaneseq
      %v5429 = vshrl.u32 %v5428, 7
      %v5430 = vsub.s32 0, %v5429
      %v5431 = vrot.slane %v4760, %v5430
      %v5432 = vlaneseq
      %v5433 = vshrl.u32 %v5432, 7
      %v5434 = vsub.s32 0, %v5433
      %v5435 = vrot.slane %v4774, %v5434
      %v5436 = vlaneseq
      %v5437 = vshrl.u32 %v5436, 7
      %v5438 = vsub.s32 0, %v5437
      %v5439 = vrot.slane %v4776, %v5438
      %v5440 = vlaneseq
      %v5441 = vshrl.u32 %v5440, 7
      %v5442 = vsub.s32 0, %v5441
      %v5443 = vrot.slane %v4778, %v5442
      %v5444 = vlaneseq
      %v5445 = vshrl.u32 %v5444, 7
      %v5446 = vsub.s32 0, %v5445
      %v5447 = vrot.slane %v4802, %v5446
      %v5448 = vlaneseq
      %v5449 = vshrl.u32 %v5448, 7
      %v5450 = vsub.s32 0, %v5449
      %v5451 = vrot.slane %v4816, %v5450
      %v5452 = vlaneseq
      %v5453 = vshrl.u32 %v5452, 7
      %v5454 = vsub.s32 0, %v5453
      %v5455 = vrot.slane %v4824, %v5454
      %v5456 = vlaneseq
      %v5457 = vshrl.u32 %v5456, 7
      %v5458 = vsub.s32 0, %v5457
      %v5459 = vrot.slane %v4826, %v5458
      %v5460 = vlaneseq
      %v5461 = vshrl.u32 %v5460, 7
      %v5462 = vsub.s32 0, %v5461
      %v5463 = vrot.slane %v4809, %v5462
      %v5464 = vlaneseq
      %v5465 = vshrl.u32 %v5464, 7
      %v5466 = vsub.s32 0, %v5465
      %v5467 = vrot.slane %v4823, %v5466
      %v5468 = vlaneseq
      %v5469 = vshrl.u32 %v5468, 7
      %v5470 = vsub.s32 0, %v5469
      %v5471 = vrot.slane %v4825, %v5470
      %v5472 = vlaneseq
      %v5473 = vshrl.u32 %v5472, 7
      %v5474 = vsub.s32 0, %v5473
      %v5475 = vrot.slane %v4827, %v5474
      %v5476 = vlaneseq
      %v5477 = vshrl.u32 %v5476, 7
      %v5478 = vsub.s32 0, %v5477
      %v5479 = vrot.slane %v4851, %v5478
      %v5480 = vlaneseq
      %v5481 = vshrl.u32 %v5480, 7
      %v5482 = vsub.s32 0, %v5481
      %v5483 = vrot.slane %v4865, %v5482
      %v5484 = vlaneseq
      %v5485 = vshrl.u32 %v5484, 7
      %v5486 = vsub.s32 0, %v5485
      %v5487 = vrot.slane %v4873, %v5486
      %v5488 = vlaneseq
      %v5489 = vshrl.u32 %v5488, 7
      %v5490 = vsub.s32 0, %v5489
      %v5491 = vrot.slane %v4875, %v5490
      %v5492 = vlaneseq
      %v5493 = vshrl.u32 %v5492, 7
      %v5494 = vsub.s32 0, %v5493
      %v5495 = vrot.slane %v4858, %v5494
      %v5496 = vlaneseq
      %v5497 = vshrl.u32 %v5496, 7
      %v5498 = vsub.s32 0, %v5497
      %v5499 = vrot.slane %v4872, %v5498
      %v5500 = vlaneseq
      %v5501 = vshrl.u32 %v5500, 7
      %v5502 = vsub.s32 0, %v5501
      %v5503 = vrot.slane %v4874, %v5502
      %v5504 = vlaneseq
      %v5505 = vshrl.u32 %v5504, 7
      %v5506 = vsub.s32 0, %v5505
      %v5507 = vrot.slane %v4876, %v5506
      %v5508 = vlaneseq
      %v5509 = vshrl.u32 %v5508, 7
      %v5510 = vsub.s32 0, %v5509
      %v5511 = vrot.slane %v4900, %v5510
      %v5512 = vlaneseq
      %v5513 = vshrl.u32 %v5512, 7
      %v5514 = vsub.s32 0, %v5513
      %v5515 = vrot.slane %v4914, %v5514
      %v5516 = vlaneseq
      %v5517 = vshrl.u32 %v5516, 7
      %v5518 = vsub.s32 0, %v5517
      %v5519 = vrot.slane %v4922, %v5518
      %v5520 = vlaneseq
      %v5521 = vshrl.u32 %v5520, 7
      %v5522 = vsub.s32 0, %v5521
      %v5523 = vrot.slane %v4924, %v5522
      %v5524 = vlaneseq
      %v5525 = vshrl.u32 %v5524, 7
      %v5526 = vsub.s32 0, %v5525
      %v5527 = vrot.slane %v4907, %v5526
      %v5528 = vlaneseq
      %v5529 = vshrl.u32 %v5528, 7
      %v5530 = vsub.s32 0, %v5529
      %v5531 = vrot.slane %v4921, %v5530
      %v5532 = vlaneseq
      %v5533 = vshrl.u32 %v5532, 7
      %v5534 = vsub.s32 0, %v5533
      %v5535 = vrot.slane %v4923, %v5534
      %v5536 = vlaneseq
      %v5537 = vshrl.u32 %v5536, 7
      %v5538 = vsub.s32 0, %v5537
      %v5539 = vrot.slane %v4925, %v5538
      %v5540 = vlaneseq
      %v5541 = vshrl.u32 %v5540, 7
      %v5542 = vsub.s32 0, %v5541
      %v5543 = vrot.slane %v4949, %v5542
      %v5544 = vlaneseq
      %v5545 = vshrl.u32 %v5544, 7
      %v5546 = vsub.s32 0, %v5545
      %v5547 = vrot.slane %v4963, %v5546
      %v5548 = vlaneseq
      %v5549 = vshrl.u32 %v5548, 7
      %v5550 = vsub.s32 0, %v5549
      %v5551 = vrot.slane %v4971, %v5550
      %v5552 = vlaneseq
      %v5553 = vshrl.u32 %v5552, 7
      %v5554 = vsub.s32 0, %v5553
      %v5555 = vrot.slane %v4973, %v5554
      %v5556 = vlaneseq
      %v5557 = vshrl.u32 %v5556, 7
      %v5558 = vsub.s32 0, %v5557
      %v5559 = vrot.slane %v4956, %v5558
      %v5560 = vlaneseq
      %v5561 = vshrl.u32 %v5560, 7
      %v5562 = vsub.s32 0, %v5561
      %v5563 = vrot.slane %v4970, %v5562
      %v5564 = vlaneseq
      %v5565 = vshrl.u32 %v5564, 7
      %v5566 = vsub.s32 0, %v5565
      %v5567 = vrot.slane %v4972, %v5566
      %v5568 = vlaneseq
      %v5569 = vshrl.u32 %v5568, 7
      %v5570 = vsub.s32 0, %v5569
      %v5571 = vrot.slane %v4974, %v5570
      %v5572 = vlaneseq
      %v5573 = vshrl.u32 %v5572, 7
      %v5574 = vsub.s32 0, %v5573
      %v5575 = vrot.slane %v4998, %v5574
      %v5576 = vlaneseq
      %v5577 = vshrl.u32 %v5576, 7
      %v5578 = vsub.s32 0, %v5577
      %v5579 = vrot.slane %v5012, %v5578
      %v5580 = vlaneseq
      %v5581 = vshrl.u32 %v5580, 7
      %v5582 = vsub.s32 0, %v5581
      %v5583 = vrot.slane %v5020, %v5582
      %v5584 = vlaneseq
      %v5585 = vshrl.u32 %v5584, 7
      %v5586 = vsub.s32 0, %v5585
      %v5587 = vrot.slane %v5022, %v5586
      %v5588 = vlaneseq
      %v5589 = vshrl.u32 %v5588, 7
      %v5590 = vsub.s32 0, %v5589
      %v5591 = vrot.slane %v5005, %v5590
      %v5592 = vlaneseq
      %v5593 = vshrl.u32 %v5592, 7
      %v5594 = vsub.s32 0, %v5593
      %v5595 = vrot.slane %v5019, %v5594
      %v5596 = vlaneseq
      %v5597 = vshrl.u32 %v5596, 7
      %v5598 = vsub.s32 0, %v5597
      %v5599 = vrot.slane %v5021, %v5598
      %v5600 = vlaneseq
      %v5601 = vshrl.u32 %v5600, 7
      %v5602 = vsub.s32 0, %v5601
      %v5603 = vrot.slane %v5023, %v5602
      %v5604 = vlaneseq
      %v5605 = vshrl.u32 %v5604, 7
      %v5606 = vsub.s32 0, %v5605
      %v5607 = vrot.slane %v5047, %v5606
      %v5608 = vlaneseq
      %v5609 = vshrl.u32 %v5608, 7
      %v5610 = vsub.s32 0, %v5609
      %v5611 = vrot.slane %v5061, %v5610
      %v5612 = vlaneseq
      %v5613 = vshrl.u32 %v5612, 7
      %v5614 = vsub.s32 0, %v5613
      %v5615 = vrot.slane %v5069, %v5614
      %v5616 = vlaneseq
      %v5617 = vshrl.u32 %v5616, 7
      %v5618 = vsub.s32 0, %v5617
      %v5619 = vrot.slane %v5071, %v5618
      %v5620 = vlaneseq
      %v5621 = vshrl.u32 %v5620, 7
      %v5622 = vsub.s32 0, %v5621
      %v5623 = vrot.slane %v5054, %v5622
      %v5624 = vlaneseq
      %v5625 = vshrl.u32 %v5624, 7
      %v5626 = vsub.s32 0, %v5625
      %v5627 = vrot.slane %v5068, %v5626
      %v5628 = vlaneseq
      %v5629 = vshrl.u32 %v5628, 7
      %v5630 = vsub.s32 0, %v5629
      %v5631 = vrot.slane %v5070, %v5630
      %v5632 = vlaneseq
      %v5633 = vshrl.u32 %v5632, 7
      %v5634 = vsub.s32 0, %v5633
      %v5635 = vrot.slane %v5072, %v5634
      %v5636 = vlaneseq
      %v5637 = vshrl.u32 %v5636, 7
      %v5638 = vsub.s32 0, %v5637
      %v5639 = vrot.slane %v5096, %v5638
      %v5640 = vlaneseq
      %v5641 = vshrl.u32 %v5640, 7
      %v5642 = vsub.s32 0, %v5641
      %v5643 = vrot.slane %v5110, %v5642
      %v5644 = vlaneseq
      %v5645 = vshrl.u32 %v5644, 7
      %v5646 = vsub.s32 0, %v5645
      %v5647 = vrot.slane %v5118, %v5646
      %v5648 = vlaneseq
      %v5649 = vshrl.u32 %v5648, 7
      %v5650 = vsub.s32 0, %v5649
      %v5651 = vrot.slane %v5120, %v5650
      %v5652 = vlaneseq
      %v5653 = vshrl.u32 %v5652, 7
      %v5654 = vsub.s32 0, %v5653
      %v5655 = vrot.slane %v5103, %v5654
      %v5656 = vlaneseq
      %v5657 = vshrl.u32 %v5656, 7
      %v5658 = vsub.s32 0, %v5657
      %v5659 = vrot.slane %v5117, %v5658
      %v5660 = vlaneseq
      %v5661 = vshrl.u32 %v5660, 7
      %v5662 = vsub.s32 0, %v5661
      %v5663 = vrot.slane %v5119, %v5662
      %v5664 = vlaneseq
      %v5665 = vshrl.u32 %v5664, 7
      %v5666 = vsub.s32 0, %v5665
      %v5667 = vrot.slane %v5121, %v5666
      %v5668 = vlaneseq
      %v5669 = vshrl.u32 %v5668, 7
      %v5670 = vsub.s32 0, %v5669
      %v5671 = vrot.slane %v5145, %v5670
      %v5672 = vlaneseq
      %v5673 = vshrl.u32 %v5672, 7
      %v5674 = vsub.s32 0, %v5673
      %v5675 = vrot.slane %v5159, %v5674
      %v5676 = vlaneseq
      %v5677 = vshrl.u32 %v5676, 7
      %v5678 = vsub.s32 0, %v5677
      %v5679 = vrot.slane %v5167, %v5678
      %v5680 = vlaneseq
      %v5681 = vshrl.u32 %v5680, 7
      %v5682 = vsub.s32 0, %v5681
      %v5683 = vrot.slane %v5169, %v5682
      %v5684 = vlaneseq
      %v5685 = vshrl.u32 %v5684, 7
      %v5686 = vsub.s32 0, %v5685
      %v5687 = vrot.slane %v5152, %v5686
      %v5688 = vlaneseq
      %v5689 = vshrl.u32 %v5688, 7
      %v5690 = vsub.s32 0, %v5689
      %v5691 = vrot.slane %v5166, %v5690
      %v5692 = vlaneseq
      %v5693 = vshrl.u32 %v5692, 7
      %v5694 = vsub.s32 0, %v5693
      %v5695 = vrot.slane %v5168, %v5694
      %v5696 = vlaneseq
      %v5697 = vshrl.u32 %v5696, 7
      %v5698 = vsub.s32 0, %v5697
      %v5699 = vrot.slane %v5170, %v5698
      %v5700 = vlaneseq
      %v5701 = vshrl.u32 %v5700, 7
      %v5702 = vsub.s32 0, %v5701
      %v5703 = vrot.slane %v5194, %v5702
      %v5704 = vlaneseq
      %v5705 = vshrl.u32 %v5704, 7
      %v5706 = vsub.s32 0, %v5705
      %v5707 = vrot.slane %v5208, %v5706
      %v5708 = vlaneseq
      %v5709 = vshrl.u32 %v5708, 7
      %v5710 = vsub.s32 0, %v5709
      %v5711 = vrot.slane %v5216, %v5710
      %v5712 = vlaneseq
      %v5713 = vshrl.u32 %v5712, 7
      %v5714 = vsub.s32 0, %v5713
      %v5715 = vrot.slane %v5218, %v5714
      %v5716 = vlaneseq
      %v5717 = vshrl.u32 %v5716, 7
      %v5718 = vsub.s32 0, %v5717
      %v5719 = vrot.slane %v5201, %v5718
      %v5720 = vlaneseq
      %v5721 = vshrl.u32 %v5720, 7
      %v5722 = vsub.s32 0, %v5721
      %v5723 = vrot.slane %v5215, %v5722
      %v5724 = vlaneseq
      %v5725 = vshrl.u32 %v5724, 7
      %v5726 = vsub.s32 0, %v5725
      %v5727 = vrot.slane %v5217, %v5726
      %v5728 = vlaneseq
      %v5729 = vshrl.u32 %v5728, 7
      %v5730 = vsub.s32 0, %v5729
      %v5731 = vrot.slane %v5219, %v5730
      %v5860 = vadd.f32 %v3782, %v5223
      %v5861 = vadd.f32 %v3787, %v5227
      %v5862 = vadd.f32 %v3792, %v5231
      %v5863 = vadd.f32 %v3797, %v5235
      %v5864 = vadd.f32 %v3802, %v5239
      %v5865 = vadd.f32 %v3807, %v5243
      %v5866 = vadd.f32 %v3812, %v5247
      %v5867 = vadd.f32 %v3817, %v5251
      %v5868 = vadd.f32 %v3822, %v5255
      %v5869 = vadd.f32 %v3827, %v5259
      %v5870 = vadd.f32 %v3832, %v5263
      %v5871 = vadd.f32 %v3837, %v5267
      %v5872 = vadd.f32 %v3842, %v5271
      %v5873 = vadd.f32 %v3847, %v5275
      %v5874 = vadd.f32 %v3852, %v5279
      %v5875 = vadd.f32 %v3857, %v5283
      %v5876 = vadd.f32 %v3862, %v5287
      %v5877 = vadd.f32 %v3867, %v5291
      %v5878 = vadd.f32 %v3872, %v5295
      %v5879 = vadd.f32 %v3877, %v5299
      %v5880 = vadd.f32 %v3882, %v5303
      %v5881 = vadd.f32 %v3887, %v5307
      %v5882 = vadd.f32 %v3892, %v5311
      %v5883 = vadd.f32 %v3897, %v5315
      %v5884 = vadd.f32 %v3902, %v5319
      %v5885 = vadd.f32 %v3907, %v5323
      %v5886 = vadd.f32 %v3912, %v5327
      %v5887 = vadd.f32 %v3917, %v5331
      %v5888 = vadd.f32 %v3922, %v5335
      %v5889 = vadd.f32 %v3927, %v5339
      %v5890 = vadd.f32 %v3932, %v5343
      %v5891 = vadd.f32 %v3937, %v5347
      %v5892 = vadd.f32 %v3942, %v5351
      %v5893 = vadd.f32 %v3947, %v5355
      %v5894 = vadd.f32 %v3952, %v5359
      %v5895 = vadd.f32 %v3957, %v5363
      %v5896 = vadd.f32 %v3962, %v5367
      %v5897 = vadd.f32 %v3967, %v5371
      %v5898 = vadd.f32 %v3972, %v5375
      %v5899 = vadd.f32 %v3977, %v5379
      %v5900 = vadd.f32 %v3982, %v5383
      %v5901 = vadd.f32 %v3987, %v5387
      %v5902 = vadd.f32 %v3992, %v5391
      %v5903 = vadd.f32 %v3997, %v5395
      %v5904 = vadd.f32 %v4002, %v5399
      %v5905 = vadd.f32 %v4007, %v5403
      %v5906 = vadd.f32 %v4012, %v5407
      %v5907 = vadd.f32 %v4017, %v5411
      %v5908 = vadd.f32 %v4022, %v5415
      %v5909 = vadd.f32 %v4027, %v5419
      %v5910 = vadd.f32 %v4032, %v5423
      %v5911 = vadd.f32 %v4037, %v5427
      %v5912 = vadd.f32 %v4042, %v5431
      %v5913 = vadd.f32 %v4047, %v5435
      %v5914 = vadd.f32 %v4052, %v5439
      %v5915 = vadd.f32 %v4057, %v5443
      %v5916 = vadd.f32 %v4062, %v5447
      %v5917 = vadd.f32 %v4067, %v5451
      %v5918 = vadd.f32 %v4072, %v5455
      %v5919 = vadd.f32 %v4077, %v5459
      %v5920 = vadd.f32 %v4082, %v5463
      %v5921 = vadd.f32 %v4087, %v5467
      %v5922 = vadd.f32 %v4092, %v5471
      %v5923 = vadd.f32 %v4097, %v5475
      %v5924 = vadd.f32 %v4102, %v5479
      %v5925 = vadd.f32 %v4107, %v5483
      %v5926 = vadd.f32 %v4112, %v5487
      %v5927 = vadd.f32 %v4117, %v5491
      %v5928 = vadd.f32 %v4122, %v5495
      %v5929 = vadd.f32 %v4127, %v5499
      %v5930 = vadd.f32 %v4132, %v5503
      %v5931 = vadd.f32 %v4137, %v5507
      %v5932 = vadd.f32 %v4142, %v5511
      %v5933 = vadd.f32 %v4147, %v5515
      %v5934 = vadd.f32 %v4152, %v5519
      %v5935 = vadd.f32 %v4157, %v5523
      %v5936 = vadd.f32 %v4162, %v5527
      %v5937 = vadd.f32 %v4167, %v5531
      %v5938 = vadd.f32 %v4172, %v5535
      %v5939 = vadd.f32 %v4177, %v5539
      %v5940 = vadd.f32 %v4182, %v5543
      %v5941 = vadd.f32 %v4187, %v5547
      %v5942 = vadd.f32 %v4192, %v5551
      %v5943 = vadd.f32 %v4197, %v5555
      %v5944 = vadd.f32 %v4202, %v5559
      %v5945 = vadd.f32 %v4207, %v5563
      %v5946 = vadd.f32 %v4212, %v5567
      %v5947 = vadd.f32 %v4217, %v5571
      %v5948 = vadd.f32 %v4222, %v5575
      %v5949 = vadd.f32 %v4227, %v5579
      %v5950 = vadd.f32 %v4232, %v5583
      %v5951 = vadd.f32 %v4237, %v5587
      %v5952 = vadd.f32 %v4242, %v5591
      %v5953 = vadd.f32 %v4247, %v5595
      %v5954 = vadd.f32 %v4252, %v5599
      %v5955 = vadd.f32 %v4257, %v5603
      %v5956 = vadd.f32 %v4262, %v5607
      %v5957 = vadd.f32 %v4267, %v5611
      %v5958 = vadd.f32 %v4272, %v5615
      %v5959 = vadd.f32 %v4277, %v5619
      %v5960 = vadd.f32 %v4282, %v5623
      %v5961 = vadd.f32 %v4287, %v5627
      %v5962 = vadd.f32 %v4292, %v5631
      %v5963 = vadd.f32 %v4297, %v5635
      %v5964 = vadd.f32 %v4302, %v5639
      %v5965 = vadd.f32 %v4307, %v5643
      %v5966 = vadd.f32 %v4312, %v5647
      %v5967 = vadd.f32 %v4317, %v5651
      %v5968 = vadd.f32 %v4322, %v5655
      %v5969 = vadd.f32 %v4327, %v5659
      %v5970 = vadd.f32 %v4332, %v5663
      %v5971 = vadd.f32 %v4337, %v5667
      %v5972 = vadd.f32 %v4342, %v5671
      %v5973 = vadd.f32 %v4347, %v5675
      %v5974 = vadd.f32 %v4352, %v5679
      %v5975 = vadd.f32 %v4357, %v5683
      %v5976 = vadd.f32 %v4362, %v5687
      %v5977 = vadd.f32 %v4367, %v5691
      %v5978 = vadd.f32 %v4372, %v5695
      %v5979 = vadd.f32 %v4377, %v5699
      %v5980 = vadd.f32 %v4382, %v5703
      %v5981 = vadd.f32 %v4387, %v5707
      %v5982 = vadd.f32 %v4392, %v5711
      %v5983 = vadd.f32 %v4397, %v5715
      %v5984 = vadd.f32 %v4402, %v5719
      %v5985 = vadd.f32 %v4407, %v5723
      %v5986 = vadd.f32 %v4412, %v5727
      %v5987 = vadd.f32 %v4417, %v5731
      %v5988 = vmax.f32 %v5860, 0.0
      %v5989 = vmax.f32 %v5861, 0.0
      %v5990 = vmax.f32 %v5862, 0.0
      %v5991 = vmax.f32 %v5863, 0.0
      %v5992 = vmax.f32 %v5864, 0.0
      %v5993 = vmax.f32 %v5865, 0.0
      %v5994 = vmax.f32 %v5866, 0.0
      %v5995 = vmax.f32 %v5867, 0.0
      %v5996 = vmax.f32 %v5868, 0.0
      %v5997 = vmax.f32 %v5869, 0.0
      %v5998 = vmax.f32 %v5870, 0.0
      %v5999 = vmax.f32 %v5871, 0.0
      %v6000 = vmax.f32 %v5872, 0.0
      %v6001 = vmax.f32 %v5873, 0.0
      %v6002 = vmax.f32 %v5874, 0.0
      %v6003 = vmax.f32 %v5875, 0.0
      %v6004 = vmax.f32 %v5876, 0.0
      %v6005 = vmax.f32 %v5877, 0.0
      %v6006 = vmax.f32 %v5878, 0.0
      %v6007 = vmax.f32 %v5879, 0.0
      %v6008 = vmax.f32 %v5880, 0.0
      %v6009 = vmax.f32 %v5881, 0.0
      %v6010 = vmax.f32 %v5882, 0.0
      %v6011 = vmax.f32 %v5883, 0.0
      %v6012 = vmax.f32 %v5884, 0.0
      %v6013 = vmax.f32 %v5885, 0.0
      %v6014 = vmax.f32 %v5886, 0.0
      %v6015 = vmax.f32 %v5887, 0.0
      %v6016 = vmax.f32 %v5888, 0.0
      %v6017 = vmax.f32 %v5889, 0.0
      %v6018 = vmax.f32 %v5890, 0.0
      %v6019 = vmax.f32 %v5891, 0.0
      %v6020 = vmax.f32 %v5892, 0.0
      %v6021 = vmax.f32 %v5893, 0.0
      %v6022 = vmax.f32 %v5894, 0.0
      %v6023 = vmax.f32 %v5895, 0.0
      %v6024 = vmax.f32 %v5896, 0.0
      %v6025 = vmax.f32 %v5897, 0.0
      %v6026 = vmax.f32 %v5898, 0.0
      %v6027 = vmax.f32 %v5899, 0.0
      %v6028 = vmax.f32 %v5900, 0.0
      %v6029 = vmax.f32 %v5901, 0.0
      %v6030 = vmax.f32 %v5902, 0.0
      %v6031 = vmax.f32 %v5903, 0.0
      %v6032 = vmax.f32 %v5904, 0.0
      %v6033 = vmax.f32 %v5905, 0.0
      %v6034 = vmax.f32 %v5906, 0.0
      %v6035 = vmax.f32 %v5907, 0.0
      %v6036 = vmax.f32 %v5908, 0.0
      %v6037 = vmax.f32 %v5909, 0.0
      %v6038 = vmax.f32 %v5910, 0.0
      %v6039 = vmax.f32 %v5911, 0.0
      %v6040 = vmax.f32 %v5912, 0.0
      %v6041 = vmax.f32 %v5913, 0.0
      %v6042 = vmax.f32 %v5914, 0.0
      %v6043 = vmax.f32 %v5915, 0.0
      %v6044 = vmax.f32 %v5916, 0.0
      %v6045 = vmax.f32 %v5917, 0.0
      %v6046 = vmax.f32 %v5918, 0.0
      %v6047 = vmax.f32 %v5919, 0.0
      %v6048 = vmax.f32 %v5920, 0.0
      %v6049 = vmax.f32 %v5921, 0.0
      %v6050 = vmax.f32 %v5922, 0.0
      %v6051 = vmax.f32 %v5923, 0.0
      %v6052 = vmax.f32 %v5924, 0.0
      %v6053 = vmax.f32 %v5925, 0.0
      %v6054 = vmax.f32 %v5926, 0.0
      %v6055 = vmax.f32 %v5927, 0.0
      %v6056 = vmax.f32 %v5928, 0.0
      %v6057 = vmax.f32 %v5929, 0.0
      %v6058 = vmax.f32 %v5930, 0.0
      %v6059 = vmax.f32 %v5931, 0.0
      %v6060 = vmax.f32 %v5932, 0.0
      %v6061 = vmax.f32 %v5933, 0.0
      %v6062 = vmax.f32 %v5934, 0.0
      %v6063 = vmax.f32 %v5935, 0.0
      %v6064 = vmax.f32 %v5936, 0.0
      %v6065 = vmax.f32 %v5937, 0.0
      %v6066 = vmax.f32 %v5938, 0.0
      %v6067 = vmax.f32 %v5939, 0.0
      %v6068 = vmax.f32 %v5940, 0.0
      %v6069 = vmax.f32 %v5941, 0.0
      %v6070 = vmax.f32 %v5942, 0.0
      %v6071 = vmax.f32 %v5943, 0.0
      %v6072 = vmax.f32 %v5944, 0.0
      %v6073 = vmax.f32 %v5945, 0.0
      %v6074 = vmax.f32 %v5946, 0.0
      %v6075 = vmax.f32 %v5947, 0.0
      %v6076 = vmax.f32 %v5948, 0.0
      %v6077 = vmax.f32 %v5949, 0.0
      %v6078 = vmax.f32 %v5950, 0.0
      %v6079 = vmax.f32 %v5951, 0.0
      %v6080 = vmax.f32 %v5952, 0.0
      %v6081 = vmax.f32 %v5953, 0.0
      %v6082 = vmax.f32 %v5954, 0.0
      %v6083 = vmax.f32 %v5955, 0.0
      %v6084 = vmax.f32 %v5956, 0.0
      %v6085 = vmax.f32 %v5957, 0.0
      %v6086 = vmax.f32 %v5958, 0.0
      %v6087 = vmax.f32 %v5959, 0.0
      %v6088 = vmax.f32 %v5960, 0.0
      %v6089 = vmax.f32 %v5961, 0.0
      %v6090 = vmax.f32 %v5962, 0.0
      %v6091 = vmax.f32 %v5963, 0.0
      %v6092 = vmax.f32 %v5964, 0.0
      %v6093 = vmax.f32 %v5965, 0.0
      %v6094 = vmax.f32 %v5966, 0.0
      %v6095 = vmax.f32 %v5967, 0.0
      %v6096 = vmax.f32 %v5968, 0.0
      %v6097 = vmax.f32 %v5969, 0.0
      %v6098 = vmax.f32 %v5970, 0.0
      %v6099 = vmax.f32 %v5971, 0.0
      %v6100 = vmax.f32 %v5972, 0.0
      %v6101 = vmax.f32 %v5973, 0.0
      %v6102 = vmax.f32 %v5974, 0.0
      %v6103 = vmax.f32 %v5975, 0.0
      %v6104 = vmax.f32 %v5976, 0.0
      %v6105 = vmax.f32 %v5977, 0.0
      %v6106 = vmax.f32 %v5978, 0.0
      %v6107 = vmax.f32 %v5979, 0.0
      %v6108 = vmax.f32 %v5980, 0.0
      %v6109 = vmax.f32 %v5981, 0.0
      %v6110 = vmax.f32 %v5982, 0.0
      %v6111 = vmax.f32 %v5983, 0.0
      %v6112 = vmax.f32 %v5984, 0.0
      %v6113 = vmax.f32 %v5985, 0.0
      %v6114 = vmax.f32 %v5986, 0.0
      %v6115 = vmax.f32 %v5987, 0.0
      %v6116 = vld [vmem:[%s6] sm:$0x1]
      %v6118 = vlaneseq
      %v6119 = vshrl.u32 %v6118, 7
      %v6120 = vsub.s32 0, %v6119
      %v6121 = vrot.slane %v6116, %v6120
      %v6123 = vmul.f32 %v5988, %v6121
      %v6124 = vmul.f32 %v5989, %v6121
      %v6125 = vmul.f32 %v5990, %v6121
      %v6126 = vmul.f32 %v5991, %v6121
      %v6127 = vmul.f32 %v5992, %v6121
      %v6128 = vmul.f32 %v5993, %v6121
      %v6129 = vmul.f32 %v5994, %v6121
      %v6130 = vmul.f32 %v5995, %v6121
      %v6131 = vmul.f32 %v5996, %v6121
      %v6132 = vmul.f32 %v5997, %v6121
      %v6133 = vmul.f32 %v5998, %v6121
      %v6134 = vmul.f32 %v5999, %v6121
      %v6135 = vmul.f32 %v6000, %v6121
      %v6136 = vmul.f32 %v6001, %v6121
      %v6137 = vmul.f32 %v6002, %v6121
      %v6138 = vmul.f32 %v6003, %v6121
      %v6139 = vmul.f32 %v6004, %v6121
      %v6140 = vmul.f32 %v6005, %v6121
      %v6141 = vmul.f32 %v6006, %v6121
      %v6142 = vmul.f32 %v6007, %v6121
      %v6143 = vmul.f32 %v6008, %v6121
      %v6144 = vmul.f32 %v6009, %v6121
      %v6145 = vmul.f32 %v6010, %v6121
      %v6146 = vmul.f32 %v6011, %v6121
      %v6147 = vmul.f32 %v6012, %v6121
      %v6148 = vmul.f32 %v6013, %v6121
      %v6149 = vmul.f32 %v6014, %v6121
      %v6150 = vmul.f32 %v6015, %v6121
      %v6151 = vmul.f32 %v6016, %v6121
      %v6152 = vmul.f32 %v6017, %v6121
      %v6153 = vmul.f32 %v6018, %v6121
      %v6154 = vmul.f32 %v6019, %v6121
      %v6155 = vmul.f32 %v6020, %v6121
      %v6156 = vmul.f32 %v6021, %v6121
      %v6157 = vmul.f32 %v6022, %v6121
      %v6158 = vmul.f32 %v6023, %v6121
      %v6159 = vmul.f32 %v6024, %v6121
      %v6160 = vmul.f32 %v6025, %v6121
      %v6161 = vmul.f32 %v6026, %v6121
      %v6162 = vmul.f32 %v6027, %v6121
      %v6163 = vmul.f32 %v6028, %v6121
      %v6164 = vmul.f32 %v6029, %v6121
      %v6165 = vmul.f32 %v6030, %v6121
      %v6166 = vmul.f32 %v6031, %v6121
      %v6167 = vmul.f32 %v6032, %v6121
      %v6168 = vmul.f32 %v6033, %v6121
      %v6169 = vmul.f32 %v6034, %v6121
      %v6170 = vmul.f32 %v6035, %v6121
      %v6171 = vmul.f32 %v6036, %v6121
      %v6172 = vmul.f32 %v6037, %v6121
      %v6173 = vmul.f32 %v6038, %v6121
      %v6174 = vmul.f32 %v6039, %v6121
      %v6175 = vmul.f32 %v6040, %v6121
      %v6176 = vmul.f32 %v6041, %v6121
      %v6177 = vmul.f32 %v6042, %v6121
      %v6178 = vmul.f32 %v6043, %v6121
      %v6179 = vmul.f32 %v6044, %v6121
      %v6180 = vmul.f32 %v6045, %v6121
      %v6181 = vmul.f32 %v6046, %v6121
      %v6182 = vmul.f32 %v6047, %v6121
      %v6183 = vmul.f32 %v6048, %v6121
      %v6184 = vmul.f32 %v6049, %v6121
      %v6185 = vmul.f32 %v6050, %v6121
      %v6186 = vmul.f32 %v6051, %v6121
      %v6187 = vmul.f32 %v6052, %v6121
      %v6188 = vmul.f32 %v6053, %v6121
      %v6189 = vmul.f32 %v6054, %v6121
      %v6190 = vmul.f32 %v6055, %v6121
      %v6191 = vmul.f32 %v6056, %v6121
      %v6192 = vmul.f32 %v6057, %v6121
      %v6193 = vmul.f32 %v6058, %v6121
      %v6194 = vmul.f32 %v6059, %v6121
      %v6195 = vmul.f32 %v6060, %v6121
      %v6196 = vmul.f32 %v6061, %v6121
      %v6197 = vmul.f32 %v6062, %v6121
      %v6198 = vmul.f32 %v6063, %v6121
      %v6199 = vmul.f32 %v6064, %v6121
      %v6200 = vmul.f32 %v6065, %v6121
      %v6201 = vmul.f32 %v6066, %v6121
      %v6202 = vmul.f32 %v6067, %v6121
      %v6203 = vmul.f32 %v6068, %v6121
      %v6204 = vmul.f32 %v6069, %v6121
      %v6205 = vmul.f32 %v6070, %v6121
      %v6206 = vmul.f32 %v6071, %v6121
      %v6207 = vmul.f32 %v6072, %v6121
      %v6208 = vmul.f32 %v6073, %v6121
      %v6209 = vmul.f32 %v6074, %v6121
      %v6210 = vmul.f32 %v6075, %v6121
      %v6211 = vmul.f32 %v6076, %v6121
      %v6212 = vmul.f32 %v6077, %v6121
      %v6213 = vmul.f32 %v6078, %v6121
      %v6214 = vmul.f32 %v6079, %v6121
      %v6215 = vmul.f32 %v6080, %v6121
      %v6216 = vmul.f32 %v6081, %v6121
      %v6217 = vmul.f32 %v6082, %v6121
      %v6218 = vmul.f32 %v6083, %v6121
      %v6219 = vmul.f32 %v6084, %v6121
      %v6220 = vmul.f32 %v6085, %v6121
      %v6221 = vmul.f32 %v6086, %v6121
      %v6222 = vmul.f32 %v6087, %v6121
      %v6223 = vmul.f32 %v6088, %v6121
      %v6224 = vmul.f32 %v6089, %v6121
      %v6225 = vmul.f32 %v6090, %v6121
      %v6226 = vmul.f32 %v6091, %v6121
      %v6227 = vmul.f32 %v6092, %v6121
      %v6228 = vmul.f32 %v6093, %v6121
      %v6229 = vmul.f32 %v6094, %v6121
      %v6230 = vmul.f32 %v6095, %v6121
      %v6231 = vmul.f32 %v6096, %v6121
      %v6232 = vmul.f32 %v6097, %v6121
      %v6233 = vmul.f32 %v6098, %v6121
      %v6234 = vmul.f32 %v6099, %v6121
      %v6235 = vmul.f32 %v6100, %v6121
      %v6236 = vmul.f32 %v6101, %v6121
      %v6237 = vmul.f32 %v6102, %v6121
      %v6238 = vmul.f32 %v6103, %v6121
      %v6239 = vmul.f32 %v6104, %v6121
      %v6240 = vmul.f32 %v6105, %v6121
      %v6241 = vmul.f32 %v6106, %v6121
      %v6242 = vmul.f32 %v6107, %v6121
      %v6243 = vmul.f32 %v6108, %v6121
      %v6244 = vmul.f32 %v6109, %v6121
      %v6245 = vmul.f32 %v6110, %v6121
      %v6246 = vmul.f32 %v6111, %v6121
      %v6247 = vmul.f32 %v6112, %v6121
      %v6248 = vmul.f32 %v6113, %v6121
      %v6249 = vmul.f32 %v6114, %v6121
      %v6250 = vmul.f32 %v6115, %v6121
      %vm6251 = vcmask 654336
      %v6252 = vsel %vm6251, %v6123, 0.0
      %6253 = vadd.xlane.f32.xlu0 %v6252
      %v6254 = vpop.xlane.xlu0 %6253
      %v6255 = vsel %vm6251, %v6124, 0.0
      %6256 = vadd.xlane.f32.xlu0 %v6255
      %v6257 = vpop.xlane.xlu0 %6256
      %v6258 = vsel %vm6251, %v6125, 0.0
      %6259 = vadd.xlane.f32.xlu0 %v6258
      %v6260 = vpop.xlane.xlu0 %6259
      %v6261 = vsel %vm6251, %v6126, 0.0
      %6262 = vadd.xlane.f32.xlu0 %v6261
      %v6263 = vpop.xlane.xlu0 %6262
      %v6264 = vsel %vm6251, %v6127, 0.0
      %6265 = vadd.xlane.f32.xlu0 %v6264
      %v6266 = vpop.xlane.xlu0 %6265
      %v6267 = vsel %vm6251, %v6128, 0.0
      %6268 = vadd.xlane.f32.xlu0 %v6267
      %v6269 = vpop.xlane.xlu0 %6268
      %v6270 = vsel %vm6251, %v6129, 0.0
      %6271 = vadd.xlane.f32.xlu0 %v6270
      %v6272 = vpop.xlane.xlu0 %6271
      %v6273 = vsel %vm6251, %v6130, 0.0
      %6274 = vadd.xlane.f32.xlu0 %v6273
      %v6275 = vpop.xlane.xlu0 %6274
      %v6276 = vsel %vm6251, %v6131, 0.0
      %6277 = vadd.xlane.f32.xlu0 %v6276
      %v6278 = vpop.xlane.xlu0 %6277
      %v6279 = vsel %vm6251, %v6132, 0.0
      %6280 = vadd.xlane.f32.xlu0 %v6279
      %v6281 = vpop.xlane.xlu0 %6280
      %v6282 = vsel %vm6251, %v6133, 0.0
      %6283 = vadd.xlane.f32.xlu0 %v6282
      %v6284 = vpop.xlane.xlu0 %6283
      %v6285 = vsel %vm6251, %v6134, 0.0
      %6286 = vadd.xlane.f32.xlu0 %v6285
      %v6287 = vpop.xlane.xlu0 %6286
      %v6288 = vsel %vm6251, %v6135, 0.0
      %6289 = vadd.xlane.f32.xlu0 %v6288
      %v6290 = vpop.xlane.xlu0 %6289
      %v6291 = vsel %vm6251, %v6136, 0.0
      %6292 = vadd.xlane.f32.xlu0 %v6291
      %v6293 = vpop.xlane.xlu0 %6292
      %v6294 = vsel %vm6251, %v6137, 0.0
      %6295 = vadd.xlane.f32.xlu0 %v6294
      %v6296 = vpop.xlane.xlu0 %6295
      %v6297 = vsel %vm6251, %v6138, 0.0
      %6298 = vadd.xlane.f32.xlu0 %v6297
      %v6299 = vpop.xlane.xlu0 %6298
      %v6300 = vsel %vm6251, %v6139, 0.0
      %6301 = vadd.xlane.f32.xlu0 %v6300
      %v6302 = vpop.xlane.xlu0 %6301
      %v6303 = vsel %vm6251, %v6140, 0.0
      %6304 = vadd.xlane.f32.xlu0 %v6303
      %v6305 = vpop.xlane.xlu0 %6304
      %v6306 = vsel %vm6251, %v6141, 0.0
      %6307 = vadd.xlane.f32.xlu0 %v6306
      %v6308 = vpop.xlane.xlu0 %6307
      %v6309 = vsel %vm6251, %v6142, 0.0
      %6310 = vadd.xlane.f32.xlu0 %v6309
      %v6311 = vpop.xlane.xlu0 %6310
      %v6312 = vsel %vm6251, %v6143, 0.0
      %6313 = vadd.xlane.f32.xlu0 %v6312
      %v6314 = vpop.xlane.xlu0 %6313
      %v6315 = vsel %vm6251, %v6144, 0.0
      %6316 = vadd.xlane.f32.xlu0 %v6315
      %v6317 = vpop.xlane.xlu0 %6316
      %v6318 = vsel %vm6251, %v6145, 0.0
      %6319 = vadd.xlane.f32.xlu0 %v6318
      %v6320 = vpop.xlane.xlu0 %6319
      %v6321 = vsel %vm6251, %v6146, 0.0
      %6322 = vadd.xlane.f32.xlu0 %v6321
      %v6323 = vpop.xlane.xlu0 %6322
      %v6324 = vsel %vm6251, %v6147, 0.0
      %6325 = vadd.xlane.f32.xlu0 %v6324
      %v6326 = vpop.xlane.xlu0 %6325
      %v6327 = vsel %vm6251, %v6148, 0.0
      %6328 = vadd.xlane.f32.xlu0 %v6327
      %v6329 = vpop.xlane.xlu0 %6328
      %v6330 = vsel %vm6251, %v6149, 0.0
      %6331 = vadd.xlane.f32.xlu0 %v6330
      %v6332 = vpop.xlane.xlu0 %6331
      %v6333 = vsel %vm6251, %v6150, 0.0
      %6334 = vadd.xlane.f32.xlu0 %v6333
      %v6335 = vpop.xlane.xlu0 %6334
      %v6336 = vsel %vm6251, %v6151, 0.0
      %6337 = vadd.xlane.f32.xlu0 %v6336
      %v6338 = vpop.xlane.xlu0 %6337
      %v6339 = vsel %vm6251, %v6152, 0.0
      %6340 = vadd.xlane.f32.xlu0 %v6339
      %v6341 = vpop.xlane.xlu0 %6340
      %v6342 = vsel %vm6251, %v6153, 0.0
      %6343 = vadd.xlane.f32.xlu0 %v6342
      %v6344 = vpop.xlane.xlu0 %6343
      %v6345 = vsel %vm6251, %v6154, 0.0
      %6346 = vadd.xlane.f32.xlu0 %v6345
      %v6347 = vpop.xlane.xlu0 %6346
      %v6348 = vsel %vm6251, %v6155, 0.0
      %6349 = vadd.xlane.f32.xlu0 %v6348
      %v6350 = vpop.xlane.xlu0 %6349
      %v6351 = vsel %vm6251, %v6156, 0.0
      %6352 = vadd.xlane.f32.xlu0 %v6351
      %v6353 = vpop.xlane.xlu0 %6352
      %v6354 = vsel %vm6251, %v6157, 0.0
      %6355 = vadd.xlane.f32.xlu0 %v6354
      %v6356 = vpop.xlane.xlu0 %6355
      %v6357 = vsel %vm6251, %v6158, 0.0
      %6358 = vadd.xlane.f32.xlu0 %v6357
      %v6359 = vpop.xlane.xlu0 %6358
      %v6360 = vsel %vm6251, %v6159, 0.0
      %6361 = vadd.xlane.f32.xlu0 %v6360
      %v6362 = vpop.xlane.xlu0 %6361
      %v6363 = vsel %vm6251, %v6160, 0.0
      %6364 = vadd.xlane.f32.xlu0 %v6363
      %v6365 = vpop.xlane.xlu0 %6364
      %v6366 = vsel %vm6251, %v6161, 0.0
      %6367 = vadd.xlane.f32.xlu0 %v6366
      %v6368 = vpop.xlane.xlu0 %6367
      %v6369 = vsel %vm6251, %v6162, 0.0
      %6370 = vadd.xlane.f32.xlu0 %v6369
      %v6371 = vpop.xlane.xlu0 %6370
      %v6372 = vsel %vm6251, %v6163, 0.0
      %6373 = vadd.xlane.f32.xlu0 %v6372
      %v6374 = vpop.xlane.xlu0 %6373
      %v6375 = vsel %vm6251, %v6164, 0.0
      %6376 = vadd.xlane.f32.xlu0 %v6375
      %v6377 = vpop.xlane.xlu0 %6376
      %v6378 = vsel %vm6251, %v6165, 0.0
      %6379 = vadd.xlane.f32.xlu0 %v6378
      %v6380 = vpop.xlane.xlu0 %6379
      %v6381 = vsel %vm6251, %v6166, 0.0
      %6382 = vadd.xlane.f32.xlu0 %v6381
      %v6383 = vpop.xlane.xlu0 %6382
      %v6384 = vsel %vm6251, %v6167, 0.0
      %6385 = vadd.xlane.f32.xlu0 %v6384
      %v6386 = vpop.xlane.xlu0 %6385
      %v6387 = vsel %vm6251, %v6168, 0.0
      %6388 = vadd.xlane.f32.xlu0 %v6387
      %v6389 = vpop.xlane.xlu0 %6388
      %v6390 = vsel %vm6251, %v6169, 0.0
      %6391 = vadd.xlane.f32.xlu0 %v6390
      %v6392 = vpop.xlane.xlu0 %6391
      %v6393 = vsel %vm6251, %v6170, 0.0
      %6394 = vadd.xlane.f32.xlu0 %v6393
      %v6395 = vpop.xlane.xlu0 %6394
      %v6396 = vsel %vm6251, %v6171, 0.0
      %6397 = vadd.xlane.f32.xlu0 %v6396
      %v6398 = vpop.xlane.xlu0 %6397
      %v6399 = vsel %vm6251, %v6172, 0.0
      %6400 = vadd.xlane.f32.xlu0 %v6399
      %v6401 = vpop.xlane.xlu0 %6400
      %v6402 = vsel %vm6251, %v6173, 0.0
      %6403 = vadd.xlane.f32.xlu0 %v6402
      %v6404 = vpop.xlane.xlu0 %6403
      %v6405 = vsel %vm6251, %v6174, 0.0
      %6406 = vadd.xlane.f32.xlu0 %v6405
      %v6407 = vpop.xlane.xlu0 %6406
      %v6408 = vsel %vm6251, %v6175, 0.0
      %6409 = vadd.xlane.f32.xlu0 %v6408
      %v6410 = vpop.xlane.xlu0 %6409
      %v6411 = vsel %vm6251, %v6176, 0.0
      %6412 = vadd.xlane.f32.xlu0 %v6411
      %v6413 = vpop.xlane.xlu0 %6412
      %v6414 = vsel %vm6251, %v6177, 0.0
      %6415 = vadd.xlane.f32.xlu0 %v6414
      %v6416 = vpop.xlane.xlu0 %6415
      %v6417 = vsel %vm6251, %v6178, 0.0
      %6418 = vadd.xlane.f32.xlu0 %v6417
      %v6419 = vpop.xlane.xlu0 %6418
      %v6420 = vsel %vm6251, %v6179, 0.0
      %6421 = vadd.xlane.f32.xlu0 %v6420
      %v6422 = vpop.xlane.xlu0 %6421
      %v6423 = vsel %vm6251, %v6180, 0.0
      %6424 = vadd.xlane.f32.xlu0 %v6423
      %v6425 = vpop.xlane.xlu0 %6424
      %v6426 = vsel %vm6251, %v6181, 0.0
      %6427 = vadd.xlane.f32.xlu0 %v6426
      %v6428 = vpop.xlane.xlu0 %6427
      %v6429 = vsel %vm6251, %v6182, 0.0
      %6430 = vadd.xlane.f32.xlu0 %v6429
      %v6431 = vpop.xlane.xlu0 %6430
      %v6432 = vsel %vm6251, %v6183, 0.0
      %6433 = vadd.xlane.f32.xlu0 %v6432
      %v6434 = vpop.xlane.xlu0 %6433
      %v6435 = vsel %vm6251, %v6184, 0.0
      %6436 = vadd.xlane.f32.xlu0 %v6435
      %v6437 = vpop.xlane.xlu0 %6436
      %v6438 = vsel %vm6251, %v6185, 0.0
      %6439 = vadd.xlane.f32.xlu0 %v6438
      %v6440 = vpop.xlane.xlu0 %6439
      %v6441 = vsel %vm6251, %v6186, 0.0
      %6442 = vadd.xlane.f32.xlu0 %v6441
      %v6443 = vpop.xlane.xlu0 %6442
      %v6444 = vsel %vm6251, %v6187, 0.0
      %6445 = vadd.xlane.f32.xlu0 %v6444
      %v6446 = vpop.xlane.xlu0 %6445
      %v6447 = vsel %vm6251, %v6188, 0.0
      %6448 = vadd.xlane.f32.xlu0 %v6447
      %v6449 = vpop.xlane.xlu0 %6448
      %v6450 = vsel %vm6251, %v6189, 0.0
      %6451 = vadd.xlane.f32.xlu0 %v6450
      %v6452 = vpop.xlane.xlu0 %6451
      %v6453 = vsel %vm6251, %v6190, 0.0
      %6454 = vadd.xlane.f32.xlu0 %v6453
      %v6455 = vpop.xlane.xlu0 %6454
      %v6456 = vsel %vm6251, %v6191, 0.0
      %6457 = vadd.xlane.f32.xlu0 %v6456
      %v6458 = vpop.xlane.xlu0 %6457
      %v6459 = vsel %vm6251, %v6192, 0.0
      %6460 = vadd.xlane.f32.xlu0 %v6459
      %v6461 = vpop.xlane.xlu0 %6460
      %v6462 = vsel %vm6251, %v6193, 0.0
      %6463 = vadd.xlane.f32.xlu0 %v6462
      %v6464 = vpop.xlane.xlu0 %6463
      %v6465 = vsel %vm6251, %v6194, 0.0
      %6466 = vadd.xlane.f32.xlu0 %v6465
      %v6467 = vpop.xlane.xlu0 %6466
      %v6468 = vsel %vm6251, %v6195, 0.0
      %6469 = vadd.xlane.f32.xlu0 %v6468
      %v6470 = vpop.xlane.xlu0 %6469
      %v6471 = vsel %vm6251, %v6196, 0.0
      %6472 = vadd.xlane.f32.xlu0 %v6471
      %v6473 = vpop.xlane.xlu0 %6472
      %v6474 = vsel %vm6251, %v6197, 0.0
      %6475 = vadd.xlane.f32.xlu0 %v6474
      %v6476 = vpop.xlane.xlu0 %6475
      %v6477 = vsel %vm6251, %v6198, 0.0
      %6478 = vadd.xlane.f32.xlu0 %v6477
      %v6479 = vpop.xlane.xlu0 %6478
      %v6480 = vsel %vm6251, %v6199, 0.0
      %6481 = vadd.xlane.f32.xlu0 %v6480
      %v6482 = vpop.xlane.xlu0 %6481
      %v6483 = vsel %vm6251, %v6200, 0.0
      %6484 = vadd.xlane.f32.xlu0 %v6483
      %v6485 = vpop.xlane.xlu0 %6484
      %v6486 = vsel %vm6251, %v6201, 0.0
      %6487 = vadd.xlane.f32.xlu0 %v6486
      %v6488 = vpop.xlane.xlu0 %6487
      %v6489 = vsel %vm6251, %v6202, 0.0
      %6490 = vadd.xlane.f32.xlu0 %v6489
      %v6491 = vpop.xlane.xlu0 %6490
      %v6492 = vsel %vm6251, %v6203, 0.0
      %6493 = vadd.xlane.f32.xlu0 %v6492
      %v6494 = vpop.xlane.xlu0 %6493
      %v6495 = vsel %vm6251, %v6204, 0.0
      %6496 = vadd.xlane.f32.xlu0 %v6495
      %v6497 = vpop.xlane.xlu0 %6496
      %v6498 = vsel %vm6251, %v6205, 0.0
      %6499 = vadd.xlane.f32.xlu0 %v6498
      %v6500 = vpop.xlane.xlu0 %6499
      %v6501 = vsel %vm6251, %v6206, 0.0
      %6502 = vadd.xlane.f32.xlu0 %v6501
      %v6503 = vpop.xlane.xlu0 %6502
      %v6504 = vsel %vm6251, %v6207, 0.0
      %6505 = vadd.xlane.f32.xlu0 %v6504
      %v6506 = vpop.xlane.xlu0 %6505
      %v6507 = vsel %vm6251, %v6208, 0.0
      %6508 = vadd.xlane.f32.xlu0 %v6507
      %v6509 = vpop.xlane.xlu0 %6508
      %v6510 = vsel %vm6251, %v6209, 0.0
      %6511 = vadd.xlane.f32.xlu0 %v6510
      %v6512 = vpop.xlane.xlu0 %6511
      %v6513 = vsel %vm6251, %v6210, 0.0
      %6514 = vadd.xlane.f32.xlu0 %v6513
      %v6515 = vpop.xlane.xlu0 %6514
      %v6516 = vsel %vm6251, %v6211, 0.0
      %6517 = vadd.xlane.f32.xlu0 %v6516
      %v6518 = vpop.xlane.xlu0 %6517
      %v6519 = vsel %vm6251, %v6212, 0.0
      %6520 = vadd.xlane.f32.xlu0 %v6519
      %v6521 = vpop.xlane.xlu0 %6520
      %v6522 = vsel %vm6251, %v6213, 0.0
      %6523 = vadd.xlane.f32.xlu0 %v6522
      %v6524 = vpop.xlane.xlu0 %6523
      %v6525 = vsel %vm6251, %v6214, 0.0
      %6526 = vadd.xlane.f32.xlu0 %v6525
      %v6527 = vpop.xlane.xlu0 %6526
      %v6528 = vsel %vm6251, %v6215, 0.0
      %6529 = vadd.xlane.f32.xlu0 %v6528
      %v6530 = vpop.xlane.xlu0 %6529
      %v6531 = vsel %vm6251, %v6216, 0.0
      %6532 = vadd.xlane.f32.xlu0 %v6531
      %v6533 = vpop.xlane.xlu0 %6532
      %v6534 = vsel %vm6251, %v6217, 0.0
      %6535 = vadd.xlane.f32.xlu0 %v6534
      %v6536 = vpop.xlane.xlu0 %6535
      %v6537 = vsel %vm6251, %v6218, 0.0
      %6538 = vadd.xlane.f32.xlu0 %v6537
      %v6539 = vpop.xlane.xlu0 %6538
      %v6540 = vsel %vm6251, %v6219, 0.0
      %6541 = vadd.xlane.f32.xlu0 %v6540
      %v6542 = vpop.xlane.xlu0 %6541
      %v6543 = vsel %vm6251, %v6220, 0.0
      %6544 = vadd.xlane.f32.xlu0 %v6543
      %v6545 = vpop.xlane.xlu0 %6544
      %v6546 = vsel %vm6251, %v6221, 0.0
      %6547 = vadd.xlane.f32.xlu0 %v6546
      %v6548 = vpop.xlane.xlu0 %6547
      %v6549 = vsel %vm6251, %v6222, 0.0
      %6550 = vadd.xlane.f32.xlu0 %v6549
      %v6551 = vpop.xlane.xlu0 %6550
      %v6552 = vsel %vm6251, %v6223, 0.0
      %6553 = vadd.xlane.f32.xlu0 %v6552
      %v6554 = vpop.xlane.xlu0 %6553
      %v6555 = vsel %vm6251, %v6224, 0.0
      %6556 = vadd.xlane.f32.xlu0 %v6555
      %v6557 = vpop.xlane.xlu0 %6556
      %v6558 = vsel %vm6251, %v6225, 0.0
      %6559 = vadd.xlane.f32.xlu0 %v6558
      %v6560 = vpop.xlane.xlu0 %6559
      %v6561 = vsel %vm6251, %v6226, 0.0
      %6562 = vadd.xlane.f32.xlu0 %v6561
      %v6563 = vpop.xlane.xlu0 %6562
      %v6564 = vsel %vm6251, %v6227, 0.0
      %6565 = vadd.xlane.f32.xlu0 %v6564
      %v6566 = vpop.xlane.xlu0 %6565
      %v6567 = vsel %vm6251, %v6228, 0.0
      %6568 = vadd.xlane.f32.xlu0 %v6567
      %v6569 = vpop.xlane.xlu0 %6568
      %v6570 = vsel %vm6251, %v6229, 0.0
      %6571 = vadd.xlane.f32.xlu0 %v6570
      %v6572 = vpop.xlane.xlu0 %6571
      %v6573 = vsel %vm6251, %v6230, 0.0
      %6574 = vadd.xlane.f32.xlu0 %v6573
      %v6575 = vpop.xlane.xlu0 %6574
      %v6576 = vsel %vm6251, %v6231, 0.0
      %6577 = vadd.xlane.f32.xlu0 %v6576
      %v6578 = vpop.xlane.xlu0 %6577
      %v6579 = vsel %vm6251, %v6232, 0.0
      %6580 = vadd.xlane.f32.xlu0 %v6579
      %v6581 = vpop.xlane.xlu0 %6580
      %v6582 = vsel %vm6251, %v6233, 0.0
      %6583 = vadd.xlane.f32.xlu0 %v6582
      %v6584 = vpop.xlane.xlu0 %6583
      %v6585 = vsel %vm6251, %v6234, 0.0
      %6586 = vadd.xlane.f32.xlu0 %v6585
      %v6587 = vpop.xlane.xlu0 %6586
      %v6588 = vsel %vm6251, %v6235, 0.0
      %6589 = vadd.xlane.f32.xlu0 %v6588
      %v6590 = vpop.xlane.xlu0 %6589
      %v6591 = vsel %vm6251, %v6236, 0.0
      %6592 = vadd.xlane.f32.xlu0 %v6591
      %v6593 = vpop.xlane.xlu0 %6592
      %v6594 = vsel %vm6251, %v6237, 0.0
      %6595 = vadd.xlane.f32.xlu0 %v6594
      %v6596 = vpop.xlane.xlu0 %6595
      %v6597 = vsel %vm6251, %v6238, 0.0
      %6598 = vadd.xlane.f32.xlu0 %v6597
      %v6599 = vpop.xlane.xlu0 %6598
      %v6600 = vsel %vm6251, %v6239, 0.0
      %6601 = vadd.xlane.f32.xlu0 %v6600
      %v6602 = vpop.xlane.xlu0 %6601
      %v6603 = vsel %vm6251, %v6240, 0.0
      %6604 = vadd.xlane.f32.xlu0 %v6603
      %v6605 = vpop.xlane.xlu0 %6604
      %v6606 = vsel %vm6251, %v6241, 0.0
      %6607 = vadd.xlane.f32.xlu0 %v6606
      %v6608 = vpop.xlane.xlu0 %6607
      %v6609 = vsel %vm6251, %v6242, 0.0
      %6610 = vadd.xlane.f32.xlu0 %v6609
      %v6611 = vpop.xlane.xlu0 %6610
      %v6612 = vsel %vm6251, %v6243, 0.0
      %6613 = vadd.xlane.f32.xlu0 %v6612
      %v6614 = vpop.xlane.xlu0 %6613
      %v6615 = vsel %vm6251, %v6244, 0.0
      %6616 = vadd.xlane.f32.xlu0 %v6615
      %v6617 = vpop.xlane.xlu0 %6616
      %v6618 = vsel %vm6251, %v6245, 0.0
      %6619 = vadd.xlane.f32.xlu0 %v6618
      %v6620 = vpop.xlane.xlu0 %6619
      %v6621 = vsel %vm6251, %v6246, 0.0
      %6622 = vadd.xlane.f32.xlu0 %v6621
      %v6623 = vpop.xlane.xlu0 %6622
      %v6624 = vsel %vm6251, %v6247, 0.0
      %6625 = vadd.xlane.f32.xlu0 %v6624
      %v6626 = vpop.xlane.xlu0 %6625
      %v6627 = vsel %vm6251, %v6248, 0.0
      %6628 = vadd.xlane.f32.xlu0 %v6627
      %v6629 = vpop.xlane.xlu0 %6628
      %v6630 = vsel %vm6251, %v6249, 0.0
      %6631 = vadd.xlane.f32.xlu0 %v6630
      %v6632 = vpop.xlane.xlu0 %6631
      %v6633 = vsel %vm6251, %v6250, 0.0
      %6634 = vadd.xlane.f32.xlu0 %v6633
      %v6635 = vpop.xlane.xlu0 %6634
      %s6636 = sld [smem:[#allocation2]]
      %v6637 = vstv %s6636
      %v6638 = vadd.f32 %v6254, %v6637
      %v6639 = vadd.f32 %v6257, %v6637
      %v6640 = vadd.f32 %v6260, %v6637
      %v6641 = vadd.f32 %v6263, %v6637
      %v6642 = vadd.f32 %v6266, %v6637
      %v6643 = vadd.f32 %v6269, %v6637
      %v6644 = vadd.f32 %v6272, %v6637
      %v6645 = vadd.f32 %v6275, %v6637
      %v6646 = vadd.f32 %v6278, %v6637
      %v6647 = vadd.f32 %v6281, %v6637
      %v6648 = vadd.f32 %v6284, %v6637
      %v6649 = vadd.f32 %v6287, %v6637
      %v6650 = vadd.f32 %v6290, %v6637
      %v6651 = vadd.f32 %v6293, %v6637
      %v6652 = vadd.f32 %v6296, %v6637
      %v6653 = vadd.f32 %v6299, %v6637
      %v6654 = vadd.f32 %v6302, %v6637
      %v6655 = vadd.f32 %v6305, %v6637
      %v6656 = vadd.f32 %v6308, %v6637
      %v6657 = vadd.f32 %v6311, %v6637
      %v6658 = vadd.f32 %v6314, %v6637
      %v6659 = vadd.f32 %v6317, %v6637
      %v6660 = vadd.f32 %v6320, %v6637
      %v6661 = vadd.f32 %v6323, %v6637
      %v6662 = vadd.f32 %v6326, %v6637
      %v6663 = vadd.f32 %v6329, %v6637
      %v6664 = vadd.f32 %v6332, %v6637
      %v6665 = vadd.f32 %v6335, %v6637
      %v6666 = vadd.f32 %v6338, %v6637
      %v6667 = vadd.f32 %v6341, %v6637
      %v6668 = vadd.f32 %v6344, %v6637
      %v6669 = vadd.f32 %v6347, %v6637
      %v6670 = vadd.f32 %v6350, %v6637
      %v6671 = vadd.f32 %v6353, %v6637
      %v6672 = vadd.f32 %v6356, %v6637
      %v6673 = vadd.f32 %v6359, %v6637
      %v6674 = vadd.f32 %v6362, %v6637
      %v6675 = vadd.f32 %v6365, %v6637
      %v6676 = vadd.f32 %v6368, %v6637
      %v6677 = vadd.f32 %v6371, %v6637
      %v6678 = vadd.f32 %v6374, %v6637
      %v6679 = vadd.f32 %v6377, %v6637
      %v6680 = vadd.f32 %v6380, %v6637
      %v6681 = vadd.f32 %v6383, %v6637
      %v6682 = vadd.f32 %v6386, %v6637
      %v6683 = vadd.f32 %v6389, %v6637
      %v6684 = vadd.f32 %v6392, %v6637
      %v6685 = vadd.f32 %v6395, %v6637
      %v6686 = vadd.f32 %v6398, %v6637
      %v6687 = vadd.f32 %v6401, %v6637
      %v6688 = vadd.f32 %v6404, %v6637
      %v6689 = vadd.f32 %v6407, %v6637
      %v6690 = vadd.f32 %v6410, %v6637
      %v6691 = vadd.f32 %v6413, %v6637
      %v6692 = vadd.f32 %v6416, %v6637
      %v6693 = vadd.f32 %v6419, %v6637
      %v6694 = vadd.f32 %v6422, %v6637
      %v6695 = vadd.f32 %v6425, %v6637
      %v6696 = vadd.f32 %v6428, %v6637
      %v6697 = vadd.f32 %v6431, %v6637
      %v6698 = vadd.f32 %v6434, %v6637
      %v6699 = vadd.f32 %v6437, %v6637
      %v6700 = vadd.f32 %v6440, %v6637
      %v6701 = vadd.f32 %v6443, %v6637
      %v6702 = vadd.f32 %v6446, %v6637
      %v6703 = vadd.f32 %v6449, %v6637
      %v6704 = vadd.f32 %v6452, %v6637
      %v6705 = vadd.f32 %v6455, %v6637
      %v6706 = vadd.f32 %v6458, %v6637
      %v6707 = vadd.f32 %v6461, %v6637
      %v6708 = vadd.f32 %v6464, %v6637
      %v6709 = vadd.f32 %v6467, %v6637
      %v6710 = vadd.f32 %v6470, %v6637
      %v6711 = vadd.f32 %v6473, %v6637
      %v6712 = vadd.f32 %v6476, %v6637
      %v6713 = vadd.f32 %v6479, %v6637
      %v6714 = vadd.f32 %v6482, %v6637
      %v6715 = vadd.f32 %v6485, %v6637
      %v6716 = vadd.f32 %v6488, %v6637
      %v6717 = vadd.f32 %v6491, %v6637
      %v6718 = vadd.f32 %v6494, %v6637
      %v6719 = vadd.f32 %v6497, %v6637
      %v6720 = vadd.f32 %v6500, %v6637
      %v6721 = vadd.f32 %v6503, %v6637
      %v6722 = vadd.f32 %v6506, %v6637
      %v6723 = vadd.f32 %v6509, %v6637
      %v6724 = vadd.f32 %v6512, %v6637
      %v6725 = vadd.f32 %v6515, %v6637
      %v6726 = vadd.f32 %v6518, %v6637
      %v6727 = vadd.f32 %v6521, %v6637
      %v6728 = vadd.f32 %v6524, %v6637
      %v6729 = vadd.f32 %v6527, %v6637
      %v6730 = vadd.f32 %v6530, %v6637
      %v6731 = vadd.f32 %v6533, %v6637
      %v6732 = vadd.f32 %v6536, %v6637
      %v6733 = vadd.f32 %v6539, %v6637
      %v6734 = vadd.f32 %v6542, %v6637
      %v6735 = vadd.f32 %v6545, %v6637
      %v6736 = vadd.f32 %v6548, %v6637
      %v6737 = vadd.f32 %v6551, %v6637
      %v6738 = vadd.f32 %v6554, %v6637
      %v6739 = vadd.f32 %v6557, %v6637
      %v6740 = vadd.f32 %v6560, %v6637
      %v6741 = vadd.f32 %v6563, %v6637
      %v6742 = vadd.f32 %v6566, %v6637
      %v6743 = vadd.f32 %v6569, %v6637
      %v6744 = vadd.f32 %v6572, %v6637
      %v6745 = vadd.f32 %v6575, %v6637
      %v6746 = vadd.f32 %v6578, %v6637
      %v6747 = vadd.f32 %v6581, %v6637
      %v6748 = vadd.f32 %v6584, %v6637
      %v6749 = vadd.f32 %v6587, %v6637
      %v6750 = vadd.f32 %v6590, %v6637
      %v6751 = vadd.f32 %v6593, %v6637
      %v6752 = vadd.f32 %v6596, %v6637
      %v6753 = vadd.f32 %v6599, %v6637
      %v6754 = vadd.f32 %v6602, %v6637
      %v6755 = vadd.f32 %v6605, %v6637
      %v6756 = vadd.f32 %v6608, %v6637
      %v6757 = vadd.f32 %v6611, %v6637
      %v6758 = vadd.f32 %v6614, %v6637
      %v6759 = vadd.f32 %v6617, %v6637
      %v6760 = vadd.f32 %v6620, %v6637
      %v6761 = vadd.f32 %v6623, %v6637
      %v6762 = vadd.f32 %v6626, %v6637
      %v6763 = vadd.f32 %v6629, %v6637
      %v6764 = vadd.f32 %v6632, %v6637
      %v6765 = vadd.f32 %v6635, %v6637
      %v6894 = vlaneseq
      %v6895 = vand.u32 %v6894, 127
      %v6896 = vlaneseq
      %v6897 = vshrl.u32 %v6896, 7
      %v6898 = vsub.s32 %v6895, %v6897
      %v6899 = vrot.slane %v6638, %v6898
      %v6900 = vlaneseq
      %v6901 = vshrl.u32 %v6900, 7
      %v6902 = vsub.s32 %v6895, %v6901
      %v6903 = vrot.slane %v6639, %v6902
      %v6904 = vlaneseq
      %v6905 = vshrl.u32 %v6904, 7
      %v6906 = vsub.s32 %v6895, %v6905
      %v6907 = vrot.slane %v6640, %v6906
      %v6908 = vlaneseq
      %v6909 = vshrl.u32 %v6908, 7
      %v6910 = vsub.s32 %v6895, %v6909
      %v6911 = vrot.slane %v6641, %v6910
      %v6912 = vlaneseq
      %v6913 = vshrl.u32 %v6912, 7
      %v6914 = vsub.s32 %v6895, %v6913
      %v6915 = vrot.slane %v6642, %v6914
      %v6916 = vlaneseq
      %v6917 = vshrl.u32 %v6916, 7
      %v6918 = vsub.s32 %v6895, %v6917
      %v6919 = vrot.slane %v6643, %v6918
      %v6920 = vlaneseq
      %v6921 = vshrl.u32 %v6920, 7
      %v6922 = vsub.s32 %v6895, %v6921
      %v6923 = vrot.slane %v6644, %v6922
      %v6924 = vlaneseq
      %v6925 = vshrl.u32 %v6924, 7
      %v6926 = vsub.s32 %v6895, %v6925
      %v6927 = vrot.slane %v6645, %v6926
      %v6928 = vlaneseq
      %v6929 = vshrl.u32 %v6928, 7
      %v6930 = vsub.s32 %v6895, %v6929
      %v6931 = vrot.slane %v6646, %v6930
      %v6932 = vlaneseq
      %v6933 = vshrl.u32 %v6932, 7
      %v6934 = vsub.s32 %v6895, %v6933
      %v6935 = vrot.slane %v6647, %v6934
      %v6936 = vlaneseq
      %v6937 = vshrl.u32 %v6936, 7
      %v6938 = vsub.s32 %v6895, %v6937
      %v6939 = vrot.slane %v6648, %v6938
      %v6940 = vlaneseq
      %v6941 = vshrl.u32 %v6940, 7
      %v6942 = vsub.s32 %v6895, %v6941
      %v6943 = vrot.slane %v6649, %v6942
      %v6944 = vlaneseq
      %v6945 = vshrl.u32 %v6944, 7
      %v6946 = vsub.s32 %v6895, %v6945
      %v6947 = vrot.slane %v6650, %v6946
      %v6948 = vlaneseq
      %v6949 = vshrl.u32 %v6948, 7
      %v6950 = vsub.s32 %v6895, %v6949
      %v6951 = vrot.slane %v6651, %v6950
      %v6952 = vlaneseq
      %v6953 = vshrl.u32 %v6952, 7
      %v6954 = vsub.s32 %v6895, %v6953
      %v6955 = vrot.slane %v6652, %v6954
      %v6956 = vlaneseq
      %v6957 = vshrl.u32 %v6956, 7
      %v6958 = vsub.s32 %v6895, %v6957
      %v6959 = vrot.slane %v6653, %v6958
      %v6960 = vlaneseq
      %v6961 = vshrl.u32 %v6960, 7
      %v6962 = vsub.s32 %v6895, %v6961
      %v6963 = vrot.slane %v6654, %v6962
      %v6964 = vlaneseq
      %v6965 = vshrl.u32 %v6964, 7
      %v6966 = vsub.s32 %v6895, %v6965
      %v6967 = vrot.slane %v6655, %v6966
      %v6968 = vlaneseq
      %v6969 = vshrl.u32 %v6968, 7
      %v6970 = vsub.s32 %v6895, %v6969
      %v6971 = vrot.slane %v6656, %v6970
      %v6972 = vlaneseq
      %v6973 = vshrl.u32 %v6972, 7
      %v6974 = vsub.s32 %v6895, %v6973
      %v6975 = vrot.slane %v6657, %v6974
      %v6976 = vlaneseq
      %v6977 = vshrl.u32 %v6976, 7
      %v6978 = vsub.s32 %v6895, %v6977
      %v6979 = vrot.slane %v6658, %v6978
      %v6980 = vlaneseq
      %v6981 = vshrl.u32 %v6980, 7
      %v6982 = vsub.s32 %v6895, %v6981
      %v6983 = vrot.slane %v6659, %v6982
      %v6984 = vlaneseq
      %v6985 = vshrl.u32 %v6984, 7
      %v6986 = vsub.s32 %v6895, %v6985
      %v6987 = vrot.slane %v6660, %v6986
      %v6988 = vlaneseq
      %v6989 = vshrl.u32 %v6988, 7
      %v6990 = vsub.s32 %v6895, %v6989
      %v6991 = vrot.slane %v6661, %v6990
      %v6992 = vlaneseq
      %v6993 = vshrl.u32 %v6992, 7
      %v6994 = vsub.s32 %v6895, %v6993
      %v6995 = vrot.slane %v6662, %v6994
      %v6996 = vlaneseq
      %v6997 = vshrl.u32 %v6996, 7
      %v6998 = vsub.s32 %v6895, %v6997
      %v6999 = vrot.slane %v6663, %v6998
      %v7000 = vlaneseq
      %v7001 = vshrl.u32 %v7000, 7
      %v7002 = vsub.s32 %v6895, %v7001
      %v7003 = vrot.slane %v6664, %v7002
      %v7004 = vlaneseq
      %v7005 = vshrl.u32 %v7004, 7
      %v7006 = vsub.s32 %v6895, %v7005
      %v7007 = vrot.slane %v6665, %v7006
      %v7008 = vlaneseq
      %v7009 = vshrl.u32 %v7008, 7
      %v7010 = vsub.s32 %v6895, %v7009
      %v7011 = vrot.slane %v6666, %v7010
      %v7012 = vlaneseq
      %v7013 = vshrl.u32 %v7012, 7
      %v7014 = vsub.s32 %v6895, %v7013
      %v7015 = vrot.slane %v6667, %v7014
      %v7016 = vlaneseq
      %v7017 = vshrl.u32 %v7016, 7
      %v7018 = vsub.s32 %v6895, %v7017
      %v7019 = vrot.slane %v6668, %v7018
      %v7020 = vlaneseq
      %v7021 = vshrl.u32 %v7020, 7
      %v7022 = vsub.s32 %v6895, %v7021
      %v7023 = vrot.slane %v6669, %v7022
      %v7024 = vlaneseq
      %v7025 = vshrl.u32 %v7024, 7
      %v7026 = vsub.s32 %v6895, %v7025
      %v7027 = vrot.slane %v6670, %v7026
      %v7028 = vlaneseq
      %v7029 = vshrl.u32 %v7028, 7
      %v7030 = vsub.s32 %v6895, %v7029
      %v7031 = vrot.slane %v6671, %v7030
      %v7032 = vlaneseq
      %v7033 = vshrl.u32 %v7032, 7
      %v7034 = vsub.s32 %v6895, %v7033
      %v7035 = vrot.slane %v6672, %v7034
      %v7036 = vlaneseq
      %v7037 = vshrl.u32 %v7036, 7
      %v7038 = vsub.s32 %v6895, %v7037
      %v7039 = vrot.slane %v6673, %v7038
      %v7040 = vlaneseq
      %v7041 = vshrl.u32 %v7040, 7
      %v7042 = vsub.s32 %v6895, %v7041
      %v7043 = vrot.slane %v6674, %v7042
      %v7044 = vlaneseq
      %v7045 = vshrl.u32 %v7044, 7
      %v7046 = vsub.s32 %v6895, %v7045
      %v7047 = vrot.slane %v6675, %v7046
      %v7048 = vlaneseq
      %v7049 = vshrl.u32 %v7048, 7
      %v7050 = vsub.s32 %v6895, %v7049
      %v7051 = vrot.slane %v6676, %v7050
      %v7052 = vlaneseq
      %v7053 = vshrl.u32 %v7052, 7
      %v7054 = vsub.s32 %v6895, %v7053
      %v7055 = vrot.slane %v6677, %v7054
      %v7056 = vlaneseq
      %v7057 = vshrl.u32 %v7056, 7
      %v7058 = vsub.s32 %v6895, %v7057
      %v7059 = vrot.slane %v6678, %v7058
      %v7060 = vlaneseq
      %v7061 = vshrl.u32 %v7060, 7
      %v7062 = vsub.s32 %v6895, %v7061
      %v7063 = vrot.slane %v6679, %v7062
      %v7064 = vlaneseq
      %v7065 = vshrl.u32 %v7064, 7
      %v7066 = vsub.s32 %v6895, %v7065
      %v7067 = vrot.slane %v6680, %v7066
      %v7068 = vlaneseq
      %v7069 = vshrl.u32 %v7068, 7
      %v7070 = vsub.s32 %v6895, %v7069
      %v7071 = vrot.slane %v6681, %v7070
      %v7072 = vlaneseq
      %v7073 = vshrl.u32 %v7072, 7
      %v7074 = vsub.s32 %v6895, %v7073
      %v7075 = vrot.slane %v6682, %v7074
      %v7076 = vlaneseq
      %v7077 = vshrl.u32 %v7076, 7
      %v7078 = vsub.s32 %v6895, %v7077
      %v7079 = vrot.slane %v6683, %v7078
      %v7080 = vlaneseq
      %v7081 = vshrl.u32 %v7080, 7
      %v7082 = vsub.s32 %v6895, %v7081
      %v7083 = vrot.slane %v6684, %v7082
      %v7084 = vlaneseq
      %v7085 = vshrl.u32 %v7084, 7
      %v7086 = vsub.s32 %v6895, %v7085
      %v7087 = vrot.slane %v6685, %v7086
      %v7088 = vlaneseq
      %v7089 = vshrl.u32 %v7088, 7
      %v7090 = vsub.s32 %v6895, %v7089
      %v7091 = vrot.slane %v6686, %v7090
      %v7092 = vlaneseq
      %v7093 = vshrl.u32 %v7092, 7
      %v7094 = vsub.s32 %v6895, %v7093
      %v7095 = vrot.slane %v6687, %v7094
      %v7096 = vlaneseq
      %v7097 = vshrl.u32 %v7096, 7
      %v7098 = vsub.s32 %v6895, %v7097
      %v7099 = vrot.slane %v6688, %v7098
      %v7100 = vlaneseq
      %v7101 = vshrl.u32 %v7100, 7
      %v7102 = vsub.s32 %v6895, %v7101
      %v7103 = vrot.slane %v6689, %v7102
      %v7104 = vlaneseq
      %v7105 = vshrl.u32 %v7104, 7
      %v7106 = vsub.s32 %v6895, %v7105
      %v7107 = vrot.slane %v6690, %v7106
      %v7108 = vlaneseq
      %v7109 = vshrl.u32 %v7108, 7
      %v7110 = vsub.s32 %v6895, %v7109
      %v7111 = vrot.slane %v6691, %v7110
      %v7112 = vlaneseq
      %v7113 = vshrl.u32 %v7112, 7
      %v7114 = vsub.s32 %v6895, %v7113
      %v7115 = vrot.slane %v6692, %v7114
      %v7116 = vlaneseq
      %v7117 = vshrl.u32 %v7116, 7
      %v7118 = vsub.s32 %v6895, %v7117
      %v7119 = vrot.slane %v6693, %v7118
      %v7120 = vlaneseq
      %v7121 = vshrl.u32 %v7120, 7
      %v7122 = vsub.s32 %v6895, %v7121
      %v7123 = vrot.slane %v6694, %v7122
      %v7124 = vlaneseq
      %v7125 = vshrl.u32 %v7124, 7
      %v7126 = vsub.s32 %v6895, %v7125
      %v7127 = vrot.slane %v6695, %v7126
      %v7128 = vlaneseq
      %v7129 = vshrl.u32 %v7128, 7
      %v7130 = vsub.s32 %v6895, %v7129
      %v7131 = vrot.slane %v6696, %v7130
      %v7132 = vlaneseq
      %v7133 = vshrl.u32 %v7132, 7
      %v7134 = vsub.s32 %v6895, %v7133
      %v7135 = vrot.slane %v6697, %v7134
      %v7136 = vlaneseq
      %v7137 = vshrl.u32 %v7136, 7
      %v7138 = vsub.s32 %v6895, %v7137
      %v7139 = vrot.slane %v6698, %v7138
      %v7140 = vlaneseq
      %v7141 = vshrl.u32 %v7140, 7
      %v7142 = vsub.s32 %v6895, %v7141
      %v7143 = vrot.slane %v6699, %v7142
      %v7144 = vlaneseq
      %v7145 = vshrl.u32 %v7144, 7
      %v7146 = vsub.s32 %v6895, %v7145
      %v7147 = vrot.slane %v6700, %v7146
      %v7148 = vlaneseq
      %v7149 = vshrl.u32 %v7148, 7
      %v7150 = vsub.s32 %v6895, %v7149
      %v7151 = vrot.slane %v6701, %v7150
      %v7152 = vlaneseq
      %v7153 = vshrl.u32 %v7152, 7
      %v7154 = vsub.s32 %v6895, %v7153
      %v7155 = vrot.slane %v6702, %v7154
      %v7156 = vlaneseq
      %v7157 = vshrl.u32 %v7156, 7
      %v7158 = vsub.s32 %v6895, %v7157
      %v7159 = vrot.slane %v6703, %v7158
      %v7160 = vlaneseq
      %v7161 = vshrl.u32 %v7160, 7
      %v7162 = vsub.s32 %v6895, %v7161
      %v7163 = vrot.slane %v6704, %v7162
      %v7164 = vlaneseq
      %v7165 = vshrl.u32 %v7164, 7
      %v7166 = vsub.s32 %v6895, %v7165
      %v7167 = vrot.slane %v6705, %v7166
      %v7168 = vlaneseq
      %v7169 = vshrl.u32 %v7168, 7
      %v7170 = vsub.s32 %v6895, %v7169
      %v7171 = vrot.slane %v6706, %v7170
      %v7172 = vlaneseq
      %v7173 = vshrl.u32 %v7172, 7
      %v7174 = vsub.s32 %v6895, %v7173
      %v7175 = vrot.slane %v6707, %v7174
      %v7176 = vlaneseq
      %v7177 = vshrl.u32 %v7176, 7
      %v7178 = vsub.s32 %v6895, %v7177
      %v7179 = vrot.slane %v6708, %v7178
      %v7180 = vlaneseq
      %v7181 = vshrl.u32 %v7180, 7
      %v7182 = vsub.s32 %v6895, %v7181
      %v7183 = vrot.slane %v6709, %v7182
      %v7184 = vlaneseq
      %v7185 = vshrl.u32 %v7184, 7
      %v7186 = vsub.s32 %v6895, %v7185
      %v7187 = vrot.slane %v6710, %v7186
      %v7188 = vlaneseq
      %v7189 = vshrl.u32 %v7188, 7
      %v7190 = vsub.s32 %v6895, %v7189
      %v7191 = vrot.slane %v6711, %v7190
      %v7192 = vlaneseq
      %v7193 = vshrl.u32 %v7192, 7
      %v7194 = vsub.s32 %v6895, %v7193
      %v7195 = vrot.slane %v6712, %v7194
      %v7196 = vlaneseq
      %v7197 = vshrl.u32 %v7196, 7
      %v7198 = vsub.s32 %v6895, %v7197
      %v7199 = vrot.slane %v6713, %v7198
      %v7200 = vlaneseq
      %v7201 = vshrl.u32 %v7200, 7
      %v7202 = vsub.s32 %v6895, %v7201
      %v7203 = vrot.slane %v6714, %v7202
      %v7204 = vlaneseq
      %v7205 = vshrl.u32 %v7204, 7
      %v7206 = vsub.s32 %v6895, %v7205
      %v7207 = vrot.slane %v6715, %v7206
      %v7208 = vlaneseq
      %v7209 = vshrl.u32 %v7208, 7
      %v7210 = vsub.s32 %v6895, %v7209
      %v7211 = vrot.slane %v6716, %v7210
      %v7212 = vlaneseq
      %v7213 = vshrl.u32 %v7212, 7
      %v7214 = vsub.s32 %v6895, %v7213
      %v7215 = vrot.slane %v6717, %v7214
      %v7216 = vlaneseq
      %v7217 = vshrl.u32 %v7216, 7
      %v7218 = vsub.s32 %v6895, %v7217
      %v7219 = vrot.slane %v6718, %v7218
      %v7220 = vlaneseq
      %v7221 = vshrl.u32 %v7220, 7
      %v7222 = vsub.s32 %v6895, %v7221
      %v7223 = vrot.slane %v6719, %v7222
      %v7224 = vlaneseq
      %v7225 = vshrl.u32 %v7224, 7
      %v7226 = vsub.s32 %v6895, %v7225
      %v7227 = vrot.slane %v6720, %v7226
      %v7228 = vlaneseq
      %v7229 = vshrl.u32 %v7228, 7
      %v7230 = vsub.s32 %v6895, %v7229
      %v7231 = vrot.slane %v6721, %v7230
      %v7232 = vlaneseq
      %v7233 = vshrl.u32 %v7232, 7
      %v7234 = vsub.s32 %v6895, %v7233
      %v7235 = vrot.slane %v6722, %v7234
      %v7236 = vlaneseq
      %v7237 = vshrl.u32 %v7236, 7
      %v7238 = vsub.s32 %v6895, %v7237
      %v7239 = vrot.slane %v6723, %v7238
      %v7240 = vlaneseq
      %v7241 = vshrl.u32 %v7240, 7
      %v7242 = vsub.s32 %v6895, %v7241
      %v7243 = vrot.slane %v6724, %v7242
      %v7244 = vlaneseq
      %v7245 = vshrl.u32 %v7244, 7
      %v7246 = vsub.s32 %v6895, %v7245
      %v7247 = vrot.slane %v6725, %v7246
      %v7248 = vlaneseq
      %v7249 = vshrl.u32 %v7248, 7
      %v7250 = vsub.s32 %v6895, %v7249
      %v7251 = vrot.slane %v6726, %v7250
      %v7252 = vlaneseq
      %v7253 = vshrl.u32 %v7252, 7
      %v7254 = vsub.s32 %v6895, %v7253
      %v7255 = vrot.slane %v6727, %v7254
      %v7256 = vlaneseq
      %v7257 = vshrl.u32 %v7256, 7
      %v7258 = vsub.s32 %v6895, %v7257
      %v7259 = vrot.slane %v6728, %v7258
      %v7260 = vlaneseq
      %v7261 = vshrl.u32 %v7260, 7
      %v7262 = vsub.s32 %v6895, %v7261
      %v7263 = vrot.slane %v6729, %v7262
      %v7264 = vlaneseq
      %v7265 = vshrl.u32 %v7264, 7
      %v7266 = vsub.s32 %v6895, %v7265
      %v7267 = vrot.slane %v6730, %v7266
      %v7268 = vlaneseq
      %v7269 = vshrl.u32 %v7268, 7
      %v7270 = vsub.s32 %v6895, %v7269
      %v7271 = vrot.slane %v6731, %v7270
      %v7272 = vlaneseq
      %v7273 = vshrl.u32 %v7272, 7
      %v7274 = vsub.s32 %v6895, %v7273
      %v7275 = vrot.slane %v6732, %v7274
      %v7276 = vlaneseq
      %v7277 = vshrl.u32 %v7276, 7
      %v7278 = vsub.s32 %v6895, %v7277
      %v7279 = vrot.slane %v6733, %v7278
      %v7280 = vlaneseq
      %v7281 = vshrl.u32 %v7280, 7
      %v7282 = vsub.s32 %v6895, %v7281
      %v7283 = vrot.slane %v6734, %v7282
      %v7284 = vlaneseq
      %v7285 = vshrl.u32 %v7284, 7
      %v7286 = vsub.s32 %v6895, %v7285
      %v7287 = vrot.slane %v6735, %v7286
      %v7288 = vlaneseq
      %v7289 = vshrl.u32 %v7288, 7
      %v7290 = vsub.s32 %v6895, %v7289
      %v7291 = vrot.slane %v6736, %v7290
      %v7292 = vlaneseq
      %v7293 = vshrl.u32 %v7292, 7
      %v7294 = vsub.s32 %v6895, %v7293
      %v7295 = vrot.slane %v6737, %v7294
      %v7296 = vlaneseq
      %v7297 = vshrl.u32 %v7296, 7
      %v7298 = vsub.s32 %v6895, %v7297
      %v7299 = vrot.slane %v6738, %v7298
      %v7300 = vlaneseq
      %v7301 = vshrl.u32 %v7300, 7
      %v7302 = vsub.s32 %v6895, %v7301
      %v7303 = vrot.slane %v6739, %v7302
      %v7304 = vlaneseq
      %v7305 = vshrl.u32 %v7304, 7
      %v7306 = vsub.s32 %v6895, %v7305
      %v7307 = vrot.slane %v6740, %v7306
      %v7308 = vlaneseq
      %v7309 = vshrl.u32 %v7308, 7
      %v7310 = vsub.s32 %v6895, %v7309
      %v7311 = vrot.slane %v6741, %v7310
      %v7312 = vlaneseq
      %v7313 = vshrl.u32 %v7312, 7
      %v7314 = vsub.s32 %v6895, %v7313
      %v7315 = vrot.slane %v6742, %v7314
      %v7316 = vlaneseq
      %v7317 = vshrl.u32 %v7316, 7
      %v7318 = vsub.s32 %v6895, %v7317
      %v7319 = vrot.slane %v6743, %v7318
      %v7320 = vlaneseq
      %v7321 = vshrl.u32 %v7320, 7
      %v7322 = vsub.s32 %v6895, %v7321
      %v7323 = vrot.slane %v6744, %v7322
      %v7324 = vlaneseq
      %v7325 = vshrl.u32 %v7324, 7
      %v7326 = vsub.s32 %v6895, %v7325
      %v7327 = vrot.slane %v6745, %v7326
      %v7328 = vlaneseq
      %v7329 = vshrl.u32 %v7328, 7
      %v7330 = vsub.s32 %v6895, %v7329
      %v7331 = vrot.slane %v6746, %v7330
      %v7332 = vlaneseq
      %v7333 = vshrl.u32 %v7332, 7
      %v7334 = vsub.s32 %v6895, %v7333
      %v7335 = vrot.slane %v6747, %v7334
      %v7336 = vlaneseq
      %v7337 = vshrl.u32 %v7336, 7
      %v7338 = vsub.s32 %v6895, %v7337
      %v7339 = vrot.slane %v6748, %v7338
      %v7340 = vlaneseq
      %v7341 = vshrl.u32 %v7340, 7
      %v7342 = vsub.s32 %v6895, %v7341
      %v7343 = vrot.slane %v6749, %v7342
      %v7344 = vlaneseq
      %v7345 = vshrl.u32 %v7344, 7
      %v7346 = vsub.s32 %v6895, %v7345
      %v7347 = vrot.slane %v6750, %v7346
      %v7348 = vlaneseq
      %v7349 = vshrl.u32 %v7348, 7
      %v7350 = vsub.s32 %v6895, %v7349
      %v7351 = vrot.slane %v6751, %v7350
      %v7352 = vlaneseq
      %v7353 = vshrl.u32 %v7352, 7
      %v7354 = vsub.s32 %v6895, %v7353
      %v7355 = vrot.slane %v6752, %v7354
      %v7356 = vlaneseq
      %v7357 = vshrl.u32 %v7356, 7
      %v7358 = vsub.s32 %v6895, %v7357
      %v7359 = vrot.slane %v6753, %v7358
      %v7360 = vlaneseq
      %v7361 = vshrl.u32 %v7360, 7
      %v7362 = vsub.s32 %v6895, %v7361
      %v7363 = vrot.slane %v6754, %v7362
      %v7364 = vlaneseq
      %v7365 = vshrl.u32 %v7364, 7
      %v7366 = vsub.s32 %v6895, %v7365
      %v7367 = vrot.slane %v6755, %v7366
      %v7368 = vlaneseq
      %v7369 = vshrl.u32 %v7368, 7
      %v7370 = vsub.s32 %v6895, %v7369
      %v7371 = vrot.slane %v6756, %v7370
      %v7372 = vlaneseq
      %v7373 = vshrl.u32 %v7372, 7
      %v7374 = vsub.s32 %v6895, %v7373
      %v7375 = vrot.slane %v6757, %v7374
      %v7376 = vlaneseq
      %v7377 = vshrl.u32 %v7376, 7
      %v7378 = vsub.s32 %v6895, %v7377
      %v7379 = vrot.slane %v6758, %v7378
      %v7380 = vlaneseq
      %v7381 = vshrl.u32 %v7380, 7
      %v7382 = vsub.s32 %v6895, %v7381
      %v7383 = vrot.slane %v6759, %v7382
      %v7384 = vlaneseq
      %v7385 = vshrl.u32 %v7384, 7
      %v7386 = vsub.s32 %v6895, %v7385
      %v7387 = vrot.slane %v6760, %v7386
      %v7388 = vlaneseq
      %v7389 = vshrl.u32 %v7388, 7
      %v7390 = vsub.s32 %v6895, %v7389
      %v7391 = vrot.slane %v6761, %v7390
      %v7392 = vlaneseq
      %v7393 = vshrl.u32 %v7392, 7
      %v7394 = vsub.s32 %v6895, %v7393
      %v7395 = vrot.slane %v6762, %v7394
      %v7396 = vlaneseq
      %v7397 = vshrl.u32 %v7396, 7
      %v7398 = vsub.s32 %v6895, %v7397
      %v7399 = vrot.slane %v6763, %v7398
      %v7400 = vlaneseq
      %v7401 = vshrl.u32 %v7400, 7
      %v7402 = vsub.s32 %v6895, %v7401
      %v7403 = vrot.slane %v6764, %v7402
      %v7404 = vlaneseq
      %v7405 = vshrl.u32 %v7404, 7
      %v7406 = vsub.s32 %v6895, %v7405
      %v7407 = vrot.slane %v6765, %v7406
      %vm7408 = vcmask 1041409
      %v7409 = vsel %vm7408, %v6903, %v6899
      %vm7410 = vcmask 1042434
      %v7411 = vsel %vm7410, %v6907, %v7409
      %vm7412 = vcmask 1043459
      %v7413 = vsel %vm7412, %v6911, %v7411
      %vm7414 = vcmask 1044484
      %v7415 = vsel %vm7414, %v6915, %v7413
      %vm7416 = vcmask 1045509
      %v7417 = vsel %vm7416, %v6919, %v7415
      %vm7418 = vcmask 1046534
      %v7419 = vsel %vm7418, %v6923, %v7417
      %vm7420 = vcmask 1047559
      %v7421 = vsel %vm7420, %v6927, %v7419
      %v7422 = vsel %vm7408, %v6935, %v6931
      %v7423 = vsel %vm7410, %v6939, %v7422
      %v7424 = vsel %vm7412, %v6943, %v7423
      %v7425 = vsel %vm7414, %v6947, %v7424
      %v7426 = vsel %vm7416, %v6951, %v7425
      %v7427 = vsel %vm7418, %v6955, %v7426
      %v7428 = vsel %vm7420, %v6959, %v7427
      %v7429 = vsel %vm7408, %v6967, %v6963
      %v7430 = vsel %vm7410, %v6971, %v7429
      %v7431 = vsel %vm7412, %v6975, %v7430
      %v7432 = vsel %vm7414, %v6979, %v7431
      %v7433 = vsel %vm7416, %v6983, %v7432
      %v7434 = vsel %vm7418, %v6987, %v7433
      %v7435 = vsel %vm7420, %v6991, %v7434
      %v7436 = vsel %vm7408, %v6999, %v6995
      %v7437 = vsel %vm7410, %v7003, %v7436
      %v7438 = vsel %vm7412, %v7007, %v7437
      %v7439 = vsel %vm7414, %v7011, %v7438
      %v7440 = vsel %vm7416, %v7015, %v7439
      %v7441 = vsel %vm7418, %v7019, %v7440
      %v7442 = vsel %vm7420, %v7023, %v7441
      %v7443 = vsel %vm7408, %v7031, %v7027
      %v7444 = vsel %vm7410, %v7035, %v7443
      %v7445 = vsel %vm7412, %v7039, %v7444
      %v7446 = vsel %vm7414, %v7043, %v7445
      %v7447 = vsel %vm7416, %v7047, %v7446
      %v7448 = vsel %vm7418, %v7051, %v7447
      %v7449 = vsel %vm7420, %v7055, %v7448
      %v7450 = vsel %vm7408, %v7063, %v7059
      %v7451 = vsel %vm7410, %v7067, %v7450
      %v7452 = vsel %vm7412, %v7071, %v7451
      %v7453 = vsel %vm7414, %v7075, %v7452
      %v7454 = vsel %vm7416, %v7079, %v7453
      %v7455 = vsel %vm7418, %v7083, %v7454
      %v7456 = vsel %vm7420, %v7087, %v7455
      %v7457 = vsel %vm7408, %v7095, %v7091
      %v7458 = vsel %vm7410, %v7099, %v7457
      %v7459 = vsel %vm7412, %v7103, %v7458
      %v7460 = vsel %vm7414, %v7107, %v7459
      %v7461 = vsel %vm7416, %v7111, %v7460
      %v7462 = vsel %vm7418, %v7115, %v7461
      %v7463 = vsel %vm7420, %v7119, %v7462
      %v7464 = vsel %vm7408, %v7127, %v7123
      %v7465 = vsel %vm7410, %v7131, %v7464
      %v7466 = vsel %vm7412, %v7135, %v7465
      %v7467 = vsel %vm7414, %v7139, %v7466
      %v7468 = vsel %vm7416, %v7143, %v7467
      %v7469 = vsel %vm7418, %v7147, %v7468
      %v7470 = vsel %vm7420, %v7151, %v7469
      %v7471 = vsel %vm7408, %v7159, %v7155
      %v7472 = vsel %vm7410, %v7163, %v7471
      %v7473 = vsel %vm7412, %v7167, %v7472
      %v7474 = vsel %vm7414, %v7171, %v7473
      %v7475 = vsel %vm7416, %v7175, %v7474
      %v7476 = vsel %vm7418, %v7179, %v7475
      %v7477 = vsel %vm7420, %v7183, %v7476
      %v7478 = vsel %vm7408, %v7191, %v7187
      %v7479 = vsel %vm7410, %v7195, %v7478
      %v7480 = vsel %vm7412, %v7199, %v7479
      %v7481 = vsel %vm7414, %v7203, %v7480
      %v7482 = vsel %vm7416, %v7207, %v7481
      %v7483 = vsel %vm7418, %v7211, %v7482
      %v7484 = vsel %vm7420, %v7215, %v7483
      %v7485 = vsel %vm7408, %v7223, %v7219
      %v7486 = vsel %vm7410, %v7227, %v7485
      %v7487 = vsel %vm7412, %v7231, %v7486
      %v7488 = vsel %vm7414, %v7235, %v7487
      %v7489 = vsel %vm7416, %v7239, %v7488
      %v7490 = vsel %vm7418, %v7243, %v7489
      %v7491 = vsel %vm7420, %v7247, %v7490
      %v7492 = vsel %vm7408, %v7255, %v7251
      %v7493 = vsel %vm7410, %v7259, %v7492
      %v7494 = vsel %vm7412, %v7263, %v7493
      %v7495 = vsel %vm7414, %v7267, %v7494
      %v7496 = vsel %vm7416, %v7271, %v7495
      %v7497 = vsel %vm7418, %v7275, %v7496
      %v7498 = vsel %vm7420, %v7279, %v7497
      %v7499 = vsel %vm7408, %v7287, %v7283
      %v7500 = vsel %vm7410, %v7291, %v7499
      %v7501 = vsel %vm7412, %v7295, %v7500
      %v7502 = vsel %vm7414, %v7299, %v7501
      %v7503 = vsel %vm7416, %v7303, %v7502
      %v7504 = vsel %vm7418, %v7307, %v7503
      %v7505 = vsel %vm7420, %v7311, %v7504
      %v7506 = vsel %vm7408, %v7319, %v7315
      %v7507 = vsel %vm7410, %v7323, %v7506
      %v7508 = vsel %vm7412, %v7327, %v7507
      %v7509 = vsel %vm7414, %v7331, %v7508
      %v7510 = vsel %vm7416, %v7335, %v7509
      %v7511 = vsel %vm7418, %v7339, %v7510
      %v7512 = vsel %vm7420, %v7343, %v7511
      %v7513 = vsel %vm7408, %v7351, %v7347
      %v7514 = vsel %vm7410, %v7355, %v7513
      %v7515 = vsel %vm7412, %v7359, %v7514
      %v7516 = vsel %vm7414, %v7363, %v7515
      %v7517 = vsel %vm7416, %v7367, %v7516
      %v7518 = vsel %vm7418, %v7371, %v7517
      %v7519 = vsel %vm7420, %v7375, %v7518
      %v7520 = vsel %vm7408, %v7383, %v7379
      %v7521 = vsel %vm7410, %v7387, %v7520
      %v7522 = vsel %vm7412, %v7391, %v7521
      %v7523 = vsel %vm7414, %v7395, %v7522
      %v7524 = vsel %vm7416, %v7399, %v7523
      %v7525 = vsel %vm7418, %v7403, %v7524
      %v7526 = vsel %vm7420, %v7407, %v7525
      %vm7543 = vcmask 64512
      %7544 = vst.msk [vmem:[%s330] sm:$0xff] %vm7543, %v7421
      %7545 = vst.msk [vmem:[%s330 + $0x8] sm:$0xff] %vm7543, %v7428
      %7546 = vst.msk [vmem:[%s330 + $0x10] sm:$0xff] %vm7543, %v7435
      %7547 = vst.msk [vmem:[%s330 + $0x18] sm:$0xff] %vm7543, %v7442
      %7548 = vst.msk [vmem:[%s330 + $0x20] sm:$0xff] %vm7543, %v7449
      %7549 = vst.msk [vmem:[%s330 + $0x28] sm:$0xff] %vm7543, %v7456
      %7550 = vst.msk [vmem:[%s330 + $0x30] sm:$0xff] %vm7543, %v7463
      %7551 = vst.msk [vmem:[%s330 + $0x38] sm:$0xff] %vm7543, %v7470
      %7552 = vst.msk [vmem:[%s330 + $0x40] sm:$0xff] %vm7543, %v7477
      %7553 = vst.msk [vmem:[%s330 + $0x48] sm:$0xff] %vm7543, %v7484
      %7554 = vst.msk [vmem:[%s330 + $0x50] sm:$0xff] %vm7543, %v7491
      %7555 = vst.msk [vmem:[%s330 + $0x58] sm:$0xff] %vm7543, %v7498
      %7556 = vst.msk [vmem:[%s330 + $0x60] sm:$0xff] %vm7543, %v7505
      %7557 = vst.msk [vmem:[%s330 + $0x68] sm:$0xff] %vm7543, %v7512
      %7558 = vst.msk [vmem:[%s330 + $0x70] sm:$0xff] %vm7543, %v7519
      %7559 = vst.msk [vmem:[%s330 + $0x78] sm:$0xff] %vm7543, %v7526
      %s7560 = smul.u32 16, %s20
      %p7561 = scmp.lt.s32.totalorder %s7560, 31
      %s7562 = scalar_select %p7561, %s7560, 31
      %s7563 = smul.addr %s7562, 8
      %s7564 = scalar_lea.vmem %s8, %s7563
      // Predicated region
      $region53: #{tpu_custom_call.1} parent=51 // pred_check
        %p7565 = pneg %p216
      $region54: #{tpu_custom_call.1} parent=51 // pred_check_branch
        %7567 = sbr.rel (%p7565) target = $region56
      $region55: #{tpu_custom_call.1} parent=51 // pred_region
        %s7568 = smul.u32 16, %s20
      $region56: #{tpu_custom_call.1} parent=51 // pred_fallthru
        _
    $region52: #{tpu_custom_call.1} parent=5 // pred_fallthru
      _
    %p7569 = scmp.le.s32.totalorder 2, %s15
    // Predicated region
    $region57: #{tpu_custom_call.1} parent=5 // pred_check
      %p7570 = pneg %p7569
    $region58: #{tpu_custom_call.1} parent=5 // pred_check_branch
      %7572 = sbr.rel (%p7570) target = $region60
    $region59: #{tpu_custom_call.1} parent=5 // pred_region
      %s7573 = ssub.s32 %s15, 2
      // Predicated region
      $region61: #{tpu_custom_call.1} parent=59 // pred_check
        %p7574 = pneg %p222
      $region62: #{tpu_custom_call.1} parent=59 // pred_check_branch
        %7576 = sbr.rel (%p7574) target = $region64
      $region63: #{tpu_custom_call.1} parent=59 // pred_region
        %s7577 = smul.u32 16, %s21
        %p7578 = scmp.lt.s32.totalorder %s7577, 31
        %s7579 = scalar_select %p7578, %s7577, 31
        %s7580 = smul.addr %s7579, 8
        %s7581 = scalar_lea.vmem %s8, %s7580
      $region64: #{tpu_custom_call.1} parent=59 // pred_fallthru
        _
    $region60: #{tpu_custom_call.1} parent=5 // pred_fallthru
      _
  $region6: #{tpu_custom_call.1} parent=0 // loop_footer
    %s19 = sadd.s32 1, %s15
  $region7: #{tpu_custom_call.1} parent=0 // loop_footer_branch
    %14 = sbr.rel target = $region3
  $region8: #{tpu_custom_call.1} parent=0 // loop_exit
    _

</llo_original>
